<compile_context>
chip_gen: v5e
topology: v5e:2x2
jax: 0.10.0
libtpu: 0.0.40
codegen_flags: <defaults>
</compile_context>

<pallas_src>
import jax
import jax.numpy as jnp
from jax import lax
from jax.experimental import pallas as pl
from jax.experimental.pallas import tpu as pltpu

HID = 8          # hid_size in the PyTorch module
N_CLASSES = 5
N_TOKENS = 50


def lstm_head_kernel(x_ref, wg_ref, bg_ref, hw_ref, hb_ref, out_ref):
    TB, T, H = x_ref.shape
    G = 4 * H
    C = out_ref.shape[-1]

    # --- fused gate weights: rows [0:H) = W_x (H,4H), rows [H:2H) = W_h (H,4H) ---
    wg = wg_ref[...]
    w_x = wg[:H, :]
    w_h = wg[H:, :]
    b_g = bg_ref[...]                                   # (1, 4H), b_ih + b_hh

    # --- hoisted input projection: one (TB*T, H) x (H, 4H) matmul for all timesteps ---
    x2 = x_ref[...].reshape(TB * T, H).astype(jnp.float32)
    xp = jnp.dot(x2, w_x, preferred_element_type=jnp.float32) + b_g
    xp = xp.reshape(TB, T, G)

    # --- serial recurrence: fully unrolled, one matmul per step ---
    h = jnp.zeros((TB, H), jnp.float32)
    c = jnp.zeros((TB, H), jnp.float32)
    for t in range(T):                                   # T static -> full unroll, static slices
        gates = xp[:, t, :] + jnp.dot(h, w_h, preferred_element_type=jnp.float32)
        i = jax.nn.sigmoid(gates[:, 0 * H:1 * H])
        f = jax.nn.sigmoid(gates[:, 1 * H:2 * H])
        g = jnp.tanh(gates[:, 2 * H:3 * H])
        o = jax.nn.sigmoid(gates[:, 3 * H:4 * H])
        c = f * c + i * g
        h = o * jnp.tanh(c)

    # Dropout(p=0.25) in eval mode == identity; ReLU.
    h = jnp.maximum(h, 0.0)

    # --- head: Linear(+folded BN) -> LeakyReLU(0.01) -> Linear -> Softmax ---
    hw = hw_ref[...]                                     # (2H, H): [W1_bnfolded ; W2 (padded)]
    hb = hb_ref[...]                                     # (2,  H): [b1_bnfolded ; b2 (padded)]
    w1 = hw[:H, :]
    w2 = hw[H:, :C]
    b1 = hb[0:1, :]
    b2 = hb[1:2, :C]

    z = jnp.dot(h, w1, preferred_element_type=jnp.float32) + b1
    z = jnp.where(z > 0, z, 0.01 * z)                    # LeakyReLU (default slope 0.01)
    logits = jnp.dot(z, w2, preferred_element_type=jnp.float32) + b2
    m = jnp.max(logits, axis=-1, keepdims=True)
    e = jnp.exp(logits - m)
    s = jnp.sum(e, axis=-1, keepdims=True)
    out_ref[...] = e * pl.reciprocal(s, approx=True)


def make_params(key, n_tokens=N_TOKENS, hid=HID, n_classes=N_CLASSES):
    ks = jax.random.split(key, 12)
    scale = 0.1
    p = {}
    p["embed"] = jax.random.normal(ks[0], (n_tokens, hid), jnp.float32) * scale
    # LSTM weights, PyTorch gate order (i, f, g, o); stored as (in, out).
    p["w_ih"] = jax.random.normal(ks[1], (4, hid, hid), jnp.float32) * scale
    p["w_hh"] = jax.random.normal(ks[2], (4, hid, hid), jnp.float32) * scale
    p["b_ih"] = jax.random.normal(ks[3], (4, hid), jnp.float32) * scale
    p["b_hh"] = jax.random.normal(ks[4], (4, hid), jnp.float32) * scale
    # Head: Linear(hid, hid) -> BN(hid) -> LeakyReLU -> Linear(hid, 5) -> Softmax
    p["w1"] = jax.random.normal(ks[5], (hid, hid), jnp.float32) * scale
    p["b1"] = jax.random.normal(ks[6], (hid,), jnp.float32) * scale
    p["bn_gamma"] = 1.0 + 0.1 * jax.random.normal(ks[7], (hid,), jnp.float32)
    p["bn_beta"] = 0.1 * jax.random.normal(ks[8], (hid,), jnp.float32)
    p["bn_mean"] = 0.1 * jax.random.normal(ks[9], (hid,), jnp.float32)
    p["bn_var"] = jnp.abs(1.0 + 0.1 * jax.random.normal(ks[10], (hid,), jnp.float32))
    p["w2"] = jax.random.normal(ks[11], (hid, n_classes), jnp.float32) * scale
    p["b2"] = jnp.zeros((n_classes,), jnp.float32)
    return p


def pack_params(params):
    """Host-side fusion/packing of all weights into a few kernel slabs."""
    H, C = HID, N_CLASSES
    # Fuse the 4 gates along the output dim (PyTorch order i,f,g,o), stack x-path over h-path.
    w_x = jnp.concatenate([params["w_ih"][g] for g in range(4)], axis=1)     # (H, 4H)
    w_h = jnp.concatenate([params["w_hh"][g] for g in range(4)], axis=1)     # (H, 4H)
    w_gates = jnp.concatenate([w_x, w_h], axis=0)                            # (2H, 4H)
    b_gates = (params["b_ih"] + params["b_hh"]).reshape(1, 4 * H)            # (1, 4H)

    # Fold BatchNorm1d (eval, running stats) into Linear1:
    #   (x @ W1 + b1) * scale + shift  ==  x @ (W1 * scale) + (b1 * scale + shift)
    eps = 1e-5
    inv_std = 1.0 / jnp.sqrt(params["bn_var"] + eps)
    scale = params["bn_gamma"] * inv_std
    shift = params["bn_beta"] - params["bn_mean"] * scale
    w1f = params["w1"] * scale[None, :]
    b1f = params["b1"] * scale + shift

    head_w = jnp.zeros((2 * H, H), jnp.float32)
    head_w = head_w.at[:H, :].set(w1f)
    head_w = head_w.at[H:, :C].set(params["w2"])
    head_b = jnp.zeros((2, H), jnp.float32)
    head_b = head_b.at[0, :].set(b1f)
    head_b = head_b.at[1, :C].set(params["b2"])
    return w_gates, b_gates, head_w, head_b


def lstm_predictor_forward(tokens, params, *, batch_tile=8):
    B, T = tokens.shape
    H, C = HID, N_CLASSES

    # --- glue: embedding gather (plain JAX) ---
    x = jnp.take(params["embed"], tokens, axis=0)                            # (B, T, H) f32

    w_gates, b_gates, head_w, head_b = pack_params(params)

    # Batch tile: full batch if small, else a multiple of 8 (sublane-aligned output block).
    TB = B if B <= batch_tile else batch_tile
    assert B % TB == 0, "batch must be divisible by the batch tile"
    grid = (B // TB,)

    out = pl.pallas_call(
        lstm_head_kernel,
        out_shape=jax.ShapeDtypeStruct((B, C), jnp.float32),
        grid=grid,
        in_specs=[
            pl.BlockSpec((TB, T, H), lambda b: (b, 0, 0)),     # per-tile activations
            pl.BlockSpec((2 * H, 4 * H), lambda b: (0, 0)),    # fused gate weights
            pl.BlockSpec((1, 4 * H), lambda b: (0, 0)),        # fused gate bias
            pl.BlockSpec((2 * H, H), lambda b: (0, 0)),        # head weights (BN folded)
            pl.BlockSpec((2, H), lambda b: (0, 0)),            # head biases
        ],
        out_specs=pl.BlockSpec((TB, C), lambda b: (b, 0)),
        compiler_params=pltpu.CompilerParams(
            dimension_semantics=("parallel",),                 # shards batch tiles across TCs (v7x)
        ),
    )(x, w_gates, b_gates, head_w, head_b)
    # torch .squeeze() is a no-op for B > 1 / n_classes = 5
    return out


def reference_forward(tokens, params):
    """Pure-JAX reference (same inference-mode semantics) for correctness check."""
    B, T = tokens.shape
    H = HID
    x = jnp.take(params["embed"], tokens, axis=0)
    wi_x, wf_x, wg_x, wo_x = [params["w_ih"][g] for g in range(4)]
    wi_h, wf_h, wg_h, wo_h = [params["w_hh"][g] for g in range(4)]
    b = params["b_ih"] + params["b_hh"]
    h = jnp.zeros((B, H), jnp.float32)
    c = jnp.zeros((B, H), jnp.float32)
    for t in range(T):
        x_t = x[:, t, :]
        i = jax.nn.sigmoid(x_t @ wi_x + h @ wi_h + b[0])
        f = jax.nn.sigmoid(x_t @ wf_x + h @ wf_h + b[1])
        g = jnp.tanh(x_t @ wg_x + h @ wg_h + b[2])
        o = jax.nn.sigmoid(x_t @ wo_x + h @ wo_h + b[3])
        c = f * c + i * g
        h = o * jnp.tanh(c)
    h = jnp.maximum(h, 0.0)
    z = h @ params["w1"] + params["b1"]
    eps = 1e-5
    z = (z - params["bn_mean"]) / jnp.sqrt(params["bn_var"] + eps) * params["bn_gamma"] + params["bn_beta"]
    z = jnp.where(z > 0, z, 0.01 * z)
    logits = z @ params["w2"] + params["b2"]
    return jax.nn.softmax(logits, axis=-1)


if __name__ == "__main__":
    key = jax.random.PRNGKey(0)
    k_tok, k_par = jax.random.split(key)

    B, T = 16, 8                      # small; grid = (2,) with batch tile 8
    tokens = jax.random.randint(k_tok, (B, T), 0, N_TOKENS, dtype=jnp.int32)
    params = make_params(k_par)

    out = lstm_predictor_forward(tokens, params)
    out = jax.block_until_ready(out)

    ref = reference_forward(tokens, params)
    assert out.shape == (B, N_CLASSES)
    # Slightly loosened tolerance to accommodate the EUP approx-reciprocal in the softmax.
    assert jnp.allclose(out, ref, rtol=2e-3, atol=2e-4), \
        f"kernel mismatch vs reference (max abs err {jnp.max(jnp.abs(out - ref))})"
    # TODO(synk): Dropout / BatchNorm1d implemented in inference mode (identity / running-stats
    #             fold); training-mode batch statistics & RNG dropout masks are not reproduced.
    print("KERNEL_OK")
</pallas_src>

<mosaic_0001>
module attributes {stable_mosaic.version = 11 : i64} {
  func.func @lstm_head_kernel(%arg0: i32, %arg1: memref<8x8x8xf32, #tpu.memory_space<vmem>>, %arg2: memref<16x32xf32, #tpu.memory_space<vmem>>, %arg3: memref<1x32xf32, #tpu.memory_space<vmem>>, %arg4: memref<16x8xf32, #tpu.memory_space<vmem>>, %arg5: memref<2x8xf32, #tpu.memory_space<vmem>>, %arg6: memref<8x5xf32, #tpu.memory_space<vmem>>) attributes {dimension_semantics = [#tpu.dimension_semantics<parallel>], iteration_bounds = array<i64: 2>, scalar_prefetch = 0 : i64, scratch_operands = 0 : i64, tpu.core_type = #tpu.core_type<tc>, window_params = [{transform_indices = @transform_0, window_bounds = array<i64: 8, 8, 8>}, {pipeline_mode = #tpu.pipeline_mode<synchronous>, transform_indices = @transform_1, window_bounds = array<i64: 16, 32>}, {pipeline_mode = #tpu.pipeline_mode<synchronous>, transform_indices = @transform_2, window_bounds = array<i64: 1, 32>}, {pipeline_mode = #tpu.pipeline_mode<synchronous>, transform_indices = @transform_3, window_bounds = array<i64: 16, 8>}, {pipeline_mode = #tpu.pipeline_mode<synchronous>, transform_indices = @transform_4, window_bounds = array<i64: 2, 8>}, {transform_indices = @transform_5, window_bounds = array<i64: 8, 5>}]} {
    %c0 = arith.constant 0 : index
    %c0_0 = arith.constant 0 : index
    %0 = vector.load %arg2[%c0, %c0_0] : memref<16x32xf32, #tpu.memory_space<vmem>>, vector<16x32xf32>
    %1 = vector.extract_strided_slice %0 {offsets = [0, 0], sizes = [8, 32], strides = [1, 1]} : vector<16x32xf32> to vector<8x32xf32>
    %2 = vector.extract_strided_slice %0 {offsets = [8, 0], sizes = [8, 32], strides = [1, 1]} : vector<16x32xf32> to vector<8x32xf32>
    %c0_1 = arith.constant 0 : index
    %c0_2 = arith.constant 0 : index
    %3 = vector.load %arg3[%c0_1, %c0_2] : memref<1x32xf32, #tpu.memory_space<vmem>>, vector<1x32xf32>
    %c0_3 = arith.constant 0 : index
    %c0_4 = arith.constant 0 : index
    %c0_5 = arith.constant 0 : index
    %4 = vector.load %arg1[%c0_3, %c0_4, %c0_5] : memref<8x8x8xf32, #tpu.memory_space<vmem>>, vector<8x8x8xf32>
    %5 = vector.shape_cast %4 : vector<8x8x8xf32> to vector<64x8xf32>
    %cst = arith.constant dense<0.000000e+00> : vector<64x32xf32>
    %6 = tpu.matmul %5, %1, %cst {dimension_numbers = #tpu.dot_dimension_numbers<[1], [0], [0], [1], [0, 0, 1, 1], [], []>} : vector<64x8xf32>, vector<8x32xf32>, vector<64x32xf32> -> vector<64x32xf32>
    %7 = vector.broadcast %3 : vector<1x32xf32> to vector<64x32xf32>
    %8 = arith.addf %6, %7 : vector<64x32xf32>
    %9 = vector.shape_cast %8 : vector<64x32xf32> to vector<8x8x32xf32>
    %cst_6 = arith.constant 0.000000e+00 : f32
    %10 = vector.broadcast %cst_6 : f32 to vector<8x8xf32>
    %cst_7 = arith.constant 0.000000e+00 : f32
    %11 = vector.broadcast %cst_7 : f32 to vector<8x8xf32>
    %12 = vector.extract_strided_slice %9 {offsets = [0, 0, 0], sizes = [8, 1, 32], strides = [1, 1, 1]} : vector<8x8x32xf32> to vector<8x1x32xf32>
    %13 = vector.shape_cast %12 : vector<8x1x32xf32> to vector<8x32xf32>
    %cst_8 = arith.constant dense<0.000000e+00> : vector<8x32xf32>
    %14 = tpu.matmul %10, %2, %cst_8 {dimension_numbers = #tpu.dot_dimension_numbers<[1], [0], [0], [1], [0, 0, 1, 1], [], []>} : vector<8x8xf32>, vector<8x32xf32>, vector<8x32xf32> -> vector<8x32xf32>
    %15 = arith.addf %13, %14 : vector<8x32xf32>
    %16 = vector.extract_strided_slice %15 {offsets = [0, 0], sizes = [8, 8], strides = [1, 1]} : vector<8x32xf32> to vector<8x8xf32>
    %17 = arith.negf %16 : vector<8x8xf32>
    %18 = math.exp %17 : vector<8x8xf32>
    %cst_9 = arith.constant 1.000000e+00 : f32
    %19 = vector.broadcast %cst_9 : f32 to vector<8x8xf32>
    %20 = arith.addf %19, %18 : vector<8x8xf32>
    %21 = arith.divf %19, %20 : vector<8x8xf32>
    %22 = vector.extract_strided_slice %15 {offsets = [0, 8], sizes = [8, 8], strides = [1, 1]} : vector<8x32xf32> to vector<8x8xf32>
    %23 = arith.negf %22 : vector<8x8xf32>
    %24 = math.exp %23 : vector<8x8xf32>
    %cst_10 = arith.constant 1.000000e+00 : f32
    %25 = vector.broadcast %cst_10 : f32 to vector<8x8xf32>
    %26 = arith.addf %25, %24 : vector<8x8xf32>
    %27 = arith.divf %25, %26 : vector<8x8xf32>
    %28 = vector.extract_strided_slice %15 {offsets = [0, 16], sizes = [8, 8], strides = [1, 1]} : vector<8x32xf32> to vector<8x8xf32>
    %29 = math.tanh %28 : vector<8x8xf32>
    %30 = vector.extract_strided_slice %15 {offsets = [0, 24], sizes = [8, 8], strides = [1, 1]} : vector<8x32xf32> to vector<8x8xf32>
    %31 = arith.negf %30 : vector<8x8xf32>
    %32 = math.exp %31 : vector<8x8xf32>
    %cst_11 = arith.constant 1.000000e+00 : f32
    %33 = vector.broadcast %cst_11 : f32 to vector<8x8xf32>
    %34 = arith.addf %33, %32 : vector<8x8xf32>
    %35 = arith.divf %33, %34 : vector<8x8xf32>
    %36 = arith.mulf %27, %11 : vector<8x8xf32>
    %37 = arith.mulf %21, %29 : vector<8x8xf32>
    %38 = arith.addf %36, %37 : vector<8x8xf32>
    %39 = math.tanh %38 : vector<8x8xf32>
    %40 = arith.mulf %35, %39 : vector<8x8xf32>
    %41 = vector.extract_strided_slice %9 {offsets = [0, 1, 0], sizes = [8, 1, 32], strides = [1, 1, 1]} : vector<8x8x32xf32> to vector<8x1x32xf32>
    %42 = vector.shape_cast %41 : vector<8x1x32xf32> to vector<8x32xf32>
    %cst_12 = arith.constant dense<0.000000e+00> : vector<8x32xf32>
    %43 = tpu.matmul %40, %2, %cst_12 {dimension_numbers = #tpu.dot_dimension_numbers<[1], [0], [0], [1], [0, 0, 1, 1], [], []>} : vector<8x8xf32>, vector<8x32xf32>, vector<8x32xf32> -> vector<8x32xf32>
    %44 = arith.addf %42, %43 : vector<8x32xf32>
    %45 = vector.extract_strided_slice %44 {offsets = [0, 0], sizes = [8, 8], strides = [1, 1]} : vector<8x32xf32> to vector<8x8xf32>
    %46 = arith.negf %45 : vector<8x8xf32>
    %47 = math.exp %46 : vector<8x8xf32>
    %cst_13 = arith.constant 1.000000e+00 : f32
    %48 = vector.broadcast %cst_13 : f32 to vector<8x8xf32>
    %49 = arith.addf %48, %47 : vector<8x8xf32>
    %50 = arith.divf %48, %49 : vector<8x8xf32>
    %51 = vector.extract_strided_slice %44 {offsets = [0, 8], sizes = [8, 8], strides = [1, 1]} : vector<8x32xf32> to vector<8x8xf32>
    %52 = arith.negf %51 : vector<8x8xf32>
    %53 = math.exp %52 : vector<8x8xf32>
    %cst_14 = arith.constant 1.000000e+00 : f32
    %54 = vector.broadcast %cst_14 : f32 to vector<8x8xf32>
    %55 = arith.addf %54, %53 : vector<8x8xf32>
    %56 = arith.divf %54, %55 : vector<8x8xf32>
    %57 = vector.extract_strided_slice %44 {offsets = [0, 16], sizes = [8, 8], strides = [1, 1]} : vector<8x32xf32> to vector<8x8xf32>
    %58 = math.tanh %57 : vector<8x8xf32>
    %59 = vector.extract_strided_slice %44 {offsets = [0, 24], sizes = [8, 8], strides = [1, 1]} : vector<8x32xf32> to vector<8x8xf32>
    %60 = arith.negf %59 : vector<8x8xf32>
    %61 = math.exp %60 : vector<8x8xf32>
    %cst_15 = arith.constant 1.000000e+00 : f32
    %62 = vector.broadcast %cst_15 : f32 to vector<8x8xf32>
    %63 = arith.addf %62, %61 : vector<8x8xf32>
    %64 = arith.divf %62, %63 : vector<8x8xf32>
    %65 = arith.mulf %56, %38 : vector<8x8xf32>
    %66 = arith.mulf %50, %58 : vector<8x8xf32>
    %67 = arith.addf %65, %66 : vector<8x8xf32>
    %68 = math.tanh %67 : vector<8x8xf32>
    %69 = arith.mulf %64, %68 : vector<8x8xf32>
    %70 = vector.extract_strided_slice %9 {offsets = [0, 2, 0], sizes = [8, 1, 32], strides = [1, 1, 1]} : vector<8x8x32xf32> to vector<8x1x32xf32>
    %71 = vector.shape_cast %70 : vector<8x1x32xf32> to vector<8x32xf32>
    %cst_16 = arith.constant dense<0.000000e+00> : vector<8x32xf32>
    %72 = tpu.matmul %69, %2, %cst_16 {dimension_numbers = #tpu.dot_dimension_numbers<[1], [0], [0], [1], [0, 0, 1, 1], [], []>} : vector<8x8xf32>, vector<8x32xf32>, vector<8x32xf32> -> vector<8x32xf32>
    %73 = arith.addf %71, %72 : vector<8x32xf32>
    %74 = vector.extract_strided_slice %73 {offsets = [0, 0], sizes = [8, 8], strides = [1, 1]} : vector<8x32xf32> to vector<8x8xf32>
    %75 = arith.negf %74 : vector<8x8xf32>
    %76 = math.exp %75 : vector<8x8xf32>
    %cst_17 = arith.constant 1.000000e+00 : f32
    %77 = vector.broadcast %cst_17 : f32 to vector<8x8xf32>
    %78 = arith.addf %77, %76 : vector<8x8xf32>
    %79 = arith.divf %77, %78 : vector<8x8xf32>
    %80 = vector.extract_strided_slice %73 {offsets = [0, 8], sizes = [8, 8], strides = [1, 1]} : vector<8x32xf32> to vector<8x8xf32>
    %81 = arith.negf %80 : vector<8x8xf32>
    %82 = math.exp %81 : vector<8x8xf32>
    %cst_18 = arith.constant 1.000000e+00 : f32
    %83 = vector.broadcast %cst_18 : f32 to vector<8x8xf32>
    %84 = arith.addf %83, %82 : vector<8x8xf32>
    %85 = arith.divf %83, %84 : vector<8x8xf32>
    %86 = vector.extract_strided_slice %73 {offsets = [0, 16], sizes = [8, 8], strides = [1, 1]} : vector<8x32xf32> to vector<8x8xf32>
    %87 = math.tanh %86 : vector<8x8xf32>
    %88 = vector.extract_strided_slice %73 {offsets = [0, 24], sizes = [8, 8], strides = [1, 1]} : vector<8x32xf32> to vector<8x8xf32>
    %89 = arith.negf %88 : vector<8x8xf32>
    %90 = math.exp %89 : vector<8x8xf32>
    %cst_19 = arith.constant 1.000000e+00 : f32
    %91 = vector.broadcast %cst_19 : f32 to vector<8x8xf32>
    %92 = arith.addf %91, %90 : vector<8x8xf32>
    %93 = arith.divf %91, %92 : vector<8x8xf32>
    %94 = arith.mulf %85, %67 : vector<8x8xf32>
    %95 = arith.mulf %79, %87 : vector<8x8xf32>
    %96 = arith.addf %94, %95 : vector<8x8xf32>
    %97 = math.tanh %96 : vector<8x8xf32>
    %98 = arith.mulf %93, %97 : vector<8x8xf32>
    %99 = vector.extract_strided_slice %9 {offsets = [0, 3, 0], sizes = [8, 1, 32], strides = [1, 1, 1]} : vector<8x8x32xf32> to vector<8x1x32xf32>
    %100 = vector.shape_cast %99 : vector<8x1x32xf32> to vector<8x32xf32>
    %cst_20 = arith.constant dense<0.000000e+00> : vector<8x32xf32>
    %101 = tpu.matmul %98, %2, %cst_20 {dimension_numbers = #tpu.dot_dimension_numbers<[1], [0], [0], [1], [0, 0, 1, 1], [], []>} : vector<8x8xf32>, vector<8x32xf32>, vector<8x32xf32> -> vector<8x32xf32>
    %102 = arith.addf %100, %101 : vector<8x32xf32>
    %103 = vector.extract_strided_slice %102 {offsets = [0, 0], sizes = [8, 8], strides = [1, 1]} : vector<8x32xf32> to vector<8x8xf32>
    %104 = arith.negf %103 : vector<8x8xf32>
    %105 = math.exp %104 : vector<8x8xf32>
    %cst_21 = arith.constant 1.000000e+00 : f32
    %106 = vector.broadcast %cst_21 : f32 to vector<8x8xf32>
    %107 = arith.addf %106, %105 : vector<8x8xf32>
    %108 = arith.divf %106, %107 : vector<8x8xf32>
    %109 = vector.extract_strided_slice %102 {offsets = [0, 8], sizes = [8, 8], strides = [1, 1]} : vector<8x32xf32> to vector<8x8xf32>
    %110 = arith.negf %109 : vector<8x8xf32>
    %111 = math.exp %110 : vector<8x8xf32>
    %cst_22 = arith.constant 1.000000e+00 : f32
    %112 = vector.broadcast %cst_22 : f32 to vector<8x8xf32>
    %113 = arith.addf %112, %111 : vector<8x8xf32>
    %114 = arith.divf %112, %113 : vector<8x8xf32>
    %115 = vector.extract_strided_slice %102 {offsets = [0, 16], sizes = [8, 8], strides = [1, 1]} : vector<8x32xf32> to vector<8x8xf32>
    %116 = math.tanh %115 : vector<8x8xf32>
    %117 = vector.extract_strided_slice %102 {offsets = [0, 24], sizes = [8, 8], strides = [1, 1]} : vector<8x32xf32> to vector<8x8xf32>
    %118 = arith.negf %117 : vector<8x8xf32>
    %119 = math.exp %118 : vector<8x8xf32>
    %cst_23 = arith.constant 1.000000e+00 : f32
    %120 = vector.broadcast %cst_23 : f32 to vector<8x8xf32>
    %121 = arith.addf %120, %119 : vector<8x8xf32>
    %122 = arith.divf %120, %121 : vector<8x8xf32>
    %123 = arith.mulf %114, %96 : vector<8x8xf32>
    %124 = arith.mulf %108, %116 : vector<8x8xf32>
    %125 = arith.addf %123, %124 : vector<8x8xf32>
    %126 = math.tanh %125 : vector<8x8xf32>
    %127 = arith.mulf %122, %126 : vector<8x8xf32>
    %128 = vector.extract_strided_slice %9 {offsets = [0, 4, 0], sizes = [8, 1, 32], strides = [1, 1, 1]} : vector<8x8x32xf32> to vector<8x1x32xf32>
    %129 = vector.shape_cast %128 : vector<8x1x32xf32> to vector<8x32xf32>
    %cst_24 = arith.constant dense<0.000000e+00> : vector<8x32xf32>
    %130 = tpu.matmul %127, %2, %cst_24 {dimension_numbers = #tpu.dot_dimension_numbers<[1], [0], [0], [1], [0, 0, 1, 1], [], []>} : vector<8x8xf32>, vector<8x32xf32>, vector<8x32xf32> -> vector<8x32xf32>
    %131 = arith.addf %129, %130 : vector<8x32xf32>
    %132 = vector.extract_strided_slice %131 {offsets = [0, 0], sizes = [8, 8], strides = [1, 1]} : vector<8x32xf32> to vector<8x8xf32>
    %133 = arith.negf %132 : vector<8x8xf32>
    %134 = math.exp %133 : vector<8x8xf32>
    %cst_25 = arith.constant 1.000000e+00 : f32
    %135 = vector.broadcast %cst_25 : f32 to vector<8x8xf32>
    %136 = arith.addf %135, %134 : vector<8x8xf32>
    %137 = arith.divf %135, %136 : vector<8x8xf32>
    %138 = vector.extract_strided_slice %131 {offsets = [0, 8], sizes = [8, 8], strides = [1, 1]} : vector<8x32xf32> to vector<8x8xf32>
    %139 = arith.negf %138 : vector<8x8xf32>
    %140 = math.exp %139 : vector<8x8xf32>
    %cst_26 = arith.constant 1.000000e+00 : f32
    %141 = vector.broadcast %cst_26 : f32 to vector<8x8xf32>
    %142 = arith.addf %141, %140 : vector<8x8xf32>
    %143 = arith.divf %141, %142 : vector<8x8xf32>
    %144 = vector.extract_strided_slice %131 {offsets = [0, 16], sizes = [8, 8], strides = [1, 1]} : vector<8x32xf32> to vector<8x8xf32>
    %145 = math.tanh %144 : vector<8x8xf32>
    %146 = vector.extract_strided_slice %131 {offsets = [0, 24], sizes = [8, 8], strides = [1, 1]} : vector<8x32xf32> to vector<8x8xf32>
    %147 = arith.negf %146 : vector<8x8xf32>
    %148 = math.exp %147 : vector<8x8xf32>
    %cst_27 = arith.constant 1.000000e+00 : f32
    %149 = vector.broadcast %cst_27 : f32 to vector<8x8xf32>
    %150 = arith.addf %149, %148 : vector<8x8xf32>
    %151 = arith.divf %149, %150 : vector<8x8xf32>
    %152 = arith.mulf %143, %125 : vector<8x8xf32>
    %153 = arith.mulf %137, %145 : vector<8x8xf32>
    %154 = arith.addf %152, %153 : vector<8x8xf32>
    %155 = math.tanh %154 : vector<8x8xf32>
    %156 = arith.mulf %151, %155 : vector<8x8xf32>
    %157 = vector.extract_strided_slice %9 {offsets = [0, 5, 0], sizes = [8, 1, 32], strides = [1, 1, 1]} : vector<8x8x32xf32> to vector<8x1x32xf32>
    %158 = vector.shape_cast %157 : vector<8x1x32xf32> to vector<8x32xf32>
    %cst_28 = arith.constant dense<0.000000e+00> : vector<8x32xf32>
    %159 = tpu.matmul %156, %2, %cst_28 {dimension_numbers = #tpu.dot_dimension_numbers<[1], [0], [0], [1], [0, 0, 1, 1], [], []>} : vector<8x8xf32>, vector<8x32xf32>, vector<8x32xf32> -> vector<8x32xf32>
    %160 = arith.addf %158, %159 : vector<8x32xf32>
    %161 = vector.extract_strided_slice %160 {offsets = [0, 0], sizes = [8, 8], strides = [1, 1]} : vector<8x32xf32> to vector<8x8xf32>
    %162 = arith.negf %161 : vector<8x8xf32>
    %163 = math.exp %162 : vector<8x8xf32>
    %cst_29 = arith.constant 1.000000e+00 : f32
    %164 = vector.broadcast %cst_29 : f32 to vector<8x8xf32>
    %165 = arith.addf %164, %163 : vector<8x8xf32>
    %166 = arith.divf %164, %165 : vector<8x8xf32>
    %167 = vector.extract_strided_slice %160 {offsets = [0, 8], sizes = [8, 8], strides = [1, 1]} : vector<8x32xf32> to vector<8x8xf32>
    %168 = arith.negf %167 : vector<8x8xf32>
    %169 = math.exp %168 : vector<8x8xf32>
    %cst_30 = arith.constant 1.000000e+00 : f32
    %170 = vector.broadcast %cst_30 : f32 to vector<8x8xf32>
    %171 = arith.addf %170, %169 : vector<8x8xf32>
    %172 = arith.divf %170, %171 : vector<8x8xf32>
    %173 = vector.extract_strided_slice %160 {offsets = [0, 16], sizes = [8, 8], strides = [1, 1]} : vector<8x32xf32> to vector<8x8xf32>
    %174 = math.tanh %173 : vector<8x8xf32>
    %175 = vector.extract_strided_slice %160 {offsets = [0, 24], sizes = [8, 8], strides = [1, 1]} : vector<8x32xf32> to vector<8x8xf32>
    %176 = arith.negf %175 : vector<8x8xf32>
    %177 = math.exp %176 : vector<8x8xf32>
    %cst_31 = arith.constant 1.000000e+00 : f32
    %178 = vector.broadcast %cst_31 : f32 to vector<8x8xf32>
    %179 = arith.addf %178, %177 : vector<8x8xf32>
    %180 = arith.divf %178, %179 : vector<8x8xf32>
    %181 = arith.mulf %172, %154 : vector<8x8xf32>
    %182 = arith.mulf %166, %174 : vector<8x8xf32>
    %183 = arith.addf %181, %182 : vector<8x8xf32>
    %184 = math.tanh %183 : vector<8x8xf32>
    %185 = arith.mulf %180, %184 : vector<8x8xf32>
    %186 = vector.extract_strided_slice %9 {offsets = [0, 6, 0], sizes = [8, 1, 32], strides = [1, 1, 1]} : vector<8x8x32xf32> to vector<8x1x32xf32>
    %187 = vector.shape_cast %186 : vector<8x1x32xf32> to vector<8x32xf32>
    %cst_32 = arith.constant dense<0.000000e+00> : vector<8x32xf32>
    %188 = tpu.matmul %185, %2, %cst_32 {dimension_numbers = #tpu.dot_dimension_numbers<[1], [0], [0], [1], [0, 0, 1, 1], [], []>} : vector<8x8xf32>, vector<8x32xf32>, vector<8x32xf32> -> vector<8x32xf32>
    %189 = arith.addf %187, %188 : vector<8x32xf32>
    %190 = vector.extract_strided_slice %189 {offsets = [0, 0], sizes = [8, 8], strides = [1, 1]} : vector<8x32xf32> to vector<8x8xf32>
    %191 = arith.negf %190 : vector<8x8xf32>
    %192 = math.exp %191 : vector<8x8xf32>
    %cst_33 = arith.constant 1.000000e+00 : f32
    %193 = vector.broadcast %cst_33 : f32 to vector<8x8xf32>
    %194 = arith.addf %193, %192 : vector<8x8xf32>
    %195 = arith.divf %193, %194 : vector<8x8xf32>
    %196 = vector.extract_strided_slice %189 {offsets = [0, 8], sizes = [8, 8], strides = [1, 1]} : vector<8x32xf32> to vector<8x8xf32>
    %197 = arith.negf %196 : vector<8x8xf32>
    %198 = math.exp %197 : vector<8x8xf32>
    %cst_34 = arith.constant 1.000000e+00 : f32
    %199 = vector.broadcast %cst_34 : f32 to vector<8x8xf32>
    %200 = arith.addf %199, %198 : vector<8x8xf32>
    %201 = arith.divf %199, %200 : vector<8x8xf32>
    %202 = vector.extract_strided_slice %189 {offsets = [0, 16], sizes = [8, 8], strides = [1, 1]} : vector<8x32xf32> to vector<8x8xf32>
    %203 = math.tanh %202 : vector<8x8xf32>
    %204 = vector.extract_strided_slice %189 {offsets = [0, 24], sizes = [8, 8], strides = [1, 1]} : vector<8x32xf32> to vector<8x8xf32>
    %205 = arith.negf %204 : vector<8x8xf32>
    %206 = math.exp %205 : vector<8x8xf32>
    %cst_35 = arith.constant 1.000000e+00 : f32
    %207 = vector.broadcast %cst_35 : f32 to vector<8x8xf32>
    %208 = arith.addf %207, %206 : vector<8x8xf32>
    %209 = arith.divf %207, %208 : vector<8x8xf32>
    %210 = arith.mulf %201, %183 : vector<8x8xf32>
    %211 = arith.mulf %195, %203 : vector<8x8xf32>
    %212 = arith.addf %210, %211 : vector<8x8xf32>
    %213 = math.tanh %212 : vector<8x8xf32>
    %214 = arith.mulf %209, %213 : vector<8x8xf32>
    %215 = vector.extract_strided_slice %9 {offsets = [0, 7, 0], sizes = [8, 1, 32], strides = [1, 1, 1]} : vector<8x8x32xf32> to vector<8x1x32xf32>
    %216 = vector.shape_cast %215 : vector<8x1x32xf32> to vector<8x32xf32>
    %cst_36 = arith.constant dense<0.000000e+00> : vector<8x32xf32>
    %217 = tpu.matmul %214, %2, %cst_36 {dimension_numbers = #tpu.dot_dimension_numbers<[1], [0], [0], [1], [0, 0, 1, 1], [], []>} : vector<8x8xf32>, vector<8x32xf32>, vector<8x32xf32> -> vector<8x32xf32>
    %218 = arith.addf %216, %217 : vector<8x32xf32>
    %219 = vector.extract_strided_slice %218 {offsets = [0, 0], sizes = [8, 8], strides = [1, 1]} : vector<8x32xf32> to vector<8x8xf32>
    %220 = arith.negf %219 : vector<8x8xf32>
    %221 = math.exp %220 : vector<8x8xf32>
    %cst_37 = arith.constant 1.000000e+00 : f32
    %222 = vector.broadcast %cst_37 : f32 to vector<8x8xf32>
    %223 = arith.addf %222, %221 : vector<8x8xf32>
    %224 = arith.divf %222, %223 : vector<8x8xf32>
    %225 = vector.extract_strided_slice %218 {offsets = [0, 8], sizes = [8, 8], strides = [1, 1]} : vector<8x32xf32> to vector<8x8xf32>
    %226 = arith.negf %225 : vector<8x8xf32>
    %227 = math.exp %226 : vector<8x8xf32>
    %cst_38 = arith.constant 1.000000e+00 : f32
    %228 = vector.broadcast %cst_38 : f32 to vector<8x8xf32>
    %229 = arith.addf %228, %227 : vector<8x8xf32>
    %230 = arith.divf %228, %229 : vector<8x8xf32>
    %231 = vector.extract_strided_slice %218 {offsets = [0, 16], sizes = [8, 8], strides = [1, 1]} : vector<8x32xf32> to vector<8x8xf32>
    %232 = math.tanh %231 : vector<8x8xf32>
    %233 = vector.extract_strided_slice %218 {offsets = [0, 24], sizes = [8, 8], strides = [1, 1]} : vector<8x32xf32> to vector<8x8xf32>
    %234 = arith.negf %233 : vector<8x8xf32>
    %235 = math.exp %234 : vector<8x8xf32>
    %cst_39 = arith.constant 1.000000e+00 : f32
    %236 = vector.broadcast %cst_39 : f32 to vector<8x8xf32>
    %237 = arith.addf %236, %235 : vector<8x8xf32>
    %238 = arith.divf %236, %237 : vector<8x8xf32>
    %239 = arith.mulf %230, %212 : vector<8x8xf32>
    %240 = arith.mulf %224, %232 : vector<8x8xf32>
    %241 = arith.addf %239, %240 : vector<8x8xf32>
    %242 = math.tanh %241 : vector<8x8xf32>
    %243 = arith.mulf %238, %242 : vector<8x8xf32>
    %cst_40 = arith.constant 0.000000e+00 : f32
    %244 = vector.broadcast %cst_40 : f32 to vector<8x8xf32>
    %245 = arith.maximumf %243, %244 : vector<8x8xf32>
    %c0_41 = arith.constant 0 : index
    %c0_42 = arith.constant 0 : index
    %246 = vector.load %arg4[%c0_41, %c0_42] : memref<16x8xf32, #tpu.memory_space<vmem>>, vector<16x8xf32>
    %c0_43 = arith.constant 0 : index
    %c0_44 = arith.constant 0 : index
    %247 = vector.load %arg5[%c0_43, %c0_44] : memref<2x8xf32, #tpu.memory_space<vmem>>, vector<2x8xf32>
    %248 = vector.extract_strided_slice %246 {offsets = [0, 0], sizes = [8, 8], strides = [1, 1]} : vector<16x8xf32> to vector<8x8xf32>
    %249 = vector.extract_strided_slice %246 {offsets = [8, 0], sizes = [8, 5], strides = [1, 1]} : vector<16x8xf32> to vector<8x5xf32>
    %250 = vector.extract_strided_slice %247 {offsets = [0, 0], sizes = [1, 8], strides = [1, 1]} : vector<2x8xf32> to vector<1x8xf32>
    %251 = vector.extract_strided_slice %247 {offsets = [1, 0], sizes = [1, 5], strides = [1, 1]} : vector<2x8xf32> to vector<1x5xf32>
    %cst_45 = arith.constant dense<0.000000e+00> : vector<8x8xf32>
    %252 = tpu.matmul %245, %248, %cst_45 {dimension_numbers = #tpu.dot_dimension_numbers<[1], [0], [0], [1], [0, 0, 1, 1], [], []>} : vector<8x8xf32>, vector<8x8xf32>, vector<8x8xf32> -> vector<8x8xf32>
    %253 = vector.broadcast %250 : vector<1x8xf32> to vector<8x8xf32>
    %254 = arith.addf %252, %253 : vector<8x8xf32>
    %cst_46 = arith.constant 0.000000e+00 : f32
    %255 = vector.broadcast %cst_46 : f32 to vector<8x8xf32>
    %256 = arith.cmpf ogt, %254, %255 : vector<8x8xf32>
    %cst_47 = arith.constant 0.00999999977 : f32
    %257 = vector.broadcast %cst_47 : f32 to vector<8x8xf32>
    %258 = arith.mulf %257, %254 : vector<8x8xf32>
    %259 = arith.select %256, %254, %258 : vector<8x8xi1>, vector<8x8xf32>
    %cst_48 = arith.constant dense<0.000000e+00> : vector<8x5xf32>
    %260 = tpu.matmul %259, %249, %cst_48 {dimension_numbers = #tpu.dot_dimension_numbers<[1], [0], [0], [1], [0, 0, 1, 1], [], []>} : vector<8x8xf32>, vector<8x5xf32>, vector<8x5xf32> -> vector<8x5xf32>
    %261 = vector.broadcast %251 : vector<1x5xf32> to vector<8x5xf32>
    %262 = arith.addf %260, %261 : vector<8x5xf32>
    %cst_49 = arith.constant dense<0xFF800000> : vector<8xf32>
    %263 = vector.multi_reduction <maximumf>, %262, %cst_49 [1] : vector<8x5xf32> to vector<8xf32>
    %264 = vector.shape_cast %263 : vector<8xf32> to vector<8x1xf32>
    %265 = vector.broadcast %264 : vector<8x1xf32> to vector<8x5xf32>
    %266 = arith.subf %262, %265 : vector<8x5xf32>
    %267 = math.exp %266 : vector<8x5xf32>
    %cst_50 = arith.constant dense<0.000000e+00> : vector<8xf32>
    %268 = vector.multi_reduction <add>, %267, %cst_50 [1] : vector<8x5xf32> to vector<8xf32>
    %269 = vector.shape_cast %268 : vector<8xf32> to vector<8x1xf32>
    %270 = tpu.reciprocal %269 {approx = true} : vector<8x1xf32> -> vector<8x1xf32>
    %271 = vector.broadcast %270 : vector<8x1xf32> to vector<8x5xf32>
    %272 = arith.mulf %267, %271 : vector<8x5xf32>
    %c0_51 = arith.constant 0 : index
    %c0_52 = arith.constant 0 : index
    %273 = vector.load %arg6[%c0_51, %c0_52] : memref<8x5xf32, #tpu.memory_space<vmem>>, vector<8x5xf32>
    tpu.vector_store %arg6[%c0_51, %c0_52], %272 {strides = array<i32>} : memref<8x5xf32, #tpu.memory_space<vmem>>, vector<8x5xf32>,
    return
  }
  func.func @transform_0(%arg0: i32) -> (i32, i32, i32) {
    %c0_i32 = arith.constant 0 : i32
    %c0_i32_0 = arith.constant 0 : i32
    %c0_i32_1 = arith.constant 0 : i32
    return %arg0, %c0_i32, %c0_i32_0 : i32, i32, i32
  }
  func.func @transform_1(%arg0: i32) -> (i32, i32) {
    %c0_i32 = arith.constant 0 : i32
    %c0_i32_0 = arith.constant 0 : i32
    %c0_i32_1 = arith.constant 0 : i32
    return %c0_i32, %c0_i32_0 : i32, i32
  }
  func.func @transform_2(%arg0: i32) -> (i32, i32) {
    %c0_i32 = arith.constant 0 : i32
    %c0_i32_0 = arith.constant 0 : i32
    %c0_i32_1 = arith.constant 0 : i32
    return %c0_i32, %c0_i32_0 : i32, i32
  }
  func.func @transform_3(%arg0: i32) -> (i32, i32) {
    %c0_i32 = arith.constant 0 : i32
    %c0_i32_0 = arith.constant 0 : i32
    %c0_i32_1 = arith.constant 0 : i32
    return %c0_i32, %c0_i32_0 : i32, i32
  }
  func.func @transform_4(%arg0: i32) -> (i32, i32) {
    %c0_i32 = arith.constant 0 : i32
    %c0_i32_0 = arith.constant 0 : i32
    %c0_i32_1 = arith.constant 0 : i32
    return %c0_i32, %c0_i32_0 : i32, i32
  }
  func.func @transform_5(%arg0: i32) -> (i32, i32) {
    %c0_i32 = arith.constant 0 : i32
    %c0_i32_0 = arith.constant 0 : i32
    return %arg0, %c0_i32 : i32, i32
  }
}

</mosaic_0001>

<llo_original>
// kernel: tpu_custom_call.1
$region0: #{tpu_custom_call.1}
  #allocation0 [shape = 'u32[]', space=smem, size = 0x4, offset = 0x4, fixed_abs, tag = 'smem constant byte address 0x4 - core index']
  #allocation1 [shape = 'u32[72,128]{1,0:T(1,128)}', space=vmem, size = 0x9000, scoped, tag = 'internal scratch']
  %s0 = inlined_call_operand.vmem [shape: f32[16,8,8], index: 0, kind: input, shape index: {}]
  %s1 = inlined_call_operand.vmem [shape: f32[16,32], index: 1, kind: input, shape index: {}]
  %s2 = inlined_call_operand.vmem [shape: f32[1,32], index: 2, kind: input, shape index: {}]
  %s3 = inlined_call_operand.vmem [shape: f32[16,8], index: 3, kind: input, shape index: {}]
  %s4 = inlined_call_operand.vmem [shape: f32[2,8], index: 4, kind: input, shape index: {}]
  %s5 = inlined_call_operand.vmem [shape: f32[16,5], index: 5, kind: output, shape index: {}]
  %s6 = sld [smem:[#allocation0]]
  $region53: #{tpu_custom_call.1} parent=0
    _
  %s8 = ssub.s32 1, %s6
  %s9 = scalar_select 0, %s8, %s6
  loop: start=0, step=1, limit=4
  $region2: #{tpu_custom_call.1} parent=0 // loop_pre_header
    _
  $region3: #{tpu_custom_call.1} parent=0 // loop_header
    %s11 = sphi 0, %s15
    %p12 = scmp.ge.s32.totalorder %s11, 4
    %s21 = sphi 0, %s23
    %s24 = sphi 0, %s21
    %s25 = sphi 0, %s24
    %s41 = sphi 0, %s25
    %s45 = sphi 0, %s45
    %s47 = sphi 0, %s45
    %s48 = sphi 0, %s47
    %s62 = sphi 0, %s48
    %s66 = sphi 0, %s66
    %s68 = sphi 0, %s66
    %s69 = sphi 0, %s68
    %s83 = sphi 0, %s69
    %s87 = sphi 0, %s87
    %s89 = sphi 0, %s87
    %s90 = sphi 0, %s89
    %s104 = sphi 0, %s90
    %s108 = sphi 0, %s108
    %s110 = sphi 0, %s108
    %s111 = sphi 0, %s110
    %s125 = sphi 0, %s111
    %s131 = sphi 0, %s133
    %s134 = sphi 0, %s131
    %s135 = sphi 0, %s134
    %s151 = sphi 0, %s135
  $region4: #{tpu_custom_call.1} parent=0 // loop_header_branch
    %14 = sbr.rel (%p12) target = $region8
  $region5: #{tpu_custom_call.1} parent=0 // loop_body
    %s16 = ssub.s32 %s11, 1
    %s17 = ssub.s32 %s11, 2
    %s18 = sadd.s32 %s11, 1
    %s19 = ssub.s32 %s11, %s18
    %p20 = scmp.eq.s32.totalorder %s19, 0
    %s22 = sadd.s32 %s21, 1
    %s23 = scalar_select %p20, %s21, %s22
    %p26 = pneg %p20
    %p27 = scmp.eq.s32.totalorder %s11, 1
    %p28 = por %p26, %p27
    %p29 = scmp.ne.s32.totalorder %s21, %s24
    %p30 = scmp.eq.s32.totalorder %s11, 0
    %p31 = por %p29, %p30
    %p32 = scmp.ne.s32.totalorder %s21, %s24
    %p33 = scmp.eq.s32.totalorder %s16, 1
    %p34 = por %p32, %p33
    %p35 = scmp.ne.s32.totalorder %s24, %s25
    %p36 = scmp.eq.s32.totalorder %s16, 0
    %p37 = por %p35, %p36
    %p38 = scmp.ne.s32.totalorder %s24, %s25
    %p39 = scmp.eq.s32.totalorder %s17, 1
    %p40 = por %p38, %p39
    %p42 = scmp.ne.s32.totalorder %s25, %s41
    %p43 = scmp.eq.s32.totalorder %s17, 0
    %p44 = por %p42, %p43
    %s46 = sadd.s32 %s45, 1
    %p49 = scmp.eq.s32.totalorder %s11, 1
    %p50 = scmp.ne.s32.totalorder %s45, %s47
    %p51 = scmp.eq.s32.totalorder %s11, 0
    %p52 = por %p50, %p51
    %p53 = scmp.ne.s32.totalorder %s45, %s47
    %p54 = scmp.eq.s32.totalorder %s16, 1
    %p55 = por %p53, %p54
    %p56 = scmp.ne.s32.totalorder %s47, %s48
    %p57 = scmp.eq.s32.totalorder %s16, 0
    %p58 = por %p56, %p57
    %p59 = scmp.ne.s32.totalorder %s47, %s48
    %p60 = scmp.eq.s32.totalorder %s17, 1
    %p61 = por %p59, %p60
    %p63 = scmp.ne.s32.totalorder %s48, %s62
    %p64 = scmp.eq.s32.totalorder %s17, 0
    %p65 = por %p63, %p64
    %s67 = sadd.s32 %s66, 1
    %p70 = scmp.eq.s32.totalorder %s11, 1
    %p71 = scmp.ne.s32.totalorder %s66, %s68
    %p72 = scmp.eq.s32.totalorder %s11, 0
    %p73 = por %p71, %p72
    %p74 = scmp.ne.s32.totalorder %s66, %s68
    %p75 = scmp.eq.s32.totalorder %s16, 1
    %p76 = por %p74, %p75
    %p77 = scmp.ne.s32.totalorder %s68, %s69
    %p78 = scmp.eq.s32.totalorder %s16, 0
    %p79 = por %p77, %p78
    %p80 = scmp.ne.s32.totalorder %s68, %s69
    %p81 = scmp.eq.s32.totalorder %s17, 1
    %p82 = por %p80, %p81
    %p84 = scmp.ne.s32.totalorder %s69, %s83
    %p85 = scmp.eq.s32.totalorder %s17, 0
    %p86 = por %p84, %p85
    %s88 = sadd.s32 %s87, 1
    %p91 = scmp.eq.s32.totalorder %s11, 1
    %p92 = scmp.ne.s32.totalorder %s87, %s89
    %p93 = scmp.eq.s32.totalorder %s11, 0
    %p94 = por %p92, %p93
    %p95 = scmp.ne.s32.totalorder %s87, %s89
    %p96 = scmp.eq.s32.totalorder %s16, 1
    %p97 = por %p95, %p96
    %p98 = scmp.ne.s32.totalorder %s89, %s90
    %p99 = scmp.eq.s32.totalorder %s16, 0
    %p100 = por %p98, %p99
    %p101 = scmp.ne.s32.totalorder %s89, %s90
    %p102 = scmp.eq.s32.totalorder %s17, 1
    %p103 = por %p101, %p102
    %p105 = scmp.ne.s32.totalorder %s90, %s104
    %p106 = scmp.eq.s32.totalorder %s17, 0
    %p107 = por %p105, %p106
    %s109 = sadd.s32 %s108, 1
    %p112 = scmp.eq.s32.totalorder %s11, 1
    %p113 = scmp.ne.s32.totalorder %s108, %s110
    %p114 = scmp.eq.s32.totalorder %s11, 0
    %p115 = por %p113, %p114
    %p116 = scmp.ne.s32.totalorder %s108, %s110
    %p117 = scmp.eq.s32.totalorder %s16, 1
    %p118 = por %p116, %p117
    %p119 = scmp.ne.s32.totalorder %s110, %s111
    %p120 = scmp.eq.s32.totalorder %s16, 0
    %p121 = por %p119, %p120
    %p122 = scmp.ne.s32.totalorder %s110, %s111
    %p123 = scmp.eq.s32.totalorder %s17, 1
    %p124 = por %p122, %p123
    %p126 = scmp.ne.s32.totalorder %s111, %s125
    %p127 = scmp.eq.s32.totalorder %s17, 0
    %p128 = por %p126, %p127
    %s129 = ssub.s32 %s11, %s18
    %p130 = scmp.eq.s32.totalorder %s129, 0
    %s132 = sadd.s32 %s131, 1
    %s133 = scalar_select %p130, %s131, %s132
    %p136 = pneg %p130
    %p137 = scmp.eq.s32.totalorder %s11, 1
    %p138 = por %p136, %p137
    %p139 = scmp.ne.s32.totalorder %s131, %s134
    %p140 = scmp.eq.s32.totalorder %s11, 0
    %p141 = por %p139, %p140
    %p142 = scmp.ne.s32.totalorder %s131, %s134
    %p143 = scmp.eq.s32.totalorder %s16, 1
    %p144 = por %p142, %p143
    %p145 = scmp.ne.s32.totalorder %s134, %s135
    %p146 = scmp.eq.s32.totalorder %s16, 0
    %p147 = por %p145, %p146
    %p148 = scmp.ne.s32.totalorder %s134, %s135
    %p149 = scmp.eq.s32.totalorder %s17, 1
    %p150 = por %p148, %p149
    %p152 = scmp.ne.s32.totalorder %s135, %s151
    %p153 = scmp.eq.s32.totalorder %s17, 0
    %p154 = por %p152, %p153
    %p155 = scmp.le.s32.totalorder 1, %s11
    %p156 = scmp.lt.s32.totalorder %s11, 3
    %p157 = pnand %p155, %p156
    %p158 = pneg %p157
    // Predicated region
    $region9: #{tpu_custom_call.1} parent=5 // pred_check
      _
    $region10: #{tpu_custom_call.1} parent=5 // pred_check_branch
      %160 = sbr.rel (%p157) target = $region12
    $region11: #{tpu_custom_call.1} parent=5 // pred_region
      %s161 = ssub.s32 %s11, 1
      // Predicated region
      $region13: #{tpu_custom_call.1} parent=11 // pred_check
        %p162 = pneg %p58
      $region14: #{tpu_custom_call.1} parent=11 // pred_check_branch
        %164 = sbr.rel (%p162) target = $region16
      $region15: #{tpu_custom_call.1} parent=11 // pred_region
        _
      $region16: #{tpu_custom_call.1} parent=11 // pred_fallthru
        _
      // Predicated region
      $region17: #{tpu_custom_call.1} parent=11 // pred_check
        %p165 = pneg %p79
      $region18: #{tpu_custom_call.1} parent=11 // pred_check_branch
        %167 = sbr.rel (%p165) target = $region20
      $region19: #{tpu_custom_call.1} parent=11 // pred_region
        _
      $region20: #{tpu_custom_call.1} parent=11 // pred_fallthru
        _
      // Predicated region
      $region21: #{tpu_custom_call.1} parent=11 // pred_check
        %p168 = pneg %p100
      $region22: #{tpu_custom_call.1} parent=11 // pred_check_branch
        %170 = sbr.rel (%p168) target = $region24
      $region23: #{tpu_custom_call.1} parent=11 // pred_region
        _
      $region24: #{tpu_custom_call.1} parent=11 // pred_fallthru
        _
      // Predicated region
      $region25: #{tpu_custom_call.1} parent=11 // pred_check
        %p171 = pneg %p121
      $region26: #{tpu_custom_call.1} parent=11 // pred_check_branch
        %173 = sbr.rel (%p171) target = $region28
      $region27: #{tpu_custom_call.1} parent=11 // pred_region
        _
      $region28: #{tpu_custom_call.1} parent=11 // pred_fallthru
        _
    $region12: #{tpu_custom_call.1} parent=5 // pred_fallthru
      _
    %p174 = scmp.lt.s32.totalorder %s11, 2
    // Predicated region
    $region29: #{tpu_custom_call.1} parent=5 // pred_check
      %p175 = pneg %p174
    $region30: #{tpu_custom_call.1} parent=5 // pred_check_branch
      %177 = sbr.rel (%p175) target = $region32
    $region31: #{tpu_custom_call.1} parent=5 // pred_region
      // Predicated region
      $region33: #{tpu_custom_call.1} parent=31 // pred_check
        %p178 = pneg %p31
      $region34: #{tpu_custom_call.1} parent=31 // pred_check_branch
        %180 = sbr.rel (%p178) target = $region36
      $region35: #{tpu_custom_call.1} parent=31 // pred_region
        %s181 = smul.u32 8, %s11
        %p182 = scmp.lt.s32.totalorder %s181, 15
        %s183 = scalar_select %p182, %s181, 15
        %s184 = smul.addr %s183, 8
        %s185 = scalar_lea.vmem %s0, %s184
        %s186 = smul.u32 8, %s11
      $region36: #{tpu_custom_call.1} parent=31 // pred_fallthru
        _
    $region32: #{tpu_custom_call.1} parent=5 // pred_fallthru
      _
    %p187 = scmp.le.s32.totalorder 1, %s11
    %p188 = scmp.lt.s32.totalorder %s11, 3
    %p189 = pnand %p187, %p188
    %p190 = pneg %p189
    // Predicated region
    $region37: #{tpu_custom_call.1} parent=5 // pred_check
      _
    $region38: #{tpu_custom_call.1} parent=5 // pred_check_branch
      %192 = sbr.rel (%p189) target = $region40
    $region39: #{tpu_custom_call.1} parent=5 // pred_region
      %s193 = ssub.s32 %s11, 1
      %s194 = smul.u32 8, %s16
      %p195 = scmp.lt.s32.totalorder %s194, 15
      %s196 = scalar_select %p195, %s194, 15
      %s197 = smul.addr %s196, 8
      %s198 = scalar_lea.vmem %s0, %s197
      %p199 = pneg %p37
      %p200 = pneg %p34
      %p201 = pneg %p58
      %p202 = pneg %p55
      %p203 = pneg %p79
      %p204 = pneg %p76
      %p205 = pneg %p100
      %p206 = pneg %p97
      %p207 = pneg %p121
      %p208 = pneg %p118
      %p209 = pneg %p147
      %p210 = pneg %p144
      %p211 = scmp.lt.s32.totalorder %s16, 1
      %s212 = scalar_select %p211, %s16, 1
      %s213 = smul.addr %s212, 8
      %s214 = scalar_lea.vmem %s5, %s213
      %s215 = smul.u32 8, %s16
      %p216 = scmp.lt.s32.totalorder %s215, 15
      %s217 = scalar_select %p216, %s215, 15
      %s218 = smul.addr %s217, 8
      %s219 = scalar_lea.vmem %s0, %s218
      %s220 = smul.u32 8, %s16
      %p221 = scmp.lt.s32.totalorder %s16, 1
      %s222 = scalar_select %p221, %s16, 1
      %s223 = smul.addr %s222, 8
      %s224 = scalar_lea.vmem %s5, %s223
      %v225 = vld [vmem:[%s1] sm:$0xff]
      %v226 = vld [vmem:[%s1 + $0x8] sm:$0xff]
      %v227 = vld [vmem:[%s2] sm:$0x1]
      %v228 = vld [vmem:[%s219] sm:$0xff]
      %v229 = vld [vmem:[%s219 + $0x8] sm:$0xff]
      %v230 = vld [vmem:[%s219 + $0x10] sm:$0xff]
      %v231 = vld [vmem:[%s219 + $0x18] sm:$0xff]
      %v232 = vld [vmem:[%s219 + $0x20] sm:$0xff]
      %v233 = vld [vmem:[%s219 + $0x28] sm:$0xff]
      %v234 = vld [vmem:[%s219 + $0x30] sm:$0xff]
      %v235 = vld [vmem:[%s219 + $0x38] sm:$0xff]
      %v237 = vperm.slane %v227, 0
      %vm239 = vcmask 64512
      %v241 = vsel %vm239, %v228, 0
      %v244 = vsel %vm239, %v229, 0
      %v247 = vsel %vm239, %v230, 0
      %v250 = vsel %vm239, %v231, 0
      %v253 = vsel %vm239, %v232, 0
      %v256 = vsel %vm239, %v233, 0
      %v259 = vsel %vm239, %v234, 0
      %v262 = vsel %vm239, %v235, 0
      %264 = vmatpush.msra.mxu0 0.0
      %265 = vmatpush.msra.mxu0 0.0
      %266 = vmatpush.msra.mxu0 0.0
      %267 = vmatpush.msra.mxu0 0.0
      %268 = vmatpush.msra.mxu0 0.0
      %269 = vmatpush.msra.mxu0 0.0
      %270 = vmatpush.msra.mxu0 0.0
      %271 = vmatpush.msra.mxu0 0.0
      %272 = vmatpush.msra.mxu0 0.0
      %273 = vmatpush.msra.mxu0 0.0
      %274 = vmatpush.msra.mxu0 0.0
      %275 = vmatpush.msra.mxu0 0.0
      %276 = vmatpush.msra.mxu0 0.0
      %277 = vmatpush.msra.mxu0 0.0
      %278 = vmatpush.msra.mxu0 0.0
      %279 = vmatpush.msra.mxu0 %v225
      %280 = vmatmul.f32.gmra.mxu0 %v241
      %v281 = vpop.f32.mrf.mxu0
      %v282 = vadd.f32 %v237, %v281
      %283 = vmatmul.f32.gmra.mxu0 %v244
      %v284 = vpop.f32.mrf.mxu0
      %v285 = vadd.f32 %v237, %v284
      %286 = vmatmul.f32.gmra.mxu0 %v247
      %v287 = vpop.f32.mrf.mxu0
      %v288 = vadd.f32 %v237, %v287
      %289 = vmatmul.f32.gmra.mxu0 %v250
      %v290 = vpop.f32.mrf.mxu0
      %v291 = vadd.f32 %v237, %v290
      %292 = vmatmul.f32.gmra.mxu0 %v253
      %v293 = vpop.f32.mrf.mxu0
      %v294 = vadd.f32 %v237, %v293
      %295 = vmatmul.f32.gmra.mxu0 %v256
      %v296 = vpop.f32.mrf.mxu0
      %v297 = vadd.f32 %v237, %v296
      %298 = vmatmul.f32.gmra.mxu0 %v259
      %v299 = vpop.f32.mrf.mxu0
      %v300 = vadd.f32 %v237, %v299
      %301 = vmatmul.f32.gmra.mxu0 %v262
      %v302 = vpop.f32.mrf.mxu0
      %v303 = vadd.f32 %v237, %v302
      %304 = vdwg.mxu0
      %v306 = vsel %vm239, 0.0, 0
      %308 = vmatpush.msra.mxu0 0.0
      %309 = vmatpush.msra.mxu0 0.0
      %310 = vmatpush.msra.mxu0 0.0
      %311 = vmatpush.msra.mxu0 0.0
      %312 = vmatpush.msra.mxu0 0.0
      %313 = vmatpush.msra.mxu0 0.0
      %314 = vmatpush.msra.mxu0 0.0
      %315 = vmatpush.msra.mxu0 0.0
      %316 = vmatpush.msra.mxu0 0.0
      %317 = vmatpush.msra.mxu0 0.0
      %318 = vmatpush.msra.mxu0 0.0
      %319 = vmatpush.msra.mxu0 0.0
      %320 = vmatpush.msra.mxu0 0.0
      %321 = vmatpush.msra.mxu0 0.0
      %322 = vmatpush.msra.mxu0 0.0
      %323 = vmatpush.msra.mxu0 %v226
      %324 = vmatmul.f32.gmra.mxu0 %v306
      %v325 = vpop.f32.mrf.mxu0
      %v326 = vadd.f32 0.0, %v325
      %327 = vdwg.mxu0
      %v329 = vrot.slane %v326, 1
      %v330 = vrot.slane %v326, 2
      %v331 = vrot.slane %v326, 3
      %v332 = vrot.slane %v326, 4
      %v333 = vrot.slane %v326, 5
      %v334 = vrot.slane %v326, 6
      %v335 = vrot.slane %v326, 7
      %v344 = vadd.f32 %v282, %v326
      %v345 = vadd.f32 %v285, %v329
      %v346 = vadd.f32 %v288, %v330
      %v347 = vadd.f32 %v291, %v331
      %v348 = vadd.f32 %v294, %v332
      %v349 = vadd.f32 %v297, %v333
      %v350 = vadd.f32 %v300, %v334
      %v351 = vadd.f32 %v303, %v335
      %v352 = vxor.u32 %v344, 2147483648
      %v353 = vxor.u32 %v345, 2147483648
      %v354 = vxor.u32 %v346, 2147483648
      %v355 = vxor.u32 %v347, 2147483648
      %v356 = vxor.u32 %v348, 2147483648
      %v357 = vxor.u32 %v349, 2147483648
      %v358 = vxor.u32 %v350, 2147483648
      %v359 = vxor.u32 %v351, 2147483648
      %v360 = vmul.f32 %v352, 1.442695
      %v361 = vpow.pop %v360
      %v362 = vmul.f32 %v353, 1.442695
      %v363 = vpow.pop %v362
      %v364 = vmul.f32 %v354, 1.442695
      %v365 = vpow.pop %v364
      %v366 = vmul.f32 %v355, 1.442695
      %v367 = vpow.pop %v366
      %v368 = vmul.f32 %v356, 1.442695
      %v369 = vpow.pop %v368
      %v370 = vmul.f32 %v357, 1.442695
      %v371 = vpow.pop %v370
      %v372 = vmul.f32 %v358, 1.442695
      %v373 = vpow.pop %v372
      %v374 = vmul.f32 %v359, 1.442695
      %v375 = vpow.pop %v374
      %v376 = vadd.f32 %v361, 1.0
      %v377 = vadd.f32 %v363, 1.0
      %v378 = vadd.f32 %v365, 1.0
      %v379 = vadd.f32 %v367, 1.0
      %v380 = vadd.f32 %v369, 1.0
      %v381 = vadd.f32 %v371, 1.0
      %v382 = vadd.f32 %v373, 1.0
      %v383 = vadd.f32 %v375, 1.0
      %v384 = vrcp.pop %v376
      %v385 = vmul.f32 %v376, %v384
      %v386 = vsub.f32 1.0, %v385
      %v387 = vmul.f32 %v384, %v386
      %v388 = vadd.f32 %v384, %v387
      %vm389 = vweird.f32 %v376
      %vm390 = vweird.f32 %v384
      %vm391 = vmor %vm389, %vm390
      %v392 = vsel %vm391, %v384, %v388
      %v393 = vand.u32 2147483647, %v376
      %vm394 = vcmp.eq.f32.partialorder %v393, 8.507059e+37
      %v395 = vand.u32 %v376, 2147483648
      %v396 = vor.u32 1.1754944e-38, %v395
      %v397 = vsel %vm394, %v396, %v392
      %v398 = vmul.f32 1.0, %v397
      %v399 = vrcp.pop %v377
      %v400 = vmul.f32 %v377, %v399
      %v401 = vsub.f32 1.0, %v400
      %v402 = vmul.f32 %v399, %v401
      %v403 = vadd.f32 %v399, %v402
      %vm404 = vweird.f32 %v377
      %vm405 = vweird.f32 %v399
      %vm406 = vmor %vm404, %vm405
      %v407 = vsel %vm406, %v399, %v403
      %v408 = vand.u32 2147483647, %v377
      %vm409 = vcmp.eq.f32.partialorder %v408, 8.507059e+37
      %v410 = vand.u32 %v377, 2147483648
      %v411 = vor.u32 1.1754944e-38, %v410
      %v412 = vsel %vm409, %v411, %v407
      %v413 = vmul.f32 1.0, %v412
      %v414 = vrcp.pop %v378
      %v415 = vmul.f32 %v378, %v414
      %v416 = vsub.f32 1.0, %v415
      %v417 = vmul.f32 %v414, %v416
      %v418 = vadd.f32 %v414, %v417
      %vm419 = vweird.f32 %v378
      %vm420 = vweird.f32 %v414
      %vm421 = vmor %vm419, %vm420
      %v422 = vsel %vm421, %v414, %v418
      %v423 = vand.u32 2147483647, %v378
      %vm424 = vcmp.eq.f32.partialorder %v423, 8.507059e+37
      %v425 = vand.u32 %v378, 2147483648
      %v426 = vor.u32 1.1754944e-38, %v425
      %v427 = vsel %vm424, %v426, %v422
      %v428 = vmul.f32 1.0, %v427
      %v429 = vrcp.pop %v379
      %v430 = vmul.f32 %v379, %v429
      %v431 = vsub.f32 1.0, %v430
      %v432 = vmul.f32 %v429, %v431
      %v433 = vadd.f32 %v429, %v432
      %vm434 = vweird.f32 %v379
      %vm435 = vweird.f32 %v429
      %vm436 = vmor %vm434, %vm435
      %v437 = vsel %vm436, %v429, %v433
      %v438 = vand.u32 2147483647, %v379
      %vm439 = vcmp.eq.f32.partialorder %v438, 8.507059e+37
      %v440 = vand.u32 %v379, 2147483648
      %v441 = vor.u32 1.1754944e-38, %v440
      %v442 = vsel %vm439, %v441, %v437
      %v443 = vmul.f32 1.0, %v442
      %v444 = vrcp.pop %v380
      %v445 = vmul.f32 %v380, %v444
      %v446 = vsub.f32 1.0, %v445
      %v447 = vmul.f32 %v444, %v446
      %v448 = vadd.f32 %v444, %v447
      %vm449 = vweird.f32 %v380
      %vm450 = vweird.f32 %v444
      %vm451 = vmor %vm449, %vm450
      %v452 = vsel %vm451, %v444, %v448
      %v453 = vand.u32 2147483647, %v380
      %vm454 = vcmp.eq.f32.partialorder %v453, 8.507059e+37
      %v455 = vand.u32 %v380, 2147483648
      %v456 = vor.u32 1.1754944e-38, %v455
      %v457 = vsel %vm454, %v456, %v452
      %v458 = vmul.f32 1.0, %v457
      %v459 = vrcp.pop %v381
      %v460 = vmul.f32 %v381, %v459
      %v461 = vsub.f32 1.0, %v460
      %v462 = vmul.f32 %v459, %v461
      %v463 = vadd.f32 %v459, %v462
      %vm464 = vweird.f32 %v381
      %vm465 = vweird.f32 %v459
      %vm466 = vmor %vm464, %vm465
      %v467 = vsel %vm466, %v459, %v463
      %v468 = vand.u32 2147483647, %v381
      %vm469 = vcmp.eq.f32.partialorder %v468, 8.507059e+37
      %v470 = vand.u32 %v381, 2147483648
      %v471 = vor.u32 1.1754944e-38, %v470
      %v472 = vsel %vm469, %v471, %v467
      %v473 = vmul.f32 1.0, %v472
      %v474 = vrcp.pop %v382
      %v475 = vmul.f32 %v382, %v474
      %v476 = vsub.f32 1.0, %v475
      %v477 = vmul.f32 %v474, %v476
      %v478 = vadd.f32 %v474, %v477
      %vm479 = vweird.f32 %v382
      %vm480 = vweird.f32 %v474
      %vm481 = vmor %vm479, %vm480
      %v482 = vsel %vm481, %v474, %v478
      %v483 = vand.u32 2147483647, %v382
      %vm484 = vcmp.eq.f32.partialorder %v483, 8.507059e+37
      %v485 = vand.u32 %v382, 2147483648
      %v486 = vor.u32 1.1754944e-38, %v485
      %v487 = vsel %vm484, %v486, %v482
      %v488 = vmul.f32 1.0, %v487
      %v489 = vrcp.pop %v383
      %v490 = vmul.f32 %v383, %v489
      %v491 = vsub.f32 1.0, %v490
      %v492 = vmul.f32 %v489, %v491
      %v493 = vadd.f32 %v489, %v492
      %vm494 = vweird.f32 %v383
      %vm495 = vweird.f32 %v489
      %vm496 = vmor %vm494, %vm495
      %v497 = vsel %vm496, %v489, %v493
      %v498 = vand.u32 2147483647, %v383
      %vm499 = vcmp.eq.f32.partialorder %v498, 8.507059e+37
      %v500 = vand.u32 %v383, 2147483648
      %v501 = vor.u32 1.1754944e-38, %v500
      %v502 = vsel %vm499, %v501, %v497
      %v503 = vmul.f32 1.0, %v502
      %v504 = vtanh.pop %v344
      %v505 = vtanh.pop %v345
      %v506 = vtanh.pop %v346
      %v507 = vtanh.pop %v347
      %v508 = vtanh.pop %v348
      %v509 = vtanh.pop %v349
      %v510 = vtanh.pop %v350
      %v511 = vtanh.pop %v351
      %v512 = vmul.f32 %v398, 0.0
      %v513 = vmul.f32 %v413, 0.0
      %v514 = vmul.f32 %v428, 0.0
      %v515 = vmul.f32 %v443, 0.0
      %v516 = vmul.f32 %v458, 0.0
      %v517 = vmul.f32 %v473, 0.0
      %v518 = vmul.f32 %v488, 0.0
      %v519 = vmul.f32 %v503, 0.0
      %528 = vrot.lane.b32.xlu0 %v504, 112
      %v529 = vpop.permute.xlu0 %528
      %530 = vrot.lane.b32.xlu0 %v505, 112
      %v531 = vpop.permute.xlu0 %530
      %532 = vrot.lane.b32.xlu0 %v506, 112
      %v533 = vpop.permute.xlu0 %532
      %534 = vrot.lane.b32.xlu0 %v507, 112
      %v535 = vpop.permute.xlu0 %534
      %536 = vrot.lane.b32.xlu0 %v508, 112
      %v537 = vpop.permute.xlu0 %536
      %538 = vrot.lane.b32.xlu0 %v509, 112
      %v539 = vpop.permute.xlu0 %538
      %540 = vrot.lane.b32.xlu0 %v510, 112
      %v541 = vpop.permute.xlu0 %540
      %542 = vrot.lane.b32.xlu0 %v511, 112
      %v543 = vpop.permute.xlu0 %542
      %v552 = vmul.f32 %v398, %v529
      %v553 = vmul.f32 %v413, %v531
      %v554 = vmul.f32 %v428, %v533
      %v555 = vmul.f32 %v443, %v535
      %v556 = vmul.f32 %v458, %v537
      %v557 = vmul.f32 %v473, %v539
      %v558 = vmul.f32 %v488, %v541
      %v559 = vmul.f32 %v503, %v543
      %568 = vrot.lane.b32.xlu0 %v552, 8
      %v569 = vpop.permute.xlu0 %568
      %570 = vrot.lane.b32.xlu0 %v553, 8
      %v571 = vpop.permute.xlu0 %570
      %572 = vrot.lane.b32.xlu0 %v554, 8
      %v573 = vpop.permute.xlu0 %572
      %574 = vrot.lane.b32.xlu0 %v555, 8
      %v575 = vpop.permute.xlu0 %574
      %576 = vrot.lane.b32.xlu0 %v556, 8
      %v577 = vpop.permute.xlu0 %576
      %578 = vrot.lane.b32.xlu0 %v557, 8
      %v579 = vpop.permute.xlu0 %578
      %580 = vrot.lane.b32.xlu0 %v558, 8
      %v581 = vpop.permute.xlu0 %580
      %582 = vrot.lane.b32.xlu0 %v559, 8
      %v583 = vpop.permute.xlu0 %582
      %v592 = vadd.f32 %v512, %v569
      %v593 = vadd.f32 %v513, %v571
      %v594 = vadd.f32 %v514, %v573
      %v595 = vadd.f32 %v515, %v575
      %v596 = vadd.f32 %v516, %v577
      %v597 = vadd.f32 %v517, %v579
      %v598 = vadd.f32 %v518, %v581
      %v599 = vadd.f32 %v519, %v583
      %v600 = vtanh.pop %v592
      %v601 = vtanh.pop %v593
      %v602 = vtanh.pop %v594
      %v603 = vtanh.pop %v595
      %v604 = vtanh.pop %v596
      %v605 = vtanh.pop %v597
      %v606 = vtanh.pop %v598
      %v607 = vtanh.pop %v599
      %616 = vrot.lane.b32.xlu0 %v600, 16
      %v617 = vpop.permute.xlu0 %616
      %618 = vrot.lane.b32.xlu0 %v601, 16
      %v619 = vpop.permute.xlu0 %618
      %620 = vrot.lane.b32.xlu0 %v602, 16
      %v621 = vpop.permute.xlu0 %620
      %622 = vrot.lane.b32.xlu0 %v603, 16
      %v623 = vpop.permute.xlu0 %622
      %624 = vrot.lane.b32.xlu0 %v604, 16
      %v625 = vpop.permute.xlu0 %624
      %626 = vrot.lane.b32.xlu0 %v605, 16
      %v627 = vpop.permute.xlu0 %626
      %628 = vrot.lane.b32.xlu0 %v606, 16
      %v629 = vpop.permute.xlu0 %628
      %630 = vrot.lane.b32.xlu0 %v607, 16
      %v631 = vpop.permute.xlu0 %630
      %v640 = vmul.f32 %v398, %v617
      %v641 = vmul.f32 %v413, %v619
      %v642 = vmul.f32 %v428, %v621
      %v643 = vmul.f32 %v443, %v623
      %v644 = vmul.f32 %v458, %v625
      %v645 = vmul.f32 %v473, %v627
      %v646 = vmul.f32 %v488, %v629
      %v647 = vmul.f32 %v503, %v631
      %v656 = vrot.slane %v641, 7
      %vm657 = vcmask 1041409
      %v658 = vsel %vm657, %v656, %v640
      %v659 = vrot.slane %v642, 6
      %vm660 = vcmask 1042434
      %v661 = vsel %vm660, %v659, %v658
      %v662 = vrot.slane %v643, 5
      %vm663 = vcmask 1043459
      %v664 = vsel %vm663, %v662, %v661
      %v665 = vrot.slane %v644, 4
      %vm666 = vcmask 1044484
      %v667 = vsel %vm666, %v665, %v664
      %v668 = vrot.slane %v645, 3
      %vm669 = vcmask 1045509
      %v670 = vsel %vm669, %v668, %v667
      %v671 = vrot.slane %v646, 2
      %vm672 = vcmask 1046534
      %v673 = vsel %vm672, %v671, %v670
      %v674 = vrot.slane %v647, 1
      %vm675 = vcmask 1047559
      %v676 = vsel %vm675, %v674, %v673
      %677 = vrot.lane.b32.xlu0 %v676, 104
      %v678 = vpop.permute.xlu0 %677
      %v679 = vsel %vm239, %v678, 0
      %681 = vmatpush.msra.mxu0 0.0
      %682 = vmatpush.msra.mxu0 0.0
      %683 = vmatpush.msra.mxu0 0.0
      %684 = vmatpush.msra.mxu0 0.0
      %685 = vmatpush.msra.mxu0 0.0
      %686 = vmatpush.msra.mxu0 0.0
      %687 = vmatpush.msra.mxu0 0.0
      %688 = vmatpush.msra.mxu0 0.0
      %689 = vmatpush.msra.mxu0 0.0
      %690 = vmatpush.msra.mxu0 0.0
      %691 = vmatpush.msra.mxu0 0.0
      %692 = vmatpush.msra.mxu0 0.0
      %693 = vmatpush.msra.mxu0 0.0
      %694 = vmatpush.msra.mxu0 0.0
      %695 = vmatpush.msra.mxu0 0.0
      %696 = vmatpush.msra.mxu0 %v226
      %697 = vmatmul.f32.gmra.mxu0 %v679
      %v698 = vpop.f32.mrf.mxu0
      %v699 = vadd.f32 0.0, %v698
      %700 = vdwg.mxu0
      %v702 = vrot.slane %v699, 7
      %v703 = vrot.slane %v699, 1
      %v704 = vrot.slane %v699, 2
      %v705 = vrot.slane %v699, 3
      %v706 = vrot.slane %v699, 4
      %v707 = vrot.slane %v699, 5
      %v708 = vrot.slane %v699, 6
      %v717 = vadd.f32 %v282, %v702
      %v718 = vadd.f32 %v285, %v699
      %v719 = vadd.f32 %v288, %v703
      %v720 = vadd.f32 %v291, %v704
      %v721 = vadd.f32 %v294, %v705
      %v722 = vadd.f32 %v297, %v706
      %v723 = vadd.f32 %v300, %v707
      %v724 = vadd.f32 %v303, %v708
      %v725 = vxor.u32 %v717, 2147483648
      %v726 = vxor.u32 %v718, 2147483648
      %v727 = vxor.u32 %v719, 2147483648
      %v728 = vxor.u32 %v720, 2147483648
      %v729 = vxor.u32 %v721, 2147483648
      %v730 = vxor.u32 %v722, 2147483648
      %v731 = vxor.u32 %v723, 2147483648
      %v732 = vxor.u32 %v724, 2147483648
      %v733 = vmul.f32 %v725, 1.442695
      %v734 = vpow.pop %v733
      %v735 = vmul.f32 %v726, 1.442695
      %v736 = vpow.pop %v735
      %v737 = vmul.f32 %v727, 1.442695
      %v738 = vpow.pop %v737
      %v739 = vmul.f32 %v728, 1.442695
      %v740 = vpow.pop %v739
      %v741 = vmul.f32 %v729, 1.442695
      %v742 = vpow.pop %v741
      %v743 = vmul.f32 %v730, 1.442695
      %v744 = vpow.pop %v743
      %v745 = vmul.f32 %v731, 1.442695
      %v746 = vpow.pop %v745
      %v747 = vmul.f32 %v732, 1.442695
      %v748 = vpow.pop %v747
      %v749 = vadd.f32 %v734, 1.0
      %v750 = vadd.f32 %v736, 1.0
      %v751 = vadd.f32 %v738, 1.0
      %v752 = vadd.f32 %v740, 1.0
      %v753 = vadd.f32 %v742, 1.0
      %v754 = vadd.f32 %v744, 1.0
      %v755 = vadd.f32 %v746, 1.0
      %v756 = vadd.f32 %v748, 1.0
      %v757 = vrcp.pop %v749
      %v758 = vmul.f32 %v749, %v757
      %v759 = vsub.f32 1.0, %v758
      %v760 = vmul.f32 %v757, %v759
      %v761 = vadd.f32 %v757, %v760
      %vm762 = vweird.f32 %v749
      %vm763 = vweird.f32 %v757
      %vm764 = vmor %vm762, %vm763
      %v765 = vsel %vm764, %v757, %v761
      %v766 = vand.u32 2147483647, %v749
      %vm767 = vcmp.eq.f32.partialorder %v766, 8.507059e+37
      %v768 = vand.u32 %v749, 2147483648
      %v769 = vor.u32 1.1754944e-38, %v768
      %v770 = vsel %vm767, %v769, %v765
      %v771 = vmul.f32 1.0, %v770
      %v772 = vrcp.pop %v750
      %v773 = vmul.f32 %v750, %v772
      %v774 = vsub.f32 1.0, %v773
      %v775 = vmul.f32 %v772, %v774
      %v776 = vadd.f32 %v772, %v775
      %vm777 = vweird.f32 %v750
      %vm778 = vweird.f32 %v772
      %vm779 = vmor %vm777, %vm778
      %v780 = vsel %vm779, %v772, %v776
      %v781 = vand.u32 2147483647, %v750
      %vm782 = vcmp.eq.f32.partialorder %v781, 8.507059e+37
      %v783 = vand.u32 %v750, 2147483648
      %v784 = vor.u32 1.1754944e-38, %v783
      %v785 = vsel %vm782, %v784, %v780
      %v786 = vmul.f32 1.0, %v785
      %v787 = vrcp.pop %v751
      %v788 = vmul.f32 %v751, %v787
      %v789 = vsub.f32 1.0, %v788
      %v790 = vmul.f32 %v787, %v789
      %v791 = vadd.f32 %v787, %v790
      %vm792 = vweird.f32 %v751
      %vm793 = vweird.f32 %v787
      %vm794 = vmor %vm792, %vm793
      %v795 = vsel %vm794, %v787, %v791
      %v796 = vand.u32 2147483647, %v751
      %vm797 = vcmp.eq.f32.partialorder %v796, 8.507059e+37
      %v798 = vand.u32 %v751, 2147483648
      %v799 = vor.u32 1.1754944e-38, %v798
      %v800 = vsel %vm797, %v799, %v795
      %v801 = vmul.f32 1.0, %v800
      %v802 = vrcp.pop %v752
      %v803 = vmul.f32 %v752, %v802
      %v804 = vsub.f32 1.0, %v803
      %v805 = vmul.f32 %v802, %v804
      %v806 = vadd.f32 %v802, %v805
      %vm807 = vweird.f32 %v752
      %vm808 = vweird.f32 %v802
      %vm809 = vmor %vm807, %vm808
      %v810 = vsel %vm809, %v802, %v806
      %v811 = vand.u32 2147483647, %v752
      %vm812 = vcmp.eq.f32.partialorder %v811, 8.507059e+37
      %v813 = vand.u32 %v752, 2147483648
      %v814 = vor.u32 1.1754944e-38, %v813
      %v815 = vsel %vm812, %v814, %v810
      %v816 = vmul.f32 1.0, %v815
      %v817 = vrcp.pop %v753
      %v818 = vmul.f32 %v753, %v817
      %v819 = vsub.f32 1.0, %v818
      %v820 = vmul.f32 %v817, %v819
      %v821 = vadd.f32 %v817, %v820
      %vm822 = vweird.f32 %v753
      %vm823 = vweird.f32 %v817
      %vm824 = vmor %vm822, %vm823
      %v825 = vsel %vm824, %v817, %v821
      %v826 = vand.u32 2147483647, %v753
      %vm827 = vcmp.eq.f32.partialorder %v826, 8.507059e+37
      %v828 = vand.u32 %v753, 2147483648
      %v829 = vor.u32 1.1754944e-38, %v828
      %v830 = vsel %vm827, %v829, %v825
      %v831 = vmul.f32 1.0, %v830
      %v832 = vrcp.pop %v754
      %v833 = vmul.f32 %v754, %v832
      %v834 = vsub.f32 1.0, %v833
      %v835 = vmul.f32 %v832, %v834
      %v836 = vadd.f32 %v832, %v835
      %vm837 = vweird.f32 %v754
      %vm838 = vweird.f32 %v832
      %vm839 = vmor %vm837, %vm838
      %v840 = vsel %vm839, %v832, %v836
      %v841 = vand.u32 2147483647, %v754
      %vm842 = vcmp.eq.f32.partialorder %v841, 8.507059e+37
      %v843 = vand.u32 %v754, 2147483648
      %v844 = vor.u32 1.1754944e-38, %v843
      %v845 = vsel %vm842, %v844, %v840
      %v846 = vmul.f32 1.0, %v845
      %v847 = vrcp.pop %v755
      %v848 = vmul.f32 %v755, %v847
      %v849 = vsub.f32 1.0, %v848
      %v850 = vmul.f32 %v847, %v849
      %v851 = vadd.f32 %v847, %v850
      %vm852 = vweird.f32 %v755
      %vm853 = vweird.f32 %v847
      %vm854 = vmor %vm852, %vm853
      %v855 = vsel %vm854, %v847, %v851
      %v856 = vand.u32 2147483647, %v755
      %vm857 = vcmp.eq.f32.partialorder %v856, 8.507059e+37
      %v858 = vand.u32 %v755, 2147483648
      %v859 = vor.u32 1.1754944e-38, %v858
      %v860 = vsel %vm857, %v859, %v855
      %v861 = vmul.f32 1.0, %v860
      %v862 = vrcp.pop %v756
      %v863 = vmul.f32 %v756, %v862
      %v864 = vsub.f32 1.0, %v863
      %v865 = vmul.f32 %v862, %v864
      %v866 = vadd.f32 %v862, %v865
      %vm867 = vweird.f32 %v756
      %vm868 = vweird.f32 %v862
      %vm869 = vmor %vm867, %vm868
      %v870 = vsel %vm869, %v862, %v866
      %v871 = vand.u32 2147483647, %v756
      %vm872 = vcmp.eq.f32.partialorder %v871, 8.507059e+37
      %v873 = vand.u32 %v756, 2147483648
      %v874 = vor.u32 1.1754944e-38, %v873
      %v875 = vsel %vm872, %v874, %v870
      %v876 = vmul.f32 1.0, %v875
      %v877 = vtanh.pop %v717
      %v878 = vtanh.pop %v718
      %v879 = vtanh.pop %v719
      %v880 = vtanh.pop %v720
      %v881 = vtanh.pop %v721
      %v882 = vtanh.pop %v722
      %v883 = vtanh.pop %v723
      %v884 = vtanh.pop %v724
      %v893 = vrot.slane %v592, 7
      %v894 = vrot.slane %v593, 7
      %v895 = vrot.slane %v594, 7
      %v896 = vrot.slane %v595, 7
      %v897 = vrot.slane %v596, 7
      %v898 = vrot.slane %v597, 7
      %v899 = vrot.slane %v598, 7
      %v900 = vrot.slane %v599, 7
      %v909 = vmul.f32 %v771, %v893
      %v910 = vmul.f32 %v786, %v894
      %v911 = vmul.f32 %v801, %v895
      %v912 = vmul.f32 %v816, %v896
      %v913 = vmul.f32 %v831, %v897
      %v914 = vmul.f32 %v846, %v898
      %v915 = vmul.f32 %v861, %v899
      %v916 = vmul.f32 %v876, %v900
      %925 = vrot.lane.b32.xlu0 %v877, 112
      %v926 = vpop.permute.xlu0 %925
      %927 = vrot.lane.b32.xlu0 %v878, 112
      %v928 = vpop.permute.xlu0 %927
      %929 = vrot.lane.b32.xlu0 %v879, 112
      %v930 = vpop.permute.xlu0 %929
      %931 = vrot.lane.b32.xlu0 %v880, 112
      %v932 = vpop.permute.xlu0 %931
      %933 = vrot.lane.b32.xlu0 %v881, 112
      %v934 = vpop.permute.xlu0 %933
      %935 = vrot.lane.b32.xlu0 %v882, 112
      %v936 = vpop.permute.xlu0 %935
      %937 = vrot.lane.b32.xlu0 %v883, 112
      %v938 = vpop.permute.xlu0 %937
      %939 = vrot.lane.b32.xlu0 %v884, 112
      %v940 = vpop.permute.xlu0 %939
      %v949 = vmul.f32 %v771, %v926
      %v950 = vmul.f32 %v786, %v928
      %v951 = vmul.f32 %v801, %v930
      %v952 = vmul.f32 %v816, %v932
      %v953 = vmul.f32 %v831, %v934
      %v954 = vmul.f32 %v846, %v936
      %v955 = vmul.f32 %v861, %v938
      %v956 = vmul.f32 %v876, %v940
      %965 = vrot.lane.b32.xlu0 %v949, 8
      %v966 = vpop.permute.xlu0 %965
      %967 = vrot.lane.b32.xlu0 %v950, 8
      %v968 = vpop.permute.xlu0 %967
      %969 = vrot.lane.b32.xlu0 %v951, 8
      %v970 = vpop.permute.xlu0 %969
      %971 = vrot.lane.b32.xlu0 %v952, 8
      %v972 = vpop.permute.xlu0 %971
      %973 = vrot.lane.b32.xlu0 %v953, 8
      %v974 = vpop.permute.xlu0 %973
      %975 = vrot.lane.b32.xlu0 %v954, 8
      %v976 = vpop.permute.xlu0 %975
      %977 = vrot.lane.b32.xlu0 %v955, 8
      %v978 = vpop.permute.xlu0 %977
      %979 = vrot.lane.b32.xlu0 %v956, 8
      %v980 = vpop.permute.xlu0 %979
      %v989 = vadd.f32 %v909, %v966
      %v990 = vadd.f32 %v910, %v968
      %v991 = vadd.f32 %v911, %v970
      %v992 = vadd.f32 %v912, %v972
      %v993 = vadd.f32 %v913, %v974
      %v994 = vadd.f32 %v914, %v976
      %v995 = vadd.f32 %v915, %v978
      %v996 = vadd.f32 %v916, %v980
      %v997 = vtanh.pop %v989
      %v998 = vtanh.pop %v990
      %v999 = vtanh.pop %v991
      %v1000 = vtanh.pop %v992
      %v1001 = vtanh.pop %v993
      %v1002 = vtanh.pop %v994
      %v1003 = vtanh.pop %v995
      %v1004 = vtanh.pop %v996
      %1013 = vrot.lane.b32.xlu0 %v997, 16
      %v1014 = vpop.permute.xlu0 %1013
      %1015 = vrot.lane.b32.xlu0 %v998, 16
      %v1016 = vpop.permute.xlu0 %1015
      %1017 = vrot.lane.b32.xlu0 %v999, 16
      %v1018 = vpop.permute.xlu0 %1017
      %1019 = vrot.lane.b32.xlu0 %v1000, 16
      %v1020 = vpop.permute.xlu0 %1019
      %1021 = vrot.lane.b32.xlu0 %v1001, 16
      %v1022 = vpop.permute.xlu0 %1021
      %1023 = vrot.lane.b32.xlu0 %v1002, 16
      %v1024 = vpop.permute.xlu0 %1023
      %1025 = vrot.lane.b32.xlu0 %v1003, 16
      %v1026 = vpop.permute.xlu0 %1025
      %1027 = vrot.lane.b32.xlu0 %v1004, 16
      %v1028 = vpop.permute.xlu0 %1027
      %v1037 = vmul.f32 %v771, %v1014
      %v1038 = vmul.f32 %v786, %v1016
      %v1039 = vmul.f32 %v801, %v1018
      %v1040 = vmul.f32 %v816, %v1020
      %v1041 = vmul.f32 %v831, %v1022
      %v1042 = vmul.f32 %v846, %v1024
      %v1043 = vmul.f32 %v861, %v1026
      %v1044 = vmul.f32 %v876, %v1028
      %v1053 = vrot.slane %v1037, 1
      %v1054 = vsel %vm657, %v1038, %v1053
      %v1055 = vrot.slane %v1039, 7
      %v1056 = vsel %vm660, %v1055, %v1054
      %v1057 = vrot.slane %v1040, 6
      %v1058 = vsel %vm663, %v1057, %v1056
      %v1059 = vrot.slane %v1041, 5
      %v1060 = vsel %vm666, %v1059, %v1058
      %v1061 = vrot.slane %v1042, 4
      %v1062 = vsel %vm669, %v1061, %v1060
      %v1063 = vrot.slane %v1043, 3
      %v1064 = vsel %vm672, %v1063, %v1062
      %v1065 = vrot.slane %v1044, 2
      %v1066 = vsel %vm675, %v1065, %v1064
      %1067 = vrot.lane.b32.xlu0 %v1066, 104
      %v1068 = vpop.permute.xlu0 %1067
      %v1069 = vsel %vm239, %v1068, 0
      %1071 = vmatpush.msra.mxu0 0.0
      %1072 = vmatpush.msra.mxu0 0.0
      %1073 = vmatpush.msra.mxu0 0.0
      %1074 = vmatpush.msra.mxu0 0.0
      %1075 = vmatpush.msra.mxu0 0.0
      %1076 = vmatpush.msra.mxu0 0.0
      %1077 = vmatpush.msra.mxu0 0.0
      %1078 = vmatpush.msra.mxu0 0.0
      %1079 = vmatpush.msra.mxu0 0.0
      %1080 = vmatpush.msra.mxu0 0.0
      %1081 = vmatpush.msra.mxu0 0.0
      %1082 = vmatpush.msra.mxu0 0.0
      %1083 = vmatpush.msra.mxu0 0.0
      %1084 = vmatpush.msra.mxu0 0.0
      %1085 = vmatpush.msra.mxu0 0.0
      %1086 = vmatpush.msra.mxu0 %v226
      %1087 = vmatmul.f32.gmra.mxu0 %v1069
      %v1088 = vpop.f32.mrf.mxu0
      %v1089 = vadd.f32 0.0, %v1088
      %1090 = vdwg.mxu0
      %v1092 = vrot.slane %v1089, 6
      %v1093 = vrot.slane %v1089, 7
      %v1094 = vrot.slane %v1089, 1
      %v1095 = vrot.slane %v1089, 2
      %v1096 = vrot.slane %v1089, 3
      %v1097 = vrot.slane %v1089, 4
      %v1098 = vrot.slane %v1089, 5
      %v1107 = vadd.f32 %v282, %v1092
      %v1108 = vadd.f32 %v285, %v1093
      %v1109 = vadd.f32 %v288, %v1089
      %v1110 = vadd.f32 %v291, %v1094
      %v1111 = vadd.f32 %v294, %v1095
      %v1112 = vadd.f32 %v297, %v1096
      %v1113 = vadd.f32 %v300, %v1097
      %v1114 = vadd.f32 %v303, %v1098
      %v1115 = vxor.u32 %v1107, 2147483648
      %v1116 = vxor.u32 %v1108, 2147483648
      %v1117 = vxor.u32 %v1109, 2147483648
      %v1118 = vxor.u32 %v1110, 2147483648
      %v1119 = vxor.u32 %v1111, 2147483648
      %v1120 = vxor.u32 %v1112, 2147483648
      %v1121 = vxor.u32 %v1113, 2147483648
      %v1122 = vxor.u32 %v1114, 2147483648
      %v1123 = vmul.f32 %v1115, 1.442695
      %v1124 = vpow.pop %v1123
      %v1125 = vmul.f32 %v1116, 1.442695
      %v1126 = vpow.pop %v1125
      %v1127 = vmul.f32 %v1117, 1.442695
      %v1128 = vpow.pop %v1127
      %v1129 = vmul.f32 %v1118, 1.442695
      %v1130 = vpow.pop %v1129
      %v1131 = vmul.f32 %v1119, 1.442695
      %v1132 = vpow.pop %v1131
      %v1133 = vmul.f32 %v1120, 1.442695
      %v1134 = vpow.pop %v1133
      %v1135 = vmul.f32 %v1121, 1.442695
      %v1136 = vpow.pop %v1135
      %v1137 = vmul.f32 %v1122, 1.442695
      %v1138 = vpow.pop %v1137
      %v1139 = vadd.f32 %v1124, 1.0
      %v1140 = vadd.f32 %v1126, 1.0
      %v1141 = vadd.f32 %v1128, 1.0
      %v1142 = vadd.f32 %v1130, 1.0
      %v1143 = vadd.f32 %v1132, 1.0
      %v1144 = vadd.f32 %v1134, 1.0
      %v1145 = vadd.f32 %v1136, 1.0
      %v1146 = vadd.f32 %v1138, 1.0
      %v1147 = vrcp.pop %v1139
      %v1148 = vmul.f32 %v1139, %v1147
      %v1149 = vsub.f32 1.0, %v1148
      %v1150 = vmul.f32 %v1147, %v1149
      %v1151 = vadd.f32 %v1147, %v1150
      %vm1152 = vweird.f32 %v1139
      %vm1153 = vweird.f32 %v1147
      %vm1154 = vmor %vm1152, %vm1153
      %v1155 = vsel %vm1154, %v1147, %v1151
      %v1156 = vand.u32 2147483647, %v1139
      %vm1157 = vcmp.eq.f32.partialorder %v1156, 8.507059e+37
      %v1158 = vand.u32 %v1139, 2147483648
      %v1159 = vor.u32 1.1754944e-38, %v1158
      %v1160 = vsel %vm1157, %v1159, %v1155
      %v1161 = vmul.f32 1.0, %v1160
      %v1162 = vrcp.pop %v1140
      %v1163 = vmul.f32 %v1140, %v1162
      %v1164 = vsub.f32 1.0, %v1163
      %v1165 = vmul.f32 %v1162, %v1164
      %v1166 = vadd.f32 %v1162, %v1165
      %vm1167 = vweird.f32 %v1140
      %vm1168 = vweird.f32 %v1162
      %vm1169 = vmor %vm1167, %vm1168
      %v1170 = vsel %vm1169, %v1162, %v1166
      %v1171 = vand.u32 2147483647, %v1140
      %vm1172 = vcmp.eq.f32.partialorder %v1171, 8.507059e+37
      %v1173 = vand.u32 %v1140, 2147483648
      %v1174 = vor.u32 1.1754944e-38, %v1173
      %v1175 = vsel %vm1172, %v1174, %v1170
      %v1176 = vmul.f32 1.0, %v1175
      %v1177 = vrcp.pop %v1141
      %v1178 = vmul.f32 %v1141, %v1177
      %v1179 = vsub.f32 1.0, %v1178
      %v1180 = vmul.f32 %v1177, %v1179
      %v1181 = vadd.f32 %v1177, %v1180
      %vm1182 = vweird.f32 %v1141
      %vm1183 = vweird.f32 %v1177
      %vm1184 = vmor %vm1182, %vm1183
      %v1185 = vsel %vm1184, %v1177, %v1181
      %v1186 = vand.u32 2147483647, %v1141
      %vm1187 = vcmp.eq.f32.partialorder %v1186, 8.507059e+37
      %v1188 = vand.u32 %v1141, 2147483648
      %v1189 = vor.u32 1.1754944e-38, %v1188
      %v1190 = vsel %vm1187, %v1189, %v1185
      %v1191 = vmul.f32 1.0, %v1190
      %v1192 = vrcp.pop %v1142
      %v1193 = vmul.f32 %v1142, %v1192
      %v1194 = vsub.f32 1.0, %v1193
      %v1195 = vmul.f32 %v1192, %v1194
      %v1196 = vadd.f32 %v1192, %v1195
      %vm1197 = vweird.f32 %v1142
      %vm1198 = vweird.f32 %v1192
      %vm1199 = vmor %vm1197, %vm1198
      %v1200 = vsel %vm1199, %v1192, %v1196
      %v1201 = vand.u32 2147483647, %v1142
      %vm1202 = vcmp.eq.f32.partialorder %v1201, 8.507059e+37
      %v1203 = vand.u32 %v1142, 2147483648
      %v1204 = vor.u32 1.1754944e-38, %v1203
      %v1205 = vsel %vm1202, %v1204, %v1200
      %v1206 = vmul.f32 1.0, %v1205
      %v1207 = vrcp.pop %v1143
      %v1208 = vmul.f32 %v1143, %v1207
      %v1209 = vsub.f32 1.0, %v1208
      %v1210 = vmul.f32 %v1207, %v1209
      %v1211 = vadd.f32 %v1207, %v1210
      %vm1212 = vweird.f32 %v1143
      %vm1213 = vweird.f32 %v1207
      %vm1214 = vmor %vm1212, %vm1213
      %v1215 = vsel %vm1214, %v1207, %v1211
      %v1216 = vand.u32 2147483647, %v1143
      %vm1217 = vcmp.eq.f32.partialorder %v1216, 8.507059e+37
      %v1218 = vand.u32 %v1143, 2147483648
      %v1219 = vor.u32 1.1754944e-38, %v1218
      %v1220 = vsel %vm1217, %v1219, %v1215
      %v1221 = vmul.f32 1.0, %v1220
      %v1222 = vrcp.pop %v1144
      %v1223 = vmul.f32 %v1144, %v1222
      %v1224 = vsub.f32 1.0, %v1223
      %v1225 = vmul.f32 %v1222, %v1224
      %v1226 = vadd.f32 %v1222, %v1225
      %vm1227 = vweird.f32 %v1144
      %vm1228 = vweird.f32 %v1222
      %vm1229 = vmor %vm1227, %vm1228
      %v1230 = vsel %vm1229, %v1222, %v1226
      %v1231 = vand.u32 2147483647, %v1144
      %vm1232 = vcmp.eq.f32.partialorder %v1231, 8.507059e+37
      %v1233 = vand.u32 %v1144, 2147483648
      %v1234 = vor.u32 1.1754944e-38, %v1233
      %v1235 = vsel %vm1232, %v1234, %v1230
      %v1236 = vmul.f32 1.0, %v1235
      %v1237 = vrcp.pop %v1145
      %v1238 = vmul.f32 %v1145, %v1237
      %v1239 = vsub.f32 1.0, %v1238
      %v1240 = vmul.f32 %v1237, %v1239
      %v1241 = vadd.f32 %v1237, %v1240
      %vm1242 = vweird.f32 %v1145
      %vm1243 = vweird.f32 %v1237
      %vm1244 = vmor %vm1242, %vm1243
      %v1245 = vsel %vm1244, %v1237, %v1241
      %v1246 = vand.u32 2147483647, %v1145
      %vm1247 = vcmp.eq.f32.partialorder %v1246, 8.507059e+37
      %v1248 = vand.u32 %v1145, 2147483648
      %v1249 = vor.u32 1.1754944e-38, %v1248
      %v1250 = vsel %vm1247, %v1249, %v1245
      %v1251 = vmul.f32 1.0, %v1250
      %v1252 = vrcp.pop %v1146
      %v1253 = vmul.f32 %v1146, %v1252
      %v1254 = vsub.f32 1.0, %v1253
      %v1255 = vmul.f32 %v1252, %v1254
      %v1256 = vadd.f32 %v1252, %v1255
      %vm1257 = vweird.f32 %v1146
      %vm1258 = vweird.f32 %v1252
      %vm1259 = vmor %vm1257, %vm1258
      %v1260 = vsel %vm1259, %v1252, %v1256
      %v1261 = vand.u32 2147483647, %v1146
      %vm1262 = vcmp.eq.f32.partialorder %v1261, 8.507059e+37
      %v1263 = vand.u32 %v1146, 2147483648
      %v1264 = vor.u32 1.1754944e-38, %v1263
      %v1265 = vsel %vm1262, %v1264, %v1260
      %v1266 = vmul.f32 1.0, %v1265
      %v1267 = vtanh.pop %v1107
      %v1268 = vtanh.pop %v1108
      %v1269 = vtanh.pop %v1109
      %v1270 = vtanh.pop %v1110
      %v1271 = vtanh.pop %v1111
      %v1272 = vtanh.pop %v1112
      %v1273 = vtanh.pop %v1113
      %v1274 = vtanh.pop %v1114
      %v1283 = vrot.slane %v989, 7
      %v1284 = vrot.slane %v990, 7
      %v1285 = vrot.slane %v991, 7
      %v1286 = vrot.slane %v992, 7
      %v1287 = vrot.slane %v993, 7
      %v1288 = vrot.slane %v994, 7
      %v1289 = vrot.slane %v995, 7
      %v1290 = vrot.slane %v996, 7
      %v1299 = vmul.f32 %v1161, %v1283
      %v1300 = vmul.f32 %v1176, %v1284
      %v1301 = vmul.f32 %v1191, %v1285
      %v1302 = vmul.f32 %v1206, %v1286
      %v1303 = vmul.f32 %v1221, %v1287
      %v1304 = vmul.f32 %v1236, %v1288
      %v1305 = vmul.f32 %v1251, %v1289
      %v1306 = vmul.f32 %v1266, %v1290
      %1315 = vrot.lane.b32.xlu0 %v1267, 112
      %v1316 = vpop.permute.xlu0 %1315
      %1317 = vrot.lane.b32.xlu0 %v1268, 112
      %v1318 = vpop.permute.xlu0 %1317
      %1319 = vrot.lane.b32.xlu0 %v1269, 112
      %v1320 = vpop.permute.xlu0 %1319
      %1321 = vrot.lane.b32.xlu0 %v1270, 112
      %v1322 = vpop.permute.xlu0 %1321
      %1323 = vrot.lane.b32.xlu0 %v1271, 112
      %v1324 = vpop.permute.xlu0 %1323
      %1325 = vrot.lane.b32.xlu0 %v1272, 112
      %v1326 = vpop.permute.xlu0 %1325
      %1327 = vrot.lane.b32.xlu0 %v1273, 112
      %v1328 = vpop.permute.xlu0 %1327
      %1329 = vrot.lane.b32.xlu0 %v1274, 112
      %v1330 = vpop.permute.xlu0 %1329
      %v1339 = vmul.f32 %v1161, %v1316
      %v1340 = vmul.f32 %v1176, %v1318
      %v1341 = vmul.f32 %v1191, %v1320
      %v1342 = vmul.f32 %v1206, %v1322
      %v1343 = vmul.f32 %v1221, %v1324
      %v1344 = vmul.f32 %v1236, %v1326
      %v1345 = vmul.f32 %v1251, %v1328
      %v1346 = vmul.f32 %v1266, %v1330
      %1355 = vrot.lane.b32.xlu0 %v1339, 8
      %v1356 = vpop.permute.xlu0 %1355
      %1357 = vrot.lane.b32.xlu0 %v1340, 8
      %v1358 = vpop.permute.xlu0 %1357
      %1359 = vrot.lane.b32.xlu0 %v1341, 8
      %v1360 = vpop.permute.xlu0 %1359
      %1361 = vrot.lane.b32.xlu0 %v1342, 8
      %v1362 = vpop.permute.xlu0 %1361
      %1363 = vrot.lane.b32.xlu0 %v1343, 8
      %v1364 = vpop.permute.xlu0 %1363
      %1365 = vrot.lane.b32.xlu0 %v1344, 8
      %v1366 = vpop.permute.xlu0 %1365
      %1367 = vrot.lane.b32.xlu0 %v1345, 8
      %v1368 = vpop.permute.xlu0 %1367
      %1369 = vrot.lane.b32.xlu0 %v1346, 8
      %v1370 = vpop.permute.xlu0 %1369
      %v1379 = vadd.f32 %v1299, %v1356
      %v1380 = vadd.f32 %v1300, %v1358
      %v1381 = vadd.f32 %v1301, %v1360
      %v1382 = vadd.f32 %v1302, %v1362
      %v1383 = vadd.f32 %v1303, %v1364
      %v1384 = vadd.f32 %v1304, %v1366
      %v1385 = vadd.f32 %v1305, %v1368
      %v1386 = vadd.f32 %v1306, %v1370
      %v1387 = vtanh.pop %v1379
      %v1388 = vtanh.pop %v1380
      %v1389 = vtanh.pop %v1381
      %v1390 = vtanh.pop %v1382
      %v1391 = vtanh.pop %v1383
      %v1392 = vtanh.pop %v1384
      %v1393 = vtanh.pop %v1385
      %v1394 = vtanh.pop %v1386
      %1403 = vrot.lane.b32.xlu0 %v1387, 16
      %v1404 = vpop.permute.xlu0 %1403
      %1405 = vrot.lane.b32.xlu0 %v1388, 16
      %v1406 = vpop.permute.xlu0 %1405
      %1407 = vrot.lane.b32.xlu0 %v1389, 16
      %v1408 = vpop.permute.xlu0 %1407
      %1409 = vrot.lane.b32.xlu0 %v1390, 16
      %v1410 = vpop.permute.xlu0 %1409
      %1411 = vrot.lane.b32.xlu0 %v1391, 16
      %v1412 = vpop.permute.xlu0 %1411
      %1413 = vrot.lane.b32.xlu0 %v1392, 16
      %v1414 = vpop.permute.xlu0 %1413
      %1415 = vrot.lane.b32.xlu0 %v1393, 16
      %v1416 = vpop.permute.xlu0 %1415
      %1417 = vrot.lane.b32.xlu0 %v1394, 16
      %v1418 = vpop.permute.xlu0 %1417
      %v1427 = vmul.f32 %v1161, %v1404
      %v1428 = vmul.f32 %v1176, %v1406
      %v1429 = vmul.f32 %v1191, %v1408
      %v1430 = vmul.f32 %v1206, %v1410
      %v1431 = vmul.f32 %v1221, %v1412
      %v1432 = vmul.f32 %v1236, %v1414
      %v1433 = vmul.f32 %v1251, %v1416
      %v1434 = vmul.f32 %v1266, %v1418
      %v1443 = vrot.slane %v1427, 2
      %v1444 = vrot.slane %v1428, 1
      %v1445 = vsel %vm657, %v1444, %v1443
      %v1446 = vsel %vm660, %v1429, %v1445
      %v1447 = vrot.slane %v1430, 7
      %v1448 = vsel %vm663, %v1447, %v1446
      %v1449 = vrot.slane %v1431, 6
      %v1450 = vsel %vm666, %v1449, %v1448
      %v1451 = vrot.slane %v1432, 5
      %v1452 = vsel %vm669, %v1451, %v1450
      %v1453 = vrot.slane %v1433, 4
      %v1454 = vsel %vm672, %v1453, %v1452
      %v1455 = vrot.slane %v1434, 3
      %v1456 = vsel %vm675, %v1455, %v1454
      %1457 = vrot.lane.b32.xlu0 %v1456, 104
      %v1458 = vpop.permute.xlu0 %1457
      %v1459 = vsel %vm239, %v1458, 0
      %1461 = vmatpush.msra.mxu0 0.0
      %1462 = vmatpush.msra.mxu0 0.0
      %1463 = vmatpush.msra.mxu0 0.0
      %1464 = vmatpush.msra.mxu0 0.0
      %1465 = vmatpush.msra.mxu0 0.0
      %1466 = vmatpush.msra.mxu0 0.0
      %1467 = vmatpush.msra.mxu0 0.0
      %1468 = vmatpush.msra.mxu0 0.0
      %1469 = vmatpush.msra.mxu0 0.0
      %1470 = vmatpush.msra.mxu0 0.0
      %1471 = vmatpush.msra.mxu0 0.0
      %1472 = vmatpush.msra.mxu0 0.0
      %1473 = vmatpush.msra.mxu0 0.0
      %1474 = vmatpush.msra.mxu0 0.0
      %1475 = vmatpush.msra.mxu0 0.0
      %1476 = vmatpush.msra.mxu0 %v226
      %1477 = vmatmul.f32.gmra.mxu0 %v1459
      %v1478 = vpop.f32.mrf.mxu0
      %v1479 = vadd.f32 0.0, %v1478
      %1480 = vdwg.mxu0
      %v1482 = vrot.slane %v1479, 5
      %v1483 = vrot.slane %v1479, 6
      %v1484 = vrot.slane %v1479, 7
      %v1485 = vrot.slane %v1479, 1
      %v1486 = vrot.slane %v1479, 2
      %v1487 = vrot.slane %v1479, 3
      %v1488 = vrot.slane %v1479, 4
      %v1497 = vadd.f32 %v282, %v1482
      %v1498 = vadd.f32 %v285, %v1483
      %v1499 = vadd.f32 %v288, %v1484
      %v1500 = vadd.f32 %v291, %v1479
      %v1501 = vadd.f32 %v294, %v1485
      %v1502 = vadd.f32 %v297, %v1486
      %v1503 = vadd.f32 %v300, %v1487
      %v1504 = vadd.f32 %v303, %v1488
      %v1505 = vxor.u32 %v1497, 2147483648
      %v1506 = vxor.u32 %v1498, 2147483648
      %v1507 = vxor.u32 %v1499, 2147483648
      %v1508 = vxor.u32 %v1500, 2147483648
      %v1509 = vxor.u32 %v1501, 2147483648
      %v1510 = vxor.u32 %v1502, 2147483648
      %v1511 = vxor.u32 %v1503, 2147483648
      %v1512 = vxor.u32 %v1504, 2147483648
      %v1513 = vmul.f32 %v1505, 1.442695
      %v1514 = vpow.pop %v1513
      %v1515 = vmul.f32 %v1506, 1.442695
      %v1516 = vpow.pop %v1515
      %v1517 = vmul.f32 %v1507, 1.442695
      %v1518 = vpow.pop %v1517
      %v1519 = vmul.f32 %v1508, 1.442695
      %v1520 = vpow.pop %v1519
      %v1521 = vmul.f32 %v1509, 1.442695
      %v1522 = vpow.pop %v1521
      %v1523 = vmul.f32 %v1510, 1.442695
      %v1524 = vpow.pop %v1523
      %v1525 = vmul.f32 %v1511, 1.442695
      %v1526 = vpow.pop %v1525
      %v1527 = vmul.f32 %v1512, 1.442695
      %v1528 = vpow.pop %v1527
      %v1529 = vadd.f32 %v1514, 1.0
      %v1530 = vadd.f32 %v1516, 1.0
      %v1531 = vadd.f32 %v1518, 1.0
      %v1532 = vadd.f32 %v1520, 1.0
      %v1533 = vadd.f32 %v1522, 1.0
      %v1534 = vadd.f32 %v1524, 1.0
      %v1535 = vadd.f32 %v1526, 1.0
      %v1536 = vadd.f32 %v1528, 1.0
      %v1537 = vrcp.pop %v1529
      %v1538 = vmul.f32 %v1529, %v1537
      %v1539 = vsub.f32 1.0, %v1538
      %v1540 = vmul.f32 %v1537, %v1539
      %v1541 = vadd.f32 %v1537, %v1540
      %vm1542 = vweird.f32 %v1529
      %vm1543 = vweird.f32 %v1537
      %vm1544 = vmor %vm1542, %vm1543
      %v1545 = vsel %vm1544, %v1537, %v1541
      %v1546 = vand.u32 2147483647, %v1529
      %vm1547 = vcmp.eq.f32.partialorder %v1546, 8.507059e+37
      %v1548 = vand.u32 %v1529, 2147483648
      %v1549 = vor.u32 1.1754944e-38, %v1548
      %v1550 = vsel %vm1547, %v1549, %v1545
      %v1551 = vmul.f32 1.0, %v1550
      %v1552 = vrcp.pop %v1530
      %v1553 = vmul.f32 %v1530, %v1552
      %v1554 = vsub.f32 1.0, %v1553
      %v1555 = vmul.f32 %v1552, %v1554
      %v1556 = vadd.f32 %v1552, %v1555
      %vm1557 = vweird.f32 %v1530
      %vm1558 = vweird.f32 %v1552
      %vm1559 = vmor %vm1557, %vm1558
      %v1560 = vsel %vm1559, %v1552, %v1556
      %v1561 = vand.u32 2147483647, %v1530
      %vm1562 = vcmp.eq.f32.partialorder %v1561, 8.507059e+37
      %v1563 = vand.u32 %v1530, 2147483648
      %v1564 = vor.u32 1.1754944e-38, %v1563
      %v1565 = vsel %vm1562, %v1564, %v1560
      %v1566 = vmul.f32 1.0, %v1565
      %v1567 = vrcp.pop %v1531
      %v1568 = vmul.f32 %v1531, %v1567
      %v1569 = vsub.f32 1.0, %v1568
      %v1570 = vmul.f32 %v1567, %v1569
      %v1571 = vadd.f32 %v1567, %v1570
      %vm1572 = vweird.f32 %v1531
      %vm1573 = vweird.f32 %v1567
      %vm1574 = vmor %vm1572, %vm1573
      %v1575 = vsel %vm1574, %v1567, %v1571
      %v1576 = vand.u32 2147483647, %v1531
      %vm1577 = vcmp.eq.f32.partialorder %v1576, 8.507059e+37
      %v1578 = vand.u32 %v1531, 2147483648
      %v1579 = vor.u32 1.1754944e-38, %v1578
      %v1580 = vsel %vm1577, %v1579, %v1575
      %v1581 = vmul.f32 1.0, %v1580
      %v1582 = vrcp.pop %v1532
      %v1583 = vmul.f32 %v1532, %v1582
      %v1584 = vsub.f32 1.0, %v1583
      %v1585 = vmul.f32 %v1582, %v1584
      %v1586 = vadd.f32 %v1582, %v1585
      %vm1587 = vweird.f32 %v1532
      %vm1588 = vweird.f32 %v1582
      %vm1589 = vmor %vm1587, %vm1588
      %v1590 = vsel %vm1589, %v1582, %v1586
      %v1591 = vand.u32 2147483647, %v1532
      %vm1592 = vcmp.eq.f32.partialorder %v1591, 8.507059e+37
      %v1593 = vand.u32 %v1532, 2147483648
      %v1594 = vor.u32 1.1754944e-38, %v1593
      %v1595 = vsel %vm1592, %v1594, %v1590
      %v1596 = vmul.f32 1.0, %v1595
      %v1597 = vrcp.pop %v1533
      %v1598 = vmul.f32 %v1533, %v1597
      %v1599 = vsub.f32 1.0, %v1598
      %v1600 = vmul.f32 %v1597, %v1599
      %v1601 = vadd.f32 %v1597, %v1600
      %vm1602 = vweird.f32 %v1533
      %vm1603 = vweird.f32 %v1597
      %vm1604 = vmor %vm1602, %vm1603
      %v1605 = vsel %vm1604, %v1597, %v1601
      %v1606 = vand.u32 2147483647, %v1533
      %vm1607 = vcmp.eq.f32.partialorder %v1606, 8.507059e+37
      %v1608 = vand.u32 %v1533, 2147483648
      %v1609 = vor.u32 1.1754944e-38, %v1608
      %v1610 = vsel %vm1607, %v1609, %v1605
      %v1611 = vmul.f32 1.0, %v1610
      %v1612 = vrcp.pop %v1534
      %v1613 = vmul.f32 %v1534, %v1612
      %v1614 = vsub.f32 1.0, %v1613
      %v1615 = vmul.f32 %v1612, %v1614
      %v1616 = vadd.f32 %v1612, %v1615
      %vm1617 = vweird.f32 %v1534
      %vm1618 = vweird.f32 %v1612
      %vm1619 = vmor %vm1617, %vm1618
      %v1620 = vsel %vm1619, %v1612, %v1616
      %v1621 = vand.u32 2147483647, %v1534
      %vm1622 = vcmp.eq.f32.partialorder %v1621, 8.507059e+37
      %v1623 = vand.u32 %v1534, 2147483648
      %v1624 = vor.u32 1.1754944e-38, %v1623
      %v1625 = vsel %vm1622, %v1624, %v1620
      %v1626 = vmul.f32 1.0, %v1625
      %v1627 = vrcp.pop %v1535
      %v1628 = vmul.f32 %v1535, %v1627
      %v1629 = vsub.f32 1.0, %v1628
      %v1630 = vmul.f32 %v1627, %v1629
      %v1631 = vadd.f32 %v1627, %v1630
      %vm1632 = vweird.f32 %v1535
      %vm1633 = vweird.f32 %v1627
      %vm1634 = vmor %vm1632, %vm1633
      %v1635 = vsel %vm1634, %v1627, %v1631
      %v1636 = vand.u32 2147483647, %v1535
      %vm1637 = vcmp.eq.f32.partialorder %v1636, 8.507059e+37
      %v1638 = vand.u32 %v1535, 2147483648
      %v1639 = vor.u32 1.1754944e-38, %v1638
      %v1640 = vsel %vm1637, %v1639, %v1635
      %v1641 = vmul.f32 1.0, %v1640
      %v1642 = vrcp.pop %v1536
      %v1643 = vmul.f32 %v1536, %v1642
      %v1644 = vsub.f32 1.0, %v1643
      %v1645 = vmul.f32 %v1642, %v1644
      %v1646 = vadd.f32 %v1642, %v1645
      %vm1647 = vweird.f32 %v1536
      %vm1648 = vweird.f32 %v1642
      %vm1649 = vmor %vm1647, %vm1648
      %v1650 = vsel %vm1649, %v1642, %v1646
      %v1651 = vand.u32 2147483647, %v1536
      %vm1652 = vcmp.eq.f32.partialorder %v1651, 8.507059e+37
      %v1653 = vand.u32 %v1536, 2147483648
      %v1654 = vor.u32 1.1754944e-38, %v1653
      %v1655 = vsel %vm1652, %v1654, %v1650
      %v1656 = vmul.f32 1.0, %v1655
      %v1657 = vtanh.pop %v1497
      %v1658 = vtanh.pop %v1498
      %v1659 = vtanh.pop %v1499
      %v1660 = vtanh.pop %v1500
      %v1661 = vtanh.pop %v1501
      %v1662 = vtanh.pop %v1502
      %v1663 = vtanh.pop %v1503
      %v1664 = vtanh.pop %v1504
      %v1673 = vrot.slane %v1379, 7
      %v1674 = vrot.slane %v1380, 7
      %v1675 = vrot.slane %v1381, 7
      %v1676 = vrot.slane %v1382, 7
      %v1677 = vrot.slane %v1383, 7
      %v1678 = vrot.slane %v1384, 7
      %v1679 = vrot.slane %v1385, 7
      %v1680 = vrot.slane %v1386, 7
      %v1689 = vmul.f32 %v1551, %v1673
      %v1690 = vmul.f32 %v1566, %v1674
      %v1691 = vmul.f32 %v1581, %v1675
      %v1692 = vmul.f32 %v1596, %v1676
      %v1693 = vmul.f32 %v1611, %v1677
      %v1694 = vmul.f32 %v1626, %v1678
      %v1695 = vmul.f32 %v1641, %v1679
      %v1696 = vmul.f32 %v1656, %v1680
      %1705 = vrot.lane.b32.xlu0 %v1657, 112
      %v1706 = vpop.permute.xlu0 %1705
      %1707 = vrot.lane.b32.xlu0 %v1658, 112
      %v1708 = vpop.permute.xlu0 %1707
      %1709 = vrot.lane.b32.xlu0 %v1659, 112
      %v1710 = vpop.permute.xlu0 %1709
      %1711 = vrot.lane.b32.xlu0 %v1660, 112
      %v1712 = vpop.permute.xlu0 %1711
      %1713 = vrot.lane.b32.xlu0 %v1661, 112
      %v1714 = vpop.permute.xlu0 %1713
      %1715 = vrot.lane.b32.xlu0 %v1662, 112
      %v1716 = vpop.permute.xlu0 %1715
      %1717 = vrot.lane.b32.xlu0 %v1663, 112
      %v1718 = vpop.permute.xlu0 %1717
      %1719 = vrot.lane.b32.xlu0 %v1664, 112
      %v1720 = vpop.permute.xlu0 %1719
      %v1729 = vmul.f32 %v1551, %v1706
      %v1730 = vmul.f32 %v1566, %v1708
      %v1731 = vmul.f32 %v1581, %v1710
      %v1732 = vmul.f32 %v1596, %v1712
      %v1733 = vmul.f32 %v1611, %v1714
      %v1734 = vmul.f32 %v1626, %v1716
      %v1735 = vmul.f32 %v1641, %v1718
      %v1736 = vmul.f32 %v1656, %v1720
      %1745 = vrot.lane.b32.xlu0 %v1729, 8
      %v1746 = vpop.permute.xlu0 %1745
      %1747 = vrot.lane.b32.xlu0 %v1730, 8
      %v1748 = vpop.permute.xlu0 %1747
      %1749 = vrot.lane.b32.xlu0 %v1731, 8
      %v1750 = vpop.permute.xlu0 %1749
      %1751 = vrot.lane.b32.xlu0 %v1732, 8
      %v1752 = vpop.permute.xlu0 %1751
      %1753 = vrot.lane.b32.xlu0 %v1733, 8
      %v1754 = vpop.permute.xlu0 %1753
      %1755 = vrot.lane.b32.xlu0 %v1734, 8
      %v1756 = vpop.permute.xlu0 %1755
      %1757 = vrot.lane.b32.xlu0 %v1735, 8
      %v1758 = vpop.permute.xlu0 %1757
      %1759 = vrot.lane.b32.xlu0 %v1736, 8
      %v1760 = vpop.permute.xlu0 %1759
      %v1769 = vadd.f32 %v1689, %v1746
      %v1770 = vadd.f32 %v1690, %v1748
      %v1771 = vadd.f32 %v1691, %v1750
      %v1772 = vadd.f32 %v1692, %v1752
      %v1773 = vadd.f32 %v1693, %v1754
      %v1774 = vadd.f32 %v1694, %v1756
      %v1775 = vadd.f32 %v1695, %v1758
      %v1776 = vadd.f32 %v1696, %v1760
      %v1777 = vtanh.pop %v1769
      %v1778 = vtanh.pop %v1770
      %v1779 = vtanh.pop %v1771
      %v1780 = vtanh.pop %v1772
      %v1781 = vtanh.pop %v1773
      %v1782 = vtanh.pop %v1774
      %v1783 = vtanh.pop %v1775
      %v1784 = vtanh.pop %v1776
      %1793 = vrot.lane.b32.xlu0 %v1777, 16
      %v1794 = vpop.permute.xlu0 %1793
      %1795 = vrot.lane.b32.xlu0 %v1778, 16
      %v1796 = vpop.permute.xlu0 %1795
      %1797 = vrot.lane.b32.xlu0 %v1779, 16
      %v1798 = vpop.permute.xlu0 %1797
      %1799 = vrot.lane.b32.xlu0 %v1780, 16
      %v1800 = vpop.permute.xlu0 %1799
      %1801 = vrot.lane.b32.xlu0 %v1781, 16
      %v1802 = vpop.permute.xlu0 %1801
      %1803 = vrot.lane.b32.xlu0 %v1782, 16
      %v1804 = vpop.permute.xlu0 %1803
      %1805 = vrot.lane.b32.xlu0 %v1783, 16
      %v1806 = vpop.permute.xlu0 %1805
      %1807 = vrot.lane.b32.xlu0 %v1784, 16
      %v1808 = vpop.permute.xlu0 %1807
      %v1817 = vmul.f32 %v1551, %v1794
      %v1818 = vmul.f32 %v1566, %v1796
      %v1819 = vmul.f32 %v1581, %v1798
      %v1820 = vmul.f32 %v1596, %v1800
      %v1821 = vmul.f32 %v1611, %v1802
      %v1822 = vmul.f32 %v1626, %v1804
      %v1823 = vmul.f32 %v1641, %v1806
      %v1824 = vmul.f32 %v1656, %v1808
      %v1833 = vrot.slane %v1817, 3
      %v1834 = vrot.slane %v1818, 2
      %v1835 = vsel %vm657, %v1834, %v1833
      %v1836 = vrot.slane %v1819, 1
      %v1837 = vsel %vm660, %v1836, %v1835
      %v1838 = vsel %vm663, %v1820, %v1837
      %v1839 = vrot.slane %v1821, 7
      %v1840 = vsel %vm666, %v1839, %v1838
      %v1841 = vrot.slane %v1822, 6
      %v1842 = vsel %vm669, %v1841, %v1840
      %v1843 = vrot.slane %v1823, 5
      %v1844 = vsel %vm672, %v1843, %v1842
      %v1845 = vrot.slane %v1824, 4
      %v1846 = vsel %vm675, %v1845, %v1844
      %1847 = vrot.lane.b32.xlu0 %v1846, 104
      %v1848 = vpop.permute.xlu0 %1847
      %v1849 = vsel %vm239, %v1848, 0
      %1851 = vmatpush.msra.mxu0 0.0
      %1852 = vmatpush.msra.mxu0 0.0
      %1853 = vmatpush.msra.mxu0 0.0
      %1854 = vmatpush.msra.mxu0 0.0
      %1855 = vmatpush.msra.mxu0 0.0
      %1856 = vmatpush.msra.mxu0 0.0
      %1857 = vmatpush.msra.mxu0 0.0
      %1858 = vmatpush.msra.mxu0 0.0
      %1859 = vmatpush.msra.mxu0 0.0
      %1860 = vmatpush.msra.mxu0 0.0
      %1861 = vmatpush.msra.mxu0 0.0
      %1862 = vmatpush.msra.mxu0 0.0
      %1863 = vmatpush.msra.mxu0 0.0
      %1864 = vmatpush.msra.mxu0 0.0
      %1865 = vmatpush.msra.mxu0 0.0
      %1866 = vmatpush.msra.mxu0 %v226
      %1867 = vmatmul.f32.gmra.mxu0 %v1849
      %v1868 = vpop.f32.mrf.mxu0
      %v1869 = vadd.f32 0.0, %v1868
      %1870 = vdwg.mxu0
      %v1872 = vrot.slane %v1869, 4
      %v1873 = vrot.slane %v1869, 5
      %v1874 = vrot.slane %v1869, 6
      %v1875 = vrot.slane %v1869, 7
      %v1876 = vrot.slane %v1869, 1
      %v1877 = vrot.slane %v1869, 2
      %v1878 = vrot.slane %v1869, 3
      %v1887 = vadd.f32 %v282, %v1872
      %v1888 = vadd.f32 %v285, %v1873
      %v1889 = vadd.f32 %v288, %v1874
      %v1890 = vadd.f32 %v291, %v1875
      %v1891 = vadd.f32 %v294, %v1869
      %v1892 = vadd.f32 %v297, %v1876
      %v1893 = vadd.f32 %v300, %v1877
      %v1894 = vadd.f32 %v303, %v1878
      %v1895 = vxor.u32 %v1887, 2147483648
      %v1896 = vxor.u32 %v1888, 2147483648
      %v1897 = vxor.u32 %v1889, 2147483648
      %v1898 = vxor.u32 %v1890, 2147483648
      %v1899 = vxor.u32 %v1891, 2147483648
      %v1900 = vxor.u32 %v1892, 2147483648
      %v1901 = vxor.u32 %v1893, 2147483648
      %v1902 = vxor.u32 %v1894, 2147483648
      %v1903 = vmul.f32 %v1895, 1.442695
      %v1904 = vpow.pop %v1903
      %v1905 = vmul.f32 %v1896, 1.442695
      %v1906 = vpow.pop %v1905
      %v1907 = vmul.f32 %v1897, 1.442695
      %v1908 = vpow.pop %v1907
      %v1909 = vmul.f32 %v1898, 1.442695
      %v1910 = vpow.pop %v1909
      %v1911 = vmul.f32 %v1899, 1.442695
      %v1912 = vpow.pop %v1911
      %v1913 = vmul.f32 %v1900, 1.442695
      %v1914 = vpow.pop %v1913
      %v1915 = vmul.f32 %v1901, 1.442695
      %v1916 = vpow.pop %v1915
      %v1917 = vmul.f32 %v1902, 1.442695
      %v1918 = vpow.pop %v1917
      %v1919 = vadd.f32 %v1904, 1.0
      %v1920 = vadd.f32 %v1906, 1.0
      %v1921 = vadd.f32 %v1908, 1.0
      %v1922 = vadd.f32 %v1910, 1.0
      %v1923 = vadd.f32 %v1912, 1.0
      %v1924 = vadd.f32 %v1914, 1.0
      %v1925 = vadd.f32 %v1916, 1.0
      %v1926 = vadd.f32 %v1918, 1.0
      %v1927 = vrcp.pop %v1919
      %v1928 = vmul.f32 %v1919, %v1927
      %v1929 = vsub.f32 1.0, %v1928
      %v1930 = vmul.f32 %v1927, %v1929
      %v1931 = vadd.f32 %v1927, %v1930
      %vm1932 = vweird.f32 %v1919
      %vm1933 = vweird.f32 %v1927
      %vm1934 = vmor %vm1932, %vm1933
      %v1935 = vsel %vm1934, %v1927, %v1931
      %v1936 = vand.u32 2147483647, %v1919
      %vm1937 = vcmp.eq.f32.partialorder %v1936, 8.507059e+37
      %v1938 = vand.u32 %v1919, 2147483648
      %v1939 = vor.u32 1.1754944e-38, %v1938
      %v1940 = vsel %vm1937, %v1939, %v1935
      %v1941 = vmul.f32 1.0, %v1940
      %v1942 = vrcp.pop %v1920
      %v1943 = vmul.f32 %v1920, %v1942
      %v1944 = vsub.f32 1.0, %v1943
      %v1945 = vmul.f32 %v1942, %v1944
      %v1946 = vadd.f32 %v1942, %v1945
      %vm1947 = vweird.f32 %v1920
      %vm1948 = vweird.f32 %v1942
      %vm1949 = vmor %vm1947, %vm1948
      %v1950 = vsel %vm1949, %v1942, %v1946
      %v1951 = vand.u32 2147483647, %v1920
      %vm1952 = vcmp.eq.f32.partialorder %v1951, 8.507059e+37
      %v1953 = vand.u32 %v1920, 2147483648
      %v1954 = vor.u32 1.1754944e-38, %v1953
      %v1955 = vsel %vm1952, %v1954, %v1950
      %v1956 = vmul.f32 1.0, %v1955
      %v1957 = vrcp.pop %v1921
      %v1958 = vmul.f32 %v1921, %v1957
      %v1959 = vsub.f32 1.0, %v1958
      %v1960 = vmul.f32 %v1957, %v1959
      %v1961 = vadd.f32 %v1957, %v1960
      %vm1962 = vweird.f32 %v1921
      %vm1963 = vweird.f32 %v1957
      %vm1964 = vmor %vm1962, %vm1963
      %v1965 = vsel %vm1964, %v1957, %v1961
      %v1966 = vand.u32 2147483647, %v1921
      %vm1967 = vcmp.eq.f32.partialorder %v1966, 8.507059e+37
      %v1968 = vand.u32 %v1921, 2147483648
      %v1969 = vor.u32 1.1754944e-38, %v1968
      %v1970 = vsel %vm1967, %v1969, %v1965
      %v1971 = vmul.f32 1.0, %v1970
      %v1972 = vrcp.pop %v1922
      %v1973 = vmul.f32 %v1922, %v1972
      %v1974 = vsub.f32 1.0, %v1973
      %v1975 = vmul.f32 %v1972, %v1974
      %v1976 = vadd.f32 %v1972, %v1975
      %vm1977 = vweird.f32 %v1922
      %vm1978 = vweird.f32 %v1972
      %vm1979 = vmor %vm1977, %vm1978
      %v1980 = vsel %vm1979, %v1972, %v1976
      %v1981 = vand.u32 2147483647, %v1922
      %vm1982 = vcmp.eq.f32.partialorder %v1981, 8.507059e+37
      %v1983 = vand.u32 %v1922, 2147483648
      %v1984 = vor.u32 1.1754944e-38, %v1983
      %v1985 = vsel %vm1982, %v1984, %v1980
      %v1986 = vmul.f32 1.0, %v1985
      %v1987 = vrcp.pop %v1923
      %v1988 = vmul.f32 %v1923, %v1987
      %v1989 = vsub.f32 1.0, %v1988
      %v1990 = vmul.f32 %v1987, %v1989
      %v1991 = vadd.f32 %v1987, %v1990
      %vm1992 = vweird.f32 %v1923
      %vm1993 = vweird.f32 %v1987
      %vm1994 = vmor %vm1992, %vm1993
      %v1995 = vsel %vm1994, %v1987, %v1991
      %v1996 = vand.u32 2147483647, %v1923
      %vm1997 = vcmp.eq.f32.partialorder %v1996, 8.507059e+37
      %v1998 = vand.u32 %v1923, 2147483648
      %v1999 = vor.u32 1.1754944e-38, %v1998
      %v2000 = vsel %vm1997, %v1999, %v1995
      %v2001 = vmul.f32 1.0, %v2000
      %v2002 = vrcp.pop %v1924
      %v2003 = vmul.f32 %v1924, %v2002
      %v2004 = vsub.f32 1.0, %v2003
      %v2005 = vmul.f32 %v2002, %v2004
      %v2006 = vadd.f32 %v2002, %v2005
      %vm2007 = vweird.f32 %v1924
      %vm2008 = vweird.f32 %v2002
      %vm2009 = vmor %vm2007, %vm2008
      %v2010 = vsel %vm2009, %v2002, %v2006
      %v2011 = vand.u32 2147483647, %v1924
      %vm2012 = vcmp.eq.f32.partialorder %v2011, 8.507059e+37
      %v2013 = vand.u32 %v1924, 2147483648
      %v2014 = vor.u32 1.1754944e-38, %v2013
      %v2015 = vsel %vm2012, %v2014, %v2010
      %v2016 = vmul.f32 1.0, %v2015
      %v2017 = vrcp.pop %v1925
      %v2018 = vmul.f32 %v1925, %v2017
      %v2019 = vsub.f32 1.0, %v2018
      %v2020 = vmul.f32 %v2017, %v2019
      %v2021 = vadd.f32 %v2017, %v2020
      %vm2022 = vweird.f32 %v1925
      %vm2023 = vweird.f32 %v2017
      %vm2024 = vmor %vm2022, %vm2023
      %v2025 = vsel %vm2024, %v2017, %v2021
      %v2026 = vand.u32 2147483647, %v1925
      %vm2027 = vcmp.eq.f32.partialorder %v2026, 8.507059e+37
      %v2028 = vand.u32 %v1925, 2147483648
      %v2029 = vor.u32 1.1754944e-38, %v2028
      %v2030 = vsel %vm2027, %v2029, %v2025
      %v2031 = vmul.f32 1.0, %v2030
      %v2032 = vrcp.pop %v1926
      %v2033 = vmul.f32 %v1926, %v2032
      %v2034 = vsub.f32 1.0, %v2033
      %v2035 = vmul.f32 %v2032, %v2034
      %v2036 = vadd.f32 %v2032, %v2035
      %vm2037 = vweird.f32 %v1926
      %vm2038 = vweird.f32 %v2032
      %vm2039 = vmor %vm2037, %vm2038
      %v2040 = vsel %vm2039, %v2032, %v2036
      %v2041 = vand.u32 2147483647, %v1926
      %vm2042 = vcmp.eq.f32.partialorder %v2041, 8.507059e+37
      %v2043 = vand.u32 %v1926, 2147483648
      %v2044 = vor.u32 1.1754944e-38, %v2043
      %v2045 = vsel %vm2042, %v2044, %v2040
      %v2046 = vmul.f32 1.0, %v2045
      %v2047 = vtanh.pop %v1887
      %v2048 = vtanh.pop %v1888
      %v2049 = vtanh.pop %v1889
      %v2050 = vtanh.pop %v1890
      %v2051 = vtanh.pop %v1891
      %v2052 = vtanh.pop %v1892
      %v2053 = vtanh.pop %v1893
      %v2054 = vtanh.pop %v1894
      %v2063 = vrot.slane %v1769, 7
      %v2064 = vrot.slane %v1770, 7
      %v2065 = vrot.slane %v1771, 7
      %v2066 = vrot.slane %v1772, 7
      %v2067 = vrot.slane %v1773, 7
      %v2068 = vrot.slane %v1774, 7
      %v2069 = vrot.slane %v1775, 7
      %v2070 = vrot.slane %v1776, 7
      %v2079 = vmul.f32 %v1941, %v2063
      %v2080 = vmul.f32 %v1956, %v2064
      %v2081 = vmul.f32 %v1971, %v2065
      %v2082 = vmul.f32 %v1986, %v2066
      %v2083 = vmul.f32 %v2001, %v2067
      %v2084 = vmul.f32 %v2016, %v2068
      %v2085 = vmul.f32 %v2031, %v2069
      %v2086 = vmul.f32 %v2046, %v2070
      %2095 = vrot.lane.b32.xlu0 %v2047, 112
      %v2096 = vpop.permute.xlu0 %2095
      %2097 = vrot.lane.b32.xlu0 %v2048, 112
      %v2098 = vpop.permute.xlu0 %2097
      %2099 = vrot.lane.b32.xlu0 %v2049, 112
      %v2100 = vpop.permute.xlu0 %2099
      %2101 = vrot.lane.b32.xlu0 %v2050, 112
      %v2102 = vpop.permute.xlu0 %2101
      %2103 = vrot.lane.b32.xlu0 %v2051, 112
      %v2104 = vpop.permute.xlu0 %2103
      %2105 = vrot.lane.b32.xlu0 %v2052, 112
      %v2106 = vpop.permute.xlu0 %2105
      %2107 = vrot.lane.b32.xlu0 %v2053, 112
      %v2108 = vpop.permute.xlu0 %2107
      %2109 = vrot.lane.b32.xlu0 %v2054, 112
      %v2110 = vpop.permute.xlu0 %2109
      %v2119 = vmul.f32 %v1941, %v2096
      %v2120 = vmul.f32 %v1956, %v2098
      %v2121 = vmul.f32 %v1971, %v2100
      %v2122 = vmul.f32 %v1986, %v2102
      %v2123 = vmul.f32 %v2001, %v2104
      %v2124 = vmul.f32 %v2016, %v2106
      %v2125 = vmul.f32 %v2031, %v2108
      %v2126 = vmul.f32 %v2046, %v2110
      %2135 = vrot.lane.b32.xlu0 %v2119, 8
      %v2136 = vpop.permute.xlu0 %2135
      %2137 = vrot.lane.b32.xlu0 %v2120, 8
      %v2138 = vpop.permute.xlu0 %2137
      %2139 = vrot.lane.b32.xlu0 %v2121, 8
      %v2140 = vpop.permute.xlu0 %2139
      %2141 = vrot.lane.b32.xlu0 %v2122, 8
      %v2142 = vpop.permute.xlu0 %2141
      %2143 = vrot.lane.b32.xlu0 %v2123, 8
      %v2144 = vpop.permute.xlu0 %2143
      %2145 = vrot.lane.b32.xlu0 %v2124, 8
      %v2146 = vpop.permute.xlu0 %2145
      %2147 = vrot.lane.b32.xlu0 %v2125, 8
      %v2148 = vpop.permute.xlu0 %2147
      %2149 = vrot.lane.b32.xlu0 %v2126, 8
      %v2150 = vpop.permute.xlu0 %2149
      %v2159 = vadd.f32 %v2079, %v2136
      %v2160 = vadd.f32 %v2080, %v2138
      %v2161 = vadd.f32 %v2081, %v2140
      %v2162 = vadd.f32 %v2082, %v2142
      %v2163 = vadd.f32 %v2083, %v2144
      %v2164 = vadd.f32 %v2084, %v2146
      %v2165 = vadd.f32 %v2085, %v2148
      %v2166 = vadd.f32 %v2086, %v2150
      %v2167 = vtanh.pop %v2159
      %v2168 = vtanh.pop %v2160
      %v2169 = vtanh.pop %v2161
      %v2170 = vtanh.pop %v2162
      %v2171 = vtanh.pop %v2163
      %v2172 = vtanh.pop %v2164
      %v2173 = vtanh.pop %v2165
      %v2174 = vtanh.pop %v2166
      %2183 = vrot.lane.b32.xlu0 %v2167, 16
      %v2184 = vpop.permute.xlu0 %2183
      %2185 = vrot.lane.b32.xlu0 %v2168, 16
      %v2186 = vpop.permute.xlu0 %2185
      %2187 = vrot.lane.b32.xlu0 %v2169, 16
      %v2188 = vpop.permute.xlu0 %2187
      %2189 = vrot.lane.b32.xlu0 %v2170, 16
      %v2190 = vpop.permute.xlu0 %2189
      %2191 = vrot.lane.b32.xlu0 %v2171, 16
      %v2192 = vpop.permute.xlu0 %2191
      %2193 = vrot.lane.b32.xlu0 %v2172, 16
      %v2194 = vpop.permute.xlu0 %2193
      %2195 = vrot.lane.b32.xlu0 %v2173, 16
      %v2196 = vpop.permute.xlu0 %2195
      %2197 = vrot.lane.b32.xlu0 %v2174, 16
      %v2198 = vpop.permute.xlu0 %2197
      %v2207 = vmul.f32 %v1941, %v2184
      %v2208 = vmul.f32 %v1956, %v2186
      %v2209 = vmul.f32 %v1971, %v2188
      %v2210 = vmul.f32 %v1986, %v2190
      %v2211 = vmul.f32 %v2001, %v2192
      %v2212 = vmul.f32 %v2016, %v2194
      %v2213 = vmul.f32 %v2031, %v2196
      %v2214 = vmul.f32 %v2046, %v2198
      %v2223 = vrot.slane %v2207, 4
      %v2224 = vrot.slane %v2208, 3
      %v2225 = vsel %vm657, %v2224, %v2223
      %v2226 = vrot.slane %v2209, 2
      %v2227 = vsel %vm660, %v2226, %v2225
      %v2228 = vrot.slane %v2210, 1
      %v2229 = vsel %vm663, %v2228, %v2227
      %v2230 = vsel %vm666, %v2211, %v2229
      %v2231 = vrot.slane %v2212, 7
      %v2232 = vsel %vm669, %v2231, %v2230
      %v2233 = vrot.slane %v2213, 6
      %v2234 = vsel %vm672, %v2233, %v2232
      %v2235 = vrot.slane %v2214, 5
      %v2236 = vsel %vm675, %v2235, %v2234
      %2237 = vrot.lane.b32.xlu0 %v2236, 104
      %v2238 = vpop.permute.xlu0 %2237
      %v2239 = vsel %vm239, %v2238, 0
      %2241 = vmatpush.msra.mxu0 0.0
      %2242 = vmatpush.msra.mxu0 0.0
      %2243 = vmatpush.msra.mxu0 0.0
      %2244 = vmatpush.msra.mxu0 0.0
      %2245 = vmatpush.msra.mxu0 0.0
      %2246 = vmatpush.msra.mxu0 0.0
      %2247 = vmatpush.msra.mxu0 0.0
      %2248 = vmatpush.msra.mxu0 0.0
      %2249 = vmatpush.msra.mxu0 0.0
      %2250 = vmatpush.msra.mxu0 0.0
      %2251 = vmatpush.msra.mxu0 0.0
      %2252 = vmatpush.msra.mxu0 0.0
      %2253 = vmatpush.msra.mxu0 0.0
      %2254 = vmatpush.msra.mxu0 0.0
      %2255 = vmatpush.msra.mxu0 0.0
      %2256 = vmatpush.msra.mxu0 %v226
      %2257 = vmatmul.f32.gmra.mxu0 %v2239
      %v2258 = vpop.f32.mrf.mxu0
      %v2259 = vadd.f32 0.0, %v2258
      %2260 = vdwg.mxu0
      %v2262 = vrot.slane %v2259, 3
      %v2263 = vrot.slane %v2259, 4
      %v2264 = vrot.slane %v2259, 5
      %v2265 = vrot.slane %v2259, 6
      %v2266 = vrot.slane %v2259, 7
      %v2267 = vrot.slane %v2259, 1
      %v2268 = vrot.slane %v2259, 2
      %v2277 = vadd.f32 %v282, %v2262
      %v2278 = vadd.f32 %v285, %v2263
      %v2279 = vadd.f32 %v288, %v2264
      %v2280 = vadd.f32 %v291, %v2265
      %v2281 = vadd.f32 %v294, %v2266
      %v2282 = vadd.f32 %v297, %v2259
      %v2283 = vadd.f32 %v300, %v2267
      %v2284 = vadd.f32 %v303, %v2268
      %v2285 = vxor.u32 %v2277, 2147483648
      %v2286 = vxor.u32 %v2278, 2147483648
      %v2287 = vxor.u32 %v2279, 2147483648
      %v2288 = vxor.u32 %v2280, 2147483648
      %v2289 = vxor.u32 %v2281, 2147483648
      %v2290 = vxor.u32 %v2282, 2147483648
      %v2291 = vxor.u32 %v2283, 2147483648
      %v2292 = vxor.u32 %v2284, 2147483648
      %v2293 = vmul.f32 %v2285, 1.442695
      %v2294 = vpow.pop %v2293
      %v2295 = vmul.f32 %v2286, 1.442695
      %v2296 = vpow.pop %v2295
      %v2297 = vmul.f32 %v2287, 1.442695
      %v2298 = vpow.pop %v2297
      %v2299 = vmul.f32 %v2288, 1.442695
      %v2300 = vpow.pop %v2299
      %v2301 = vmul.f32 %v2289, 1.442695
      %v2302 = vpow.pop %v2301
      %v2303 = vmul.f32 %v2290, 1.442695
      %v2304 = vpow.pop %v2303
      %v2305 = vmul.f32 %v2291, 1.442695
      %v2306 = vpow.pop %v2305
      %v2307 = vmul.f32 %v2292, 1.442695
      %v2308 = vpow.pop %v2307
      %v2309 = vadd.f32 %v2294, 1.0
      %v2310 = vadd.f32 %v2296, 1.0
      %v2311 = vadd.f32 %v2298, 1.0
      %v2312 = vadd.f32 %v2300, 1.0
      %v2313 = vadd.f32 %v2302, 1.0
      %v2314 = vadd.f32 %v2304, 1.0
      %v2315 = vadd.f32 %v2306, 1.0
      %v2316 = vadd.f32 %v2308, 1.0
      %v2317 = vrcp.pop %v2309
      %v2318 = vmul.f32 %v2309, %v2317
      %v2319 = vsub.f32 1.0, %v2318
      %v2320 = vmul.f32 %v2317, %v2319
      %v2321 = vadd.f32 %v2317, %v2320
      %vm2322 = vweird.f32 %v2309
      %vm2323 = vweird.f32 %v2317
      %vm2324 = vmor %vm2322, %vm2323
      %v2325 = vsel %vm2324, %v2317, %v2321
      %v2326 = vand.u32 2147483647, %v2309
      %vm2327 = vcmp.eq.f32.partialorder %v2326, 8.507059e+37
      %v2328 = vand.u32 %v2309, 2147483648
      %v2329 = vor.u32 1.1754944e-38, %v2328
      %v2330 = vsel %vm2327, %v2329, %v2325
      %v2331 = vmul.f32 1.0, %v2330
      %v2332 = vrcp.pop %v2310
      %v2333 = vmul.f32 %v2310, %v2332
      %v2334 = vsub.f32 1.0, %v2333
      %v2335 = vmul.f32 %v2332, %v2334
      %v2336 = vadd.f32 %v2332, %v2335
      %vm2337 = vweird.f32 %v2310
      %vm2338 = vweird.f32 %v2332
      %vm2339 = vmor %vm2337, %vm2338
      %v2340 = vsel %vm2339, %v2332, %v2336
      %v2341 = vand.u32 2147483647, %v2310
      %vm2342 = vcmp.eq.f32.partialorder %v2341, 8.507059e+37
      %v2343 = vand.u32 %v2310, 2147483648
      %v2344 = vor.u32 1.1754944e-38, %v2343
      %v2345 = vsel %vm2342, %v2344, %v2340
      %v2346 = vmul.f32 1.0, %v2345
      %v2347 = vrcp.pop %v2311
      %v2348 = vmul.f32 %v2311, %v2347
      %v2349 = vsub.f32 1.0, %v2348
      %v2350 = vmul.f32 %v2347, %v2349
      %v2351 = vadd.f32 %v2347, %v2350
      %vm2352 = vweird.f32 %v2311
      %vm2353 = vweird.f32 %v2347
      %vm2354 = vmor %vm2352, %vm2353
      %v2355 = vsel %vm2354, %v2347, %v2351
      %v2356 = vand.u32 2147483647, %v2311
      %vm2357 = vcmp.eq.f32.partialorder %v2356, 8.507059e+37
      %v2358 = vand.u32 %v2311, 2147483648
      %v2359 = vor.u32 1.1754944e-38, %v2358
      %v2360 = vsel %vm2357, %v2359, %v2355
      %v2361 = vmul.f32 1.0, %v2360
      %v2362 = vrcp.pop %v2312
      %v2363 = vmul.f32 %v2312, %v2362
      %v2364 = vsub.f32 1.0, %v2363
      %v2365 = vmul.f32 %v2362, %v2364
      %v2366 = vadd.f32 %v2362, %v2365
      %vm2367 = vweird.f32 %v2312
      %vm2368 = vweird.f32 %v2362
      %vm2369 = vmor %vm2367, %vm2368
      %v2370 = vsel %vm2369, %v2362, %v2366
      %v2371 = vand.u32 2147483647, %v2312
      %vm2372 = vcmp.eq.f32.partialorder %v2371, 8.507059e+37
      %v2373 = vand.u32 %v2312, 2147483648
      %v2374 = vor.u32 1.1754944e-38, %v2373
      %v2375 = vsel %vm2372, %v2374, %v2370
      %v2376 = vmul.f32 1.0, %v2375
      %v2377 = vrcp.pop %v2313
      %v2378 = vmul.f32 %v2313, %v2377
      %v2379 = vsub.f32 1.0, %v2378
      %v2380 = vmul.f32 %v2377, %v2379
      %v2381 = vadd.f32 %v2377, %v2380
      %vm2382 = vweird.f32 %v2313
      %vm2383 = vweird.f32 %v2377
      %vm2384 = vmor %vm2382, %vm2383
      %v2385 = vsel %vm2384, %v2377, %v2381
      %v2386 = vand.u32 2147483647, %v2313
      %vm2387 = vcmp.eq.f32.partialorder %v2386, 8.507059e+37
      %v2388 = vand.u32 %v2313, 2147483648
      %v2389 = vor.u32 1.1754944e-38, %v2388
      %v2390 = vsel %vm2387, %v2389, %v2385
      %v2391 = vmul.f32 1.0, %v2390
      %v2392 = vrcp.pop %v2314
      %v2393 = vmul.f32 %v2314, %v2392
      %v2394 = vsub.f32 1.0, %v2393
      %v2395 = vmul.f32 %v2392, %v2394
      %v2396 = vadd.f32 %v2392, %v2395
      %vm2397 = vweird.f32 %v2314
      %vm2398 = vweird.f32 %v2392
      %vm2399 = vmor %vm2397, %vm2398
      %v2400 = vsel %vm2399, %v2392, %v2396
      %v2401 = vand.u32 2147483647, %v2314
      %vm2402 = vcmp.eq.f32.partialorder %v2401, 8.507059e+37
      %v2403 = vand.u32 %v2314, 2147483648
      %v2404 = vor.u32 1.1754944e-38, %v2403
      %v2405 = vsel %vm2402, %v2404, %v2400
      %v2406 = vmul.f32 1.0, %v2405
      %v2407 = vrcp.pop %v2315
      %v2408 = vmul.f32 %v2315, %v2407
      %v2409 = vsub.f32 1.0, %v2408
      %v2410 = vmul.f32 %v2407, %v2409
      %v2411 = vadd.f32 %v2407, %v2410
      %vm2412 = vweird.f32 %v2315
      %vm2413 = vweird.f32 %v2407
      %vm2414 = vmor %vm2412, %vm2413
      %v2415 = vsel %vm2414, %v2407, %v2411
      %v2416 = vand.u32 2147483647, %v2315
      %vm2417 = vcmp.eq.f32.partialorder %v2416, 8.507059e+37
      %v2418 = vand.u32 %v2315, 2147483648
      %v2419 = vor.u32 1.1754944e-38, %v2418
      %v2420 = vsel %vm2417, %v2419, %v2415
      %v2421 = vmul.f32 1.0, %v2420
      %v2422 = vrcp.pop %v2316
      %v2423 = vmul.f32 %v2316, %v2422
      %v2424 = vsub.f32 1.0, %v2423
      %v2425 = vmul.f32 %v2422, %v2424
      %v2426 = vadd.f32 %v2422, %v2425
      %vm2427 = vweird.f32 %v2316
      %vm2428 = vweird.f32 %v2422
      %vm2429 = vmor %vm2427, %vm2428
      %v2430 = vsel %vm2429, %v2422, %v2426
      %v2431 = vand.u32 2147483647, %v2316
      %vm2432 = vcmp.eq.f32.partialorder %v2431, 8.507059e+37
      %v2433 = vand.u32 %v2316, 2147483648
      %v2434 = vor.u32 1.1754944e-38, %v2433
      %v2435 = vsel %vm2432, %v2434, %v2430
      %v2436 = vmul.f32 1.0, %v2435
      %v2437 = vtanh.pop %v2277
      %v2438 = vtanh.pop %v2278
      %v2439 = vtanh.pop %v2279
      %v2440 = vtanh.pop %v2280
      %v2441 = vtanh.pop %v2281
      %v2442 = vtanh.pop %v2282
      %v2443 = vtanh.pop %v2283
      %v2444 = vtanh.pop %v2284
      %v2453 = vrot.slane %v2159, 7
      %v2454 = vrot.slane %v2160, 7
      %v2455 = vrot.slane %v2161, 7
      %v2456 = vrot.slane %v2162, 7
      %v2457 = vrot.slane %v2163, 7
      %v2458 = vrot.slane %v2164, 7
      %v2459 = vrot.slane %v2165, 7
      %v2460 = vrot.slane %v2166, 7
      %v2469 = vmul.f32 %v2331, %v2453
      %v2470 = vmul.f32 %v2346, %v2454
      %v2471 = vmul.f32 %v2361, %v2455
      %v2472 = vmul.f32 %v2376, %v2456
      %v2473 = vmul.f32 %v2391, %v2457
      %v2474 = vmul.f32 %v2406, %v2458
      %v2475 = vmul.f32 %v2421, %v2459
      %v2476 = vmul.f32 %v2436, %v2460
      %2485 = vrot.lane.b32.xlu0 %v2437, 112
      %v2486 = vpop.permute.xlu0 %2485
      %2487 = vrot.lane.b32.xlu0 %v2438, 112
      %v2488 = vpop.permute.xlu0 %2487
      %2489 = vrot.lane.b32.xlu0 %v2439, 112
      %v2490 = vpop.permute.xlu0 %2489
      %2491 = vrot.lane.b32.xlu0 %v2440, 112
      %v2492 = vpop.permute.xlu0 %2491
      %2493 = vrot.lane.b32.xlu0 %v2441, 112
      %v2494 = vpop.permute.xlu0 %2493
      %2495 = vrot.lane.b32.xlu0 %v2442, 112
      %v2496 = vpop.permute.xlu0 %2495
      %2497 = vrot.lane.b32.xlu0 %v2443, 112
      %v2498 = vpop.permute.xlu0 %2497
      %2499 = vrot.lane.b32.xlu0 %v2444, 112
      %v2500 = vpop.permute.xlu0 %2499
      %v2509 = vmul.f32 %v2331, %v2486
      %v2510 = vmul.f32 %v2346, %v2488
      %v2511 = vmul.f32 %v2361, %v2490
      %v2512 = vmul.f32 %v2376, %v2492
      %v2513 = vmul.f32 %v2391, %v2494
      %v2514 = vmul.f32 %v2406, %v2496
      %v2515 = vmul.f32 %v2421, %v2498
      %v2516 = vmul.f32 %v2436, %v2500
      %2525 = vrot.lane.b32.xlu0 %v2509, 8
      %v2526 = vpop.permute.xlu0 %2525
      %2527 = vrot.lane.b32.xlu0 %v2510, 8
      %v2528 = vpop.permute.xlu0 %2527
      %2529 = vrot.lane.b32.xlu0 %v2511, 8
      %v2530 = vpop.permute.xlu0 %2529
      %2531 = vrot.lane.b32.xlu0 %v2512, 8
      %v2532 = vpop.permute.xlu0 %2531
      %2533 = vrot.lane.b32.xlu0 %v2513, 8
      %v2534 = vpop.permute.xlu0 %2533
      %2535 = vrot.lane.b32.xlu0 %v2514, 8
      %v2536 = vpop.permute.xlu0 %2535
      %2537 = vrot.lane.b32.xlu0 %v2515, 8
      %v2538 = vpop.permute.xlu0 %2537
      %2539 = vrot.lane.b32.xlu0 %v2516, 8
      %v2540 = vpop.permute.xlu0 %2539
      %v2549 = vadd.f32 %v2469, %v2526
      %v2550 = vadd.f32 %v2470, %v2528
      %v2551 = vadd.f32 %v2471, %v2530
      %v2552 = vadd.f32 %v2472, %v2532
      %v2553 = vadd.f32 %v2473, %v2534
      %v2554 = vadd.f32 %v2474, %v2536
      %v2555 = vadd.f32 %v2475, %v2538
      %v2556 = vadd.f32 %v2476, %v2540
      %v2557 = vtanh.pop %v2549
      %v2558 = vtanh.pop %v2550
      %v2559 = vtanh.pop %v2551
      %v2560 = vtanh.pop %v2552
      %v2561 = vtanh.pop %v2553
      %v2562 = vtanh.pop %v2554
      %v2563 = vtanh.pop %v2555
      %v2564 = vtanh.pop %v2556
      %2573 = vrot.lane.b32.xlu0 %v2557, 16
      %v2574 = vpop.permute.xlu0 %2573
      %2575 = vrot.lane.b32.xlu0 %v2558, 16
      %v2576 = vpop.permute.xlu0 %2575
      %2577 = vrot.lane.b32.xlu0 %v2559, 16
      %v2578 = vpop.permute.xlu0 %2577
      %2579 = vrot.lane.b32.xlu0 %v2560, 16
      %v2580 = vpop.permute.xlu0 %2579
      %2581 = vrot.lane.b32.xlu0 %v2561, 16
      %v2582 = vpop.permute.xlu0 %2581
      %2583 = vrot.lane.b32.xlu0 %v2562, 16
      %v2584 = vpop.permute.xlu0 %2583
      %2585 = vrot.lane.b32.xlu0 %v2563, 16
      %v2586 = vpop.permute.xlu0 %2585
      %2587 = vrot.lane.b32.xlu0 %v2564, 16
      %v2588 = vpop.permute.xlu0 %2587
      %v2597 = vmul.f32 %v2331, %v2574
      %v2598 = vmul.f32 %v2346, %v2576
      %v2599 = vmul.f32 %v2361, %v2578
      %v2600 = vmul.f32 %v2376, %v2580
      %v2601 = vmul.f32 %v2391, %v2582
      %v2602 = vmul.f32 %v2406, %v2584
      %v2603 = vmul.f32 %v2421, %v2586
      %v2604 = vmul.f32 %v2436, %v2588
      %v2613 = vrot.slane %v2597, 5
      %v2614 = vrot.slane %v2598, 4
      %v2615 = vsel %vm657, %v2614, %v2613
      %v2616 = vrot.slane %v2599, 3
      %v2617 = vsel %vm660, %v2616, %v2615
      %v2618 = vrot.slane %v2600, 2
      %v2619 = vsel %vm663, %v2618, %v2617
      %v2620 = vrot.slane %v2601, 1
      %v2621 = vsel %vm666, %v2620, %v2619
      %v2622 = vsel %vm669, %v2602, %v2621
      %v2623 = vrot.slane %v2603, 7
      %v2624 = vsel %vm672, %v2623, %v2622
      %v2625 = vrot.slane %v2604, 6
      %v2626 = vsel %vm675, %v2625, %v2624
      %2627 = vrot.lane.b32.xlu0 %v2626, 104
      %v2628 = vpop.permute.xlu0 %2627
      %v2629 = vsel %vm239, %v2628, 0
      %2631 = vmatpush.msra.mxu0 0.0
      %2632 = vmatpush.msra.mxu0 0.0
      %2633 = vmatpush.msra.mxu0 0.0
      %2634 = vmatpush.msra.mxu0 0.0
      %2635 = vmatpush.msra.mxu0 0.0
      %2636 = vmatpush.msra.mxu0 0.0
      %2637 = vmatpush.msra.mxu0 0.0
      %2638 = vmatpush.msra.mxu0 0.0
      %2639 = vmatpush.msra.mxu0 0.0
      %2640 = vmatpush.msra.mxu0 0.0
      %2641 = vmatpush.msra.mxu0 0.0
      %2642 = vmatpush.msra.mxu0 0.0
      %2643 = vmatpush.msra.mxu0 0.0
      %2644 = vmatpush.msra.mxu0 0.0
      %2645 = vmatpush.msra.mxu0 0.0
      %2646 = vmatpush.msra.mxu0 %v226
      %2647 = vmatmul.f32.gmra.mxu0 %v2629
      %v2648 = vpop.f32.mrf.mxu0
      %v2649 = vadd.f32 0.0, %v2648
      %2650 = vdwg.mxu0
      %v2652 = vrot.slane %v2649, 2
      %v2653 = vrot.slane %v2649, 3
      %v2654 = vrot.slane %v2649, 4
      %v2655 = vrot.slane %v2649, 5
      %v2656 = vrot.slane %v2649, 6
      %v2657 = vrot.slane %v2649, 7
      %v2658 = vrot.slane %v2649, 1
      %v2667 = vadd.f32 %v282, %v2652
      %v2668 = vadd.f32 %v285, %v2653
      %v2669 = vadd.f32 %v288, %v2654
      %v2670 = vadd.f32 %v291, %v2655
      %v2671 = vadd.f32 %v294, %v2656
      %v2672 = vadd.f32 %v297, %v2657
      %v2673 = vadd.f32 %v300, %v2649
      %v2674 = vadd.f32 %v303, %v2658
      %v2675 = vxor.u32 %v2667, 2147483648
      %v2676 = vxor.u32 %v2668, 2147483648
      %v2677 = vxor.u32 %v2669, 2147483648
      %v2678 = vxor.u32 %v2670, 2147483648
      %v2679 = vxor.u32 %v2671, 2147483648
      %v2680 = vxor.u32 %v2672, 2147483648
      %v2681 = vxor.u32 %v2673, 2147483648
      %v2682 = vxor.u32 %v2674, 2147483648
      %v2683 = vmul.f32 %v2675, 1.442695
      %v2684 = vpow.pop %v2683
      %v2685 = vmul.f32 %v2676, 1.442695
      %v2686 = vpow.pop %v2685
      %v2687 = vmul.f32 %v2677, 1.442695
      %v2688 = vpow.pop %v2687
      %v2689 = vmul.f32 %v2678, 1.442695
      %v2690 = vpow.pop %v2689
      %v2691 = vmul.f32 %v2679, 1.442695
      %v2692 = vpow.pop %v2691
      %v2693 = vmul.f32 %v2680, 1.442695
      %v2694 = vpow.pop %v2693
      %v2695 = vmul.f32 %v2681, 1.442695
      %v2696 = vpow.pop %v2695
      %v2697 = vmul.f32 %v2682, 1.442695
      %v2698 = vpow.pop %v2697
      %v2699 = vadd.f32 %v2684, 1.0
      %v2700 = vadd.f32 %v2686, 1.0
      %v2701 = vadd.f32 %v2688, 1.0
      %v2702 = vadd.f32 %v2690, 1.0
      %v2703 = vadd.f32 %v2692, 1.0
      %v2704 = vadd.f32 %v2694, 1.0
      %v2705 = vadd.f32 %v2696, 1.0
      %v2706 = vadd.f32 %v2698, 1.0
      %v2707 = vrcp.pop %v2699
      %v2708 = vmul.f32 %v2699, %v2707
      %v2709 = vsub.f32 1.0, %v2708
      %v2710 = vmul.f32 %v2707, %v2709
      %v2711 = vadd.f32 %v2707, %v2710
      %vm2712 = vweird.f32 %v2699
      %vm2713 = vweird.f32 %v2707
      %vm2714 = vmor %vm2712, %vm2713
      %v2715 = vsel %vm2714, %v2707, %v2711
      %v2716 = vand.u32 2147483647, %v2699
      %vm2717 = vcmp.eq.f32.partialorder %v2716, 8.507059e+37
      %v2718 = vand.u32 %v2699, 2147483648
      %v2719 = vor.u32 1.1754944e-38, %v2718
      %v2720 = vsel %vm2717, %v2719, %v2715
      %v2721 = vmul.f32 1.0, %v2720
      %v2722 = vrcp.pop %v2700
      %v2723 = vmul.f32 %v2700, %v2722
      %v2724 = vsub.f32 1.0, %v2723
      %v2725 = vmul.f32 %v2722, %v2724
      %v2726 = vadd.f32 %v2722, %v2725
      %vm2727 = vweird.f32 %v2700
      %vm2728 = vweird.f32 %v2722
      %vm2729 = vmor %vm2727, %vm2728
      %v2730 = vsel %vm2729, %v2722, %v2726
      %v2731 = vand.u32 2147483647, %v2700
      %vm2732 = vcmp.eq.f32.partialorder %v2731, 8.507059e+37
      %v2733 = vand.u32 %v2700, 2147483648
      %v2734 = vor.u32 1.1754944e-38, %v2733
      %v2735 = vsel %vm2732, %v2734, %v2730
      %v2736 = vmul.f32 1.0, %v2735
      %v2737 = vrcp.pop %v2701
      %v2738 = vmul.f32 %v2701, %v2737
      %v2739 = vsub.f32 1.0, %v2738
      %v2740 = vmul.f32 %v2737, %v2739
      %v2741 = vadd.f32 %v2737, %v2740
      %vm2742 = vweird.f32 %v2701
      %vm2743 = vweird.f32 %v2737
      %vm2744 = vmor %vm2742, %vm2743
      %v2745 = vsel %vm2744, %v2737, %v2741
      %v2746 = vand.u32 2147483647, %v2701
      %vm2747 = vcmp.eq.f32.partialorder %v2746, 8.507059e+37
      %v2748 = vand.u32 %v2701, 2147483648
      %v2749 = vor.u32 1.1754944e-38, %v2748
      %v2750 = vsel %vm2747, %v2749, %v2745
      %v2751 = vmul.f32 1.0, %v2750
      %v2752 = vrcp.pop %v2702
      %v2753 = vmul.f32 %v2702, %v2752
      %v2754 = vsub.f32 1.0, %v2753
      %v2755 = vmul.f32 %v2752, %v2754
      %v2756 = vadd.f32 %v2752, %v2755
      %vm2757 = vweird.f32 %v2702
      %vm2758 = vweird.f32 %v2752
      %vm2759 = vmor %vm2757, %vm2758
      %v2760 = vsel %vm2759, %v2752, %v2756
      %v2761 = vand.u32 2147483647, %v2702
      %vm2762 = vcmp.eq.f32.partialorder %v2761, 8.507059e+37
      %v2763 = vand.u32 %v2702, 2147483648
      %v2764 = vor.u32 1.1754944e-38, %v2763
      %v2765 = vsel %vm2762, %v2764, %v2760
      %v2766 = vmul.f32 1.0, %v2765
      %v2767 = vrcp.pop %v2703
      %v2768 = vmul.f32 %v2703, %v2767
      %v2769 = vsub.f32 1.0, %v2768
      %v2770 = vmul.f32 %v2767, %v2769
      %v2771 = vadd.f32 %v2767, %v2770
      %vm2772 = vweird.f32 %v2703
      %vm2773 = vweird.f32 %v2767
      %vm2774 = vmor %vm2772, %vm2773
      %v2775 = vsel %vm2774, %v2767, %v2771
      %v2776 = vand.u32 2147483647, %v2703
      %vm2777 = vcmp.eq.f32.partialorder %v2776, 8.507059e+37
      %v2778 = vand.u32 %v2703, 2147483648
      %v2779 = vor.u32 1.1754944e-38, %v2778
      %v2780 = vsel %vm2777, %v2779, %v2775
      %v2781 = vmul.f32 1.0, %v2780
      %v2782 = vrcp.pop %v2704
      %v2783 = vmul.f32 %v2704, %v2782
      %v2784 = vsub.f32 1.0, %v2783
      %v2785 = vmul.f32 %v2782, %v2784
      %v2786 = vadd.f32 %v2782, %v2785
      %vm2787 = vweird.f32 %v2704
      %vm2788 = vweird.f32 %v2782
      %vm2789 = vmor %vm2787, %vm2788
      %v2790 = vsel %vm2789, %v2782, %v2786
      %v2791 = vand.u32 2147483647, %v2704
      %vm2792 = vcmp.eq.f32.partialorder %v2791, 8.507059e+37
      %v2793 = vand.u32 %v2704, 2147483648
      %v2794 = vor.u32 1.1754944e-38, %v2793
      %v2795 = vsel %vm2792, %v2794, %v2790
      %v2796 = vmul.f32 1.0, %v2795
      %v2797 = vrcp.pop %v2705
      %v2798 = vmul.f32 %v2705, %v2797
      %v2799 = vsub.f32 1.0, %v2798
      %v2800 = vmul.f32 %v2797, %v2799
      %v2801 = vadd.f32 %v2797, %v2800
      %vm2802 = vweird.f32 %v2705
      %vm2803 = vweird.f32 %v2797
      %vm2804 = vmor %vm2802, %vm2803
      %v2805 = vsel %vm2804, %v2797, %v2801
      %v2806 = vand.u32 2147483647, %v2705
      %vm2807 = vcmp.eq.f32.partialorder %v2806, 8.507059e+37
      %v2808 = vand.u32 %v2705, 2147483648
      %v2809 = vor.u32 1.1754944e-38, %v2808
      %v2810 = vsel %vm2807, %v2809, %v2805
      %v2811 = vmul.f32 1.0, %v2810
      %v2812 = vrcp.pop %v2706
      %v2813 = vmul.f32 %v2706, %v2812
      %v2814 = vsub.f32 1.0, %v2813
      %v2815 = vmul.f32 %v2812, %v2814
      %v2816 = vadd.f32 %v2812, %v2815
      %vm2817 = vweird.f32 %v2706
      %vm2818 = vweird.f32 %v2812
      %vm2819 = vmor %vm2817, %vm2818
      %v2820 = vsel %vm2819, %v2812, %v2816
      %v2821 = vand.u32 2147483647, %v2706
      %vm2822 = vcmp.eq.f32.partialorder %v2821, 8.507059e+37
      %v2823 = vand.u32 %v2706, 2147483648
      %v2824 = vor.u32 1.1754944e-38, %v2823
      %v2825 = vsel %vm2822, %v2824, %v2820
      %v2826 = vmul.f32 1.0, %v2825
      %v2827 = vtanh.pop %v2667
      %v2828 = vtanh.pop %v2668
      %v2829 = vtanh.pop %v2669
      %v2830 = vtanh.pop %v2670
      %v2831 = vtanh.pop %v2671
      %v2832 = vtanh.pop %v2672
      %v2833 = vtanh.pop %v2673
      %v2834 = vtanh.pop %v2674
      %v2843 = vrot.slane %v2549, 7
      %v2844 = vrot.slane %v2550, 7
      %v2845 = vrot.slane %v2551, 7
      %v2846 = vrot.slane %v2552, 7
      %v2847 = vrot.slane %v2553, 7
      %v2848 = vrot.slane %v2554, 7
      %v2849 = vrot.slane %v2555, 7
      %v2850 = vrot.slane %v2556, 7
      %v2859 = vmul.f32 %v2721, %v2843
      %v2860 = vmul.f32 %v2736, %v2844
      %v2861 = vmul.f32 %v2751, %v2845
      %v2862 = vmul.f32 %v2766, %v2846
      %v2863 = vmul.f32 %v2781, %v2847
      %v2864 = vmul.f32 %v2796, %v2848
      %v2865 = vmul.f32 %v2811, %v2849
      %v2866 = vmul.f32 %v2826, %v2850
      %2875 = vrot.lane.b32.xlu0 %v2827, 112
      %v2876 = vpop.permute.xlu0 %2875
      %2877 = vrot.lane.b32.xlu0 %v2828, 112
      %v2878 = vpop.permute.xlu0 %2877
      %2879 = vrot.lane.b32.xlu0 %v2829, 112
      %v2880 = vpop.permute.xlu0 %2879
      %2881 = vrot.lane.b32.xlu0 %v2830, 112
      %v2882 = vpop.permute.xlu0 %2881
      %2883 = vrot.lane.b32.xlu0 %v2831, 112
      %v2884 = vpop.permute.xlu0 %2883
      %2885 = vrot.lane.b32.xlu0 %v2832, 112
      %v2886 = vpop.permute.xlu0 %2885
      %2887 = vrot.lane.b32.xlu0 %v2833, 112
      %v2888 = vpop.permute.xlu0 %2887
      %2889 = vrot.lane.b32.xlu0 %v2834, 112
      %v2890 = vpop.permute.xlu0 %2889
      %v2899 = vmul.f32 %v2721, %v2876
      %v2900 = vmul.f32 %v2736, %v2878
      %v2901 = vmul.f32 %v2751, %v2880
      %v2902 = vmul.f32 %v2766, %v2882
      %v2903 = vmul.f32 %v2781, %v2884
      %v2904 = vmul.f32 %v2796, %v2886
      %v2905 = vmul.f32 %v2811, %v2888
      %v2906 = vmul.f32 %v2826, %v2890
      %2915 = vrot.lane.b32.xlu0 %v2899, 8
      %v2916 = vpop.permute.xlu0 %2915
      %2917 = vrot.lane.b32.xlu0 %v2900, 8
      %v2918 = vpop.permute.xlu0 %2917
      %2919 = vrot.lane.b32.xlu0 %v2901, 8
      %v2920 = vpop.permute.xlu0 %2919
      %2921 = vrot.lane.b32.xlu0 %v2902, 8
      %v2922 = vpop.permute.xlu0 %2921
      %2923 = vrot.lane.b32.xlu0 %v2903, 8
      %v2924 = vpop.permute.xlu0 %2923
      %2925 = vrot.lane.b32.xlu0 %v2904, 8
      %v2926 = vpop.permute.xlu0 %2925
      %2927 = vrot.lane.b32.xlu0 %v2905, 8
      %v2928 = vpop.permute.xlu0 %2927
      %2929 = vrot.lane.b32.xlu0 %v2906, 8
      %v2930 = vpop.permute.xlu0 %2929
      %v2939 = vadd.f32 %v2859, %v2916
      %v2940 = vadd.f32 %v2860, %v2918
      %v2941 = vadd.f32 %v2861, %v2920
      %v2942 = vadd.f32 %v2862, %v2922
      %v2943 = vadd.f32 %v2863, %v2924
      %v2944 = vadd.f32 %v2864, %v2926
      %v2945 = vadd.f32 %v2865, %v2928
      %v2946 = vadd.f32 %v2866, %v2930
      %v2947 = vtanh.pop %v2939
      %v2948 = vtanh.pop %v2940
      %v2949 = vtanh.pop %v2941
      %v2950 = vtanh.pop %v2942
      %v2951 = vtanh.pop %v2943
      %v2952 = vtanh.pop %v2944
      %v2953 = vtanh.pop %v2945
      %v2954 = vtanh.pop %v2946
      %2963 = vrot.lane.b32.xlu0 %v2947, 16
      %v2964 = vpop.permute.xlu0 %2963
      %2965 = vrot.lane.b32.xlu0 %v2948, 16
      %v2966 = vpop.permute.xlu0 %2965
      %2967 = vrot.lane.b32.xlu0 %v2949, 16
      %v2968 = vpop.permute.xlu0 %2967
      %2969 = vrot.lane.b32.xlu0 %v2950, 16
      %v2970 = vpop.permute.xlu0 %2969
      %2971 = vrot.lane.b32.xlu0 %v2951, 16
      %v2972 = vpop.permute.xlu0 %2971
      %2973 = vrot.lane.b32.xlu0 %v2952, 16
      %v2974 = vpop.permute.xlu0 %2973
      %2975 = vrot.lane.b32.xlu0 %v2953, 16
      %v2976 = vpop.permute.xlu0 %2975
      %2977 = vrot.lane.b32.xlu0 %v2954, 16
      %v2978 = vpop.permute.xlu0 %2977
      %v2987 = vmul.f32 %v2721, %v2964
      %v2988 = vmul.f32 %v2736, %v2966
      %v2989 = vmul.f32 %v2751, %v2968
      %v2990 = vmul.f32 %v2766, %v2970
      %v2991 = vmul.f32 %v2781, %v2972
      %v2992 = vmul.f32 %v2796, %v2974
      %v2993 = vmul.f32 %v2811, %v2976
      %v2994 = vmul.f32 %v2826, %v2978
      %v3003 = vrot.slane %v2987, 6
      %v3004 = vrot.slane %v2988, 5
      %v3005 = vsel %vm657, %v3004, %v3003
      %v3006 = vrot.slane %v2989, 4
      %v3007 = vsel %vm660, %v3006, %v3005
      %v3008 = vrot.slane %v2990, 3
      %v3009 = vsel %vm663, %v3008, %v3007
      %v3010 = vrot.slane %v2991, 2
      %v3011 = vsel %vm666, %v3010, %v3009
      %v3012 = vrot.slane %v2992, 1
      %v3013 = vsel %vm669, %v3012, %v3011
      %v3014 = vsel %vm672, %v2993, %v3013
      %v3015 = vrot.slane %v2994, 7
      %v3016 = vsel %vm675, %v3015, %v3014
      %3017 = vrot.lane.b32.xlu0 %v3016, 104
      %v3018 = vpop.permute.xlu0 %3017
      %v3019 = vsel %vm239, %v3018, 0
      %3021 = vmatpush.msra.mxu0 0.0
      %3022 = vmatpush.msra.mxu0 0.0
      %3023 = vmatpush.msra.mxu0 0.0
      %3024 = vmatpush.msra.mxu0 0.0
      %3025 = vmatpush.msra.mxu0 0.0
      %3026 = vmatpush.msra.mxu0 0.0
      %3027 = vmatpush.msra.mxu0 0.0
      %3028 = vmatpush.msra.mxu0 0.0
      %3029 = vmatpush.msra.mxu0 0.0
      %3030 = vmatpush.msra.mxu0 0.0
      %3031 = vmatpush.msra.mxu0 0.0
      %3032 = vmatpush.msra.mxu0 0.0
      %3033 = vmatpush.msra.mxu0 0.0
      %3034 = vmatpush.msra.mxu0 0.0
      %3035 = vmatpush.msra.mxu0 0.0
      %3036 = vmatpush.msra.mxu0 %v226
      %3037 = vmatmul.f32.gmra.mxu0 %v3019
      %v3038 = vpop.f32.mrf.mxu0
      %v3039 = vadd.f32 0.0, %v3038
      %3040 = vdwg.mxu0
      %v3042 = vrot.slane %v3039, 1
      %v3043 = vrot.slane %v3039, 2
      %v3044 = vrot.slane %v3039, 3
      %v3045 = vrot.slane %v3039, 4
      %v3046 = vrot.slane %v3039, 5
      %v3047 = vrot.slane %v3039, 6
      %v3048 = vrot.slane %v3039, 7
      %v3057 = vadd.f32 %v282, %v3042
      %v3058 = vadd.f32 %v285, %v3043
      %v3059 = vadd.f32 %v288, %v3044
      %v3060 = vadd.f32 %v291, %v3045
      %v3061 = vadd.f32 %v294, %v3046
      %v3062 = vadd.f32 %v297, %v3047
      %v3063 = vadd.f32 %v300, %v3048
      %v3064 = vadd.f32 %v303, %v3039
      %v3065 = vxor.u32 %v3057, 2147483648
      %v3066 = vxor.u32 %v3058, 2147483648
      %v3067 = vxor.u32 %v3059, 2147483648
      %v3068 = vxor.u32 %v3060, 2147483648
      %v3069 = vxor.u32 %v3061, 2147483648
      %v3070 = vxor.u32 %v3062, 2147483648
      %v3071 = vxor.u32 %v3063, 2147483648
      %v3072 = vxor.u32 %v3064, 2147483648
      %v3073 = vmul.f32 %v3065, 1.442695
      %v3074 = vpow.pop %v3073
      %v3075 = vmul.f32 %v3066, 1.442695
      %v3076 = vpow.pop %v3075
      %v3077 = vmul.f32 %v3067, 1.442695
      %v3078 = vpow.pop %v3077
      %v3079 = vmul.f32 %v3068, 1.442695
      %v3080 = vpow.pop %v3079
      %v3081 = vmul.f32 %v3069, 1.442695
      %v3082 = vpow.pop %v3081
      %v3083 = vmul.f32 %v3070, 1.442695
      %v3084 = vpow.pop %v3083
      %v3085 = vmul.f32 %v3071, 1.442695
      %v3086 = vpow.pop %v3085
      %v3087 = vmul.f32 %v3072, 1.442695
      %v3088 = vpow.pop %v3087
      %v3089 = vadd.f32 %v3074, 1.0
      %v3090 = vadd.f32 %v3076, 1.0
      %v3091 = vadd.f32 %v3078, 1.0
      %v3092 = vadd.f32 %v3080, 1.0
      %v3093 = vadd.f32 %v3082, 1.0
      %v3094 = vadd.f32 %v3084, 1.0
      %v3095 = vadd.f32 %v3086, 1.0
      %v3096 = vadd.f32 %v3088, 1.0
      %v3097 = vrcp.pop %v3089
      %v3098 = vmul.f32 %v3089, %v3097
      %v3099 = vsub.f32 1.0, %v3098
      %v3100 = vmul.f32 %v3097, %v3099
      %v3101 = vadd.f32 %v3097, %v3100
      %vm3102 = vweird.f32 %v3089
      %vm3103 = vweird.f32 %v3097
      %vm3104 = vmor %vm3102, %vm3103
      %v3105 = vsel %vm3104, %v3097, %v3101
      %v3106 = vand.u32 2147483647, %v3089
      %vm3107 = vcmp.eq.f32.partialorder %v3106, 8.507059e+37
      %v3108 = vand.u32 %v3089, 2147483648
      %v3109 = vor.u32 1.1754944e-38, %v3108
      %v3110 = vsel %vm3107, %v3109, %v3105
      %v3111 = vmul.f32 1.0, %v3110
      %v3112 = vrcp.pop %v3090
      %v3113 = vmul.f32 %v3090, %v3112
      %v3114 = vsub.f32 1.0, %v3113
      %v3115 = vmul.f32 %v3112, %v3114
      %v3116 = vadd.f32 %v3112, %v3115
      %vm3117 = vweird.f32 %v3090
      %vm3118 = vweird.f32 %v3112
      %vm3119 = vmor %vm3117, %vm3118
      %v3120 = vsel %vm3119, %v3112, %v3116
      %v3121 = vand.u32 2147483647, %v3090
      %vm3122 = vcmp.eq.f32.partialorder %v3121, 8.507059e+37
      %v3123 = vand.u32 %v3090, 2147483648
      %v3124 = vor.u32 1.1754944e-38, %v3123
      %v3125 = vsel %vm3122, %v3124, %v3120
      %v3126 = vmul.f32 1.0, %v3125
      %v3127 = vrcp.pop %v3091
      %v3128 = vmul.f32 %v3091, %v3127
      %v3129 = vsub.f32 1.0, %v3128
      %v3130 = vmul.f32 %v3127, %v3129
      %v3131 = vadd.f32 %v3127, %v3130
      %vm3132 = vweird.f32 %v3091
      %vm3133 = vweird.f32 %v3127
      %vm3134 = vmor %vm3132, %vm3133
      %v3135 = vsel %vm3134, %v3127, %v3131
      %v3136 = vand.u32 2147483647, %v3091
      %vm3137 = vcmp.eq.f32.partialorder %v3136, 8.507059e+37
      %v3138 = vand.u32 %v3091, 2147483648
      %v3139 = vor.u32 1.1754944e-38, %v3138
      %v3140 = vsel %vm3137, %v3139, %v3135
      %v3141 = vmul.f32 1.0, %v3140
      %v3142 = vrcp.pop %v3092
      %v3143 = vmul.f32 %v3092, %v3142
      %v3144 = vsub.f32 1.0, %v3143
      %v3145 = vmul.f32 %v3142, %v3144
      %v3146 = vadd.f32 %v3142, %v3145
      %vm3147 = vweird.f32 %v3092
      %vm3148 = vweird.f32 %v3142
      %vm3149 = vmor %vm3147, %vm3148
      %v3150 = vsel %vm3149, %v3142, %v3146
      %v3151 = vand.u32 2147483647, %v3092
      %vm3152 = vcmp.eq.f32.partialorder %v3151, 8.507059e+37
      %v3153 = vand.u32 %v3092, 2147483648
      %v3154 = vor.u32 1.1754944e-38, %v3153
      %v3155 = vsel %vm3152, %v3154, %v3150
      %v3156 = vmul.f32 1.0, %v3155
      %v3157 = vrcp.pop %v3093
      %v3158 = vmul.f32 %v3093, %v3157
      %v3159 = vsub.f32 1.0, %v3158
      %v3160 = vmul.f32 %v3157, %v3159
      %v3161 = vadd.f32 %v3157, %v3160
      %vm3162 = vweird.f32 %v3093
      %vm3163 = vweird.f32 %v3157
      %vm3164 = vmor %vm3162, %vm3163
      %v3165 = vsel %vm3164, %v3157, %v3161
      %v3166 = vand.u32 2147483647, %v3093
      %vm3167 = vcmp.eq.f32.partialorder %v3166, 8.507059e+37
      %v3168 = vand.u32 %v3093, 2147483648
      %v3169 = vor.u32 1.1754944e-38, %v3168
      %v3170 = vsel %vm3167, %v3169, %v3165
      %v3171 = vmul.f32 1.0, %v3170
      %v3172 = vrcp.pop %v3094
      %v3173 = vmul.f32 %v3094, %v3172
      %v3174 = vsub.f32 1.0, %v3173
      %v3175 = vmul.f32 %v3172, %v3174
      %v3176 = vadd.f32 %v3172, %v3175
      %vm3177 = vweird.f32 %v3094
      %vm3178 = vweird.f32 %v3172
      %vm3179 = vmor %vm3177, %vm3178
      %v3180 = vsel %vm3179, %v3172, %v3176
      %v3181 = vand.u32 2147483647, %v3094
      %vm3182 = vcmp.eq.f32.partialorder %v3181, 8.507059e+37
      %v3183 = vand.u32 %v3094, 2147483648
      %v3184 = vor.u32 1.1754944e-38, %v3183
      %v3185 = vsel %vm3182, %v3184, %v3180
      %v3186 = vmul.f32 1.0, %v3185
      %v3187 = vrcp.pop %v3095
      %v3188 = vmul.f32 %v3095, %v3187
      %v3189 = vsub.f32 1.0, %v3188
      %v3190 = vmul.f32 %v3187, %v3189
      %v3191 = vadd.f32 %v3187, %v3190
      %vm3192 = vweird.f32 %v3095
      %vm3193 = vweird.f32 %v3187
      %vm3194 = vmor %vm3192, %vm3193
      %v3195 = vsel %vm3194, %v3187, %v3191
      %v3196 = vand.u32 2147483647, %v3095
      %vm3197 = vcmp.eq.f32.partialorder %v3196, 8.507059e+37
      %v3198 = vand.u32 %v3095, 2147483648
      %v3199 = vor.u32 1.1754944e-38, %v3198
      %v3200 = vsel %vm3197, %v3199, %v3195
      %v3201 = vmul.f32 1.0, %v3200
      %v3202 = vrcp.pop %v3096
      %v3203 = vmul.f32 %v3096, %v3202
      %v3204 = vsub.f32 1.0, %v3203
      %v3205 = vmul.f32 %v3202, %v3204
      %v3206 = vadd.f32 %v3202, %v3205
      %vm3207 = vweird.f32 %v3096
      %vm3208 = vweird.f32 %v3202
      %vm3209 = vmor %vm3207, %vm3208
      %v3210 = vsel %vm3209, %v3202, %v3206
      %v3211 = vand.u32 2147483647, %v3096
      %vm3212 = vcmp.eq.f32.partialorder %v3211, 8.507059e+37
      %v3213 = vand.u32 %v3096, 2147483648
      %v3214 = vor.u32 1.1754944e-38, %v3213
      %v3215 = vsel %vm3212, %v3214, %v3210
      %v3216 = vmul.f32 1.0, %v3215
      %v3217 = vtanh.pop %v3057
      %v3218 = vtanh.pop %v3058
      %v3219 = vtanh.pop %v3059
      %v3220 = vtanh.pop %v3060
      %v3221 = vtanh.pop %v3061
      %v3222 = vtanh.pop %v3062
      %v3223 = vtanh.pop %v3063
      %v3224 = vtanh.pop %v3064
      %v3233 = vrot.slane %v2939, 7
      %v3234 = vrot.slane %v2940, 7
      %v3235 = vrot.slane %v2941, 7
      %v3236 = vrot.slane %v2942, 7
      %v3237 = vrot.slane %v2943, 7
      %v3238 = vrot.slane %v2944, 7
      %v3239 = vrot.slane %v2945, 7
      %v3240 = vrot.slane %v2946, 7
      %v3249 = vmul.f32 %v3111, %v3233
      %v3250 = vmul.f32 %v3126, %v3234
      %v3251 = vmul.f32 %v3141, %v3235
      %v3252 = vmul.f32 %v3156, %v3236
      %v3253 = vmul.f32 %v3171, %v3237
      %v3254 = vmul.f32 %v3186, %v3238
      %v3255 = vmul.f32 %v3201, %v3239
      %v3256 = vmul.f32 %v3216, %v3240
      %3265 = vrot.lane.b32.xlu0 %v3217, 112
      %v3266 = vpop.permute.xlu0 %3265
      %3267 = vrot.lane.b32.xlu0 %v3218, 112
      %v3268 = vpop.permute.xlu0 %3267
      %3269 = vrot.lane.b32.xlu0 %v3219, 112
      %v3270 = vpop.permute.xlu0 %3269
      %3271 = vrot.lane.b32.xlu0 %v3220, 112
      %v3272 = vpop.permute.xlu0 %3271
      %3273 = vrot.lane.b32.xlu0 %v3221, 112
      %v3274 = vpop.permute.xlu0 %3273
      %3275 = vrot.lane.b32.xlu0 %v3222, 112
      %v3276 = vpop.permute.xlu0 %3275
      %3277 = vrot.lane.b32.xlu0 %v3223, 112
      %v3278 = vpop.permute.xlu0 %3277
      %3279 = vrot.lane.b32.xlu0 %v3224, 112
      %v3280 = vpop.permute.xlu0 %3279
      %v3289 = vmul.f32 %v3111, %v3266
      %v3290 = vmul.f32 %v3126, %v3268
      %v3291 = vmul.f32 %v3141, %v3270
      %v3292 = vmul.f32 %v3156, %v3272
      %v3293 = vmul.f32 %v3171, %v3274
      %v3294 = vmul.f32 %v3186, %v3276
      %v3295 = vmul.f32 %v3201, %v3278
      %v3296 = vmul.f32 %v3216, %v3280
      %3305 = vrot.lane.b32.xlu0 %v3289, 8
      %v3306 = vpop.permute.xlu0 %3305
      %3307 = vrot.lane.b32.xlu0 %v3290, 8
      %v3308 = vpop.permute.xlu0 %3307
      %3309 = vrot.lane.b32.xlu0 %v3291, 8
      %v3310 = vpop.permute.xlu0 %3309
      %3311 = vrot.lane.b32.xlu0 %v3292, 8
      %v3312 = vpop.permute.xlu0 %3311
      %3313 = vrot.lane.b32.xlu0 %v3293, 8
      %v3314 = vpop.permute.xlu0 %3313
      %3315 = vrot.lane.b32.xlu0 %v3294, 8
      %v3316 = vpop.permute.xlu0 %3315
      %3317 = vrot.lane.b32.xlu0 %v3295, 8
      %v3318 = vpop.permute.xlu0 %3317
      %3319 = vrot.lane.b32.xlu0 %v3296, 8
      %v3320 = vpop.permute.xlu0 %3319
      %v3329 = vadd.f32 %v3249, %v3306
      %v3330 = vadd.f32 %v3250, %v3308
      %v3331 = vadd.f32 %v3251, %v3310
      %v3332 = vadd.f32 %v3252, %v3312
      %v3333 = vadd.f32 %v3253, %v3314
      %v3334 = vadd.f32 %v3254, %v3316
      %v3335 = vadd.f32 %v3255, %v3318
      %v3336 = vadd.f32 %v3256, %v3320
      %v3337 = vtanh.pop %v3329
      %v3338 = vtanh.pop %v3330
      %v3339 = vtanh.pop %v3331
      %v3340 = vtanh.pop %v3332
      %v3341 = vtanh.pop %v3333
      %v3342 = vtanh.pop %v3334
      %v3343 = vtanh.pop %v3335
      %v3344 = vtanh.pop %v3336
      %3353 = vrot.lane.b32.xlu0 %v3337, 16
      %v3354 = vpop.permute.xlu0 %3353
      %3355 = vrot.lane.b32.xlu0 %v3338, 16
      %v3356 = vpop.permute.xlu0 %3355
      %3357 = vrot.lane.b32.xlu0 %v3339, 16
      %v3358 = vpop.permute.xlu0 %3357
      %3359 = vrot.lane.b32.xlu0 %v3340, 16
      %v3360 = vpop.permute.xlu0 %3359
      %3361 = vrot.lane.b32.xlu0 %v3341, 16
      %v3362 = vpop.permute.xlu0 %3361
      %3363 = vrot.lane.b32.xlu0 %v3342, 16
      %v3364 = vpop.permute.xlu0 %3363
      %3365 = vrot.lane.b32.xlu0 %v3343, 16
      %v3366 = vpop.permute.xlu0 %3365
      %3367 = vrot.lane.b32.xlu0 %v3344, 16
      %v3368 = vpop.permute.xlu0 %3367
      %v3377 = vmul.f32 %v3111, %v3354
      %v3378 = vmul.f32 %v3126, %v3356
      %v3379 = vmul.f32 %v3141, %v3358
      %v3380 = vmul.f32 %v3156, %v3360
      %v3381 = vmul.f32 %v3171, %v3362
      %v3382 = vmul.f32 %v3186, %v3364
      %v3383 = vmul.f32 %v3201, %v3366
      %v3384 = vmul.f32 %v3216, %v3368
      %v3385 = vmax.f32 %v3377, 0.0
      %v3386 = vmax.f32 %v3378, 0.0
      %v3387 = vmax.f32 %v3379, 0.0
      %v3388 = vmax.f32 %v3380, 0.0
      %v3389 = vmax.f32 %v3381, 0.0
      %v3390 = vmax.f32 %v3382, 0.0
      %v3391 = vmax.f32 %v3383, 0.0
      %v3392 = vmax.f32 %v3384, 0.0
      %v3393 = vld [vmem:[%s3] sm:$0xff]
      %v3394 = vld [vmem:[%s3 + $0x8] sm:$0xff]
      %v3395 = vld [vmem:[%s4] sm:$0x3]
      %v3396 = vperm.slane %v3395, 0
      %v3405 = vrot.slane %v3385, 7
      %v3406 = vrot.slane %v3386, 6
      %v3407 = vsel %vm657, %v3406, %v3405
      %v3408 = vrot.slane %v3387, 5
      %v3409 = vsel %vm660, %v3408, %v3407
      %v3410 = vrot.slane %v3388, 4
      %v3411 = vsel %vm663, %v3410, %v3409
      %v3412 = vrot.slane %v3389, 3
      %v3413 = vsel %vm666, %v3412, %v3411
      %v3414 = vrot.slane %v3390, 2
      %v3415 = vsel %vm669, %v3414, %v3413
      %v3416 = vrot.slane %v3391, 1
      %v3417 = vsel %vm672, %v3416, %v3415
      %v3418 = vsel %vm675, %v3392, %v3417
      %3419 = vrot.lane.b32.xlu0 %v3418, 104
      %v3420 = vpop.permute.xlu0 %3419
      %v3421 = vsel %vm239, %v3420, 0
      %3423 = vmatpush.msra.mxu0 0.0
      %3424 = vmatpush.msra.mxu0 0.0
      %3425 = vmatpush.msra.mxu0 0.0
      %3426 = vmatpush.msra.mxu0 0.0
      %3427 = vmatpush.msra.mxu0 0.0
      %3428 = vmatpush.msra.mxu0 0.0
      %3429 = vmatpush.msra.mxu0 0.0
      %3430 = vmatpush.msra.mxu0 0.0
      %3431 = vmatpush.msra.mxu0 0.0
      %3432 = vmatpush.msra.mxu0 0.0
      %3433 = vmatpush.msra.mxu0 0.0
      %3434 = vmatpush.msra.mxu0 0.0
      %3435 = vmatpush.msra.mxu0 0.0
      %3436 = vmatpush.msra.mxu0 0.0
      %3437 = vmatpush.msra.mxu0 0.0
      %3438 = vmatpush.msra.mxu0 %v3393
      %3439 = vmatmul.f32.gmra.mxu0 %v3421
      %v3440 = vpop.f32.mrf.mxu0
      %v3441 = vadd.f32 %v3396, %v3440
      %3442 = vdwg.mxu0
      %vm3443 = vcmp.gt.f32.partialorder %v3441, 0.0
      %v3444 = vmul.f32 %v3441, 0.01
      %v3445 = vsel %vm3443, %v3441, %v3444
      %v3446 = vperm.slane %v3395, 1
      %v3448 = vsel %vm239, %v3445, 0
      %3450 = vmatpush.msra.mxu0 0.0
      %3451 = vmatpush.msra.mxu0 0.0
      %3452 = vmatpush.msra.mxu0 0.0
      %3453 = vmatpush.msra.mxu0 0.0
      %3454 = vmatpush.msra.mxu0 0.0
      %3455 = vmatpush.msra.mxu0 0.0
      %3456 = vmatpush.msra.mxu0 0.0
      %3457 = vmatpush.msra.mxu0 0.0
      %3458 = vmatpush.msra.mxu0 0.0
      %3459 = vmatpush.msra.mxu0 0.0
      %3460 = vmatpush.msra.mxu0 0.0
      %3461 = vmatpush.msra.mxu0 0.0
      %3462 = vmatpush.msra.mxu0 0.0
      %3463 = vmatpush.msra.mxu0 0.0
      %3464 = vmatpush.msra.mxu0 0.0
      %3465 = vmatpush.msra.mxu0 %v3394
      %3466 = vmatmul.f32.gmra.mxu0 %v3448
      %v3467 = vpop.f32.mrf.mxu0
      %v3468 = vadd.f32 %v3446, %v3467
      %3469 = vdwg.mxu0
      %vm3470 = vcmask 39936
      %v3471 = vsel %vm3470, %v3468, -inf
      %3472 = vmax.xlane.f32.xlu0 %v3471
      %v3473 = vpop.xlane.xlu0 %3472
      %v3474 = vsub.f32 %v3468, %v3473
      %v3475 = vmul.f32 %v3474, 1.442695
      %v3476 = vpow.pop %v3475
      %v3477 = vsel %vm3470, %v3476, 0.0
      %3478 = vadd.xlane.f32.xlu0 %v3477
      %v3479 = vpop.xlane.xlu0 %3478
      %v3480 = vrcp.pop %v3479
      %v3481 = vmul.f32 %v3476, %v3480
      %3482 = vst.msk [vmem:[%s224] sm:$0xff] %vm3470, %v3481
      %p3483 = scmp.lt.s32.totalorder %s16, 1
      %s3484 = scalar_select %p3483, %s16, 1
      %s3485 = smul.addr %s3484, 8
      %s3486 = scalar_lea.vmem %s5, %s3485
      // Predicated region
      $region41: #{tpu_custom_call.1} parent=39 // pred_check
        %p3487 = pneg %p144
      $region42: #{tpu_custom_call.1} parent=39 // pred_check_branch
        %3489 = sbr.rel (%p3487) target = $region44
      $region43: #{tpu_custom_call.1} parent=39 // pred_region
        _
      $region44: #{tpu_custom_call.1} parent=39 // pred_fallthru
        _
    $region40: #{tpu_custom_call.1} parent=5 // pred_fallthru
      _
    %p3490 = scmp.le.s32.totalorder 2, %s11
    // Predicated region
    $region45: #{tpu_custom_call.1} parent=5 // pred_check
      %p3491 = pneg %p3490
    $region46: #{tpu_custom_call.1} parent=5 // pred_check_branch
      %3493 = sbr.rel (%p3491) target = $region48
    $region47: #{tpu_custom_call.1} parent=5 // pred_region
      %s3494 = ssub.s32 %s11, 2
      // Predicated region
      $region49: #{tpu_custom_call.1} parent=47 // pred_check
        %p3495 = pneg %p150
      $region50: #{tpu_custom_call.1} parent=47 // pred_check_branch
        %3497 = sbr.rel (%p3495) target = $region52
      $region51: #{tpu_custom_call.1} parent=47 // pred_region
        %p3498 = scmp.lt.s32.totalorder %s17, 1
        %s3499 = scalar_select %p3498, %s17, 1
        %s3500 = smul.addr %s3499, 8
        %s3501 = scalar_lea.vmem %s5, %s3500
      $region52: #{tpu_custom_call.1} parent=47 // pred_fallthru
        _
    $region48: #{tpu_custom_call.1} parent=5 // pred_fallthru
      _
  $region6: #{tpu_custom_call.1} parent=0 // loop_footer
    %s15 = sadd.s32 1, %s11
  $region7: #{tpu_custom_call.1} parent=0 // loop_footer_branch
    %10 = sbr.rel target = $region3
  $region8: #{tpu_custom_call.1} parent=0 // loop_exit
    _

</llo_original>
